<compile_context>
chip_gen: v6e
topology: v6e:2x2x1
jax: 0.10.0
libtpu: 0.0.40
codegen_flags: <defaults>
</compile_context>

<pallas_src>
import functools

import numpy as np
import jax
import jax.numpy as jnp
from jax.experimental import pallas as pl
from jax.experimental.pallas import tpu as pltpu


# ----------------------------------------------------------------------------
# Constant pooling matrix: flattened-spatial 2x2/stride-2 average pooling.
#   pooled[n, j] = 0.25 * sum of the 4 source pixels of output pixel j
# Built with numpy so it is a compile-time constant.
# ----------------------------------------------------------------------------
def _pool_matrix_flat(h, w):
    ho, wo = h // 2, w // 2
    src = np.arange(h * w)
    sy, sx = src // w, src % w
    dst = (sy // 2) * wo + (sx // 2)
    kT = np.zeros((h * w, ho * wo), np.float32)
    kT[src, dst] = 0.25
    return jnp.asarray(kT)                              # (h*w, ho*wo)


def scale_intrinsics(intrinsics, old_dims, new_dims):
    h_old, w_old = old_dims
    h_new, w_new = new_dims
    su = float(w_new) / float(w_old)
    sv = float(h_new) / float(h_old)
    scale = jnp.array([[su], [sv], [1.0]], dtype=intrinsics.dtype)   # (3, 1)
    return intrinsics * scale[None, :, :]


# ----------------------------------------------------------------------------
# Fused per-scale kernel: pool -> warp coords -> bilinear sample -> stats.
# Single invocation (no grid). All per-pixel data is lane-major (last dim hw).
# ----------------------------------------------------------------------------
def _make_scale_kernel(B, C, h, w):
    nch = 2 * C + 2
    hw = h * w
    inv_w = 1.0 / float(w)
    inv_wm1 = 1.0 / (float(w) - 1.0)
    inv_hm1 = 1.0 / (float(h) - 1.0)
    half_wm1 = 0.5 * (float(w) - 1.0)
    half_hm1 = 0.5 * (float(h) - 1.0)
    NP = 18                                             # params per batch

    def kernel(params_ref, x_ref, k_ref, pooled_ref, stats_ref):
        # ---- 2x2 average pooling for all B*(2C+2) channel-planes at once ----
        pooled = jnp.dot(x_ref[...], k_ref[...],
                         preferred_element_type=jnp.float32)        # (B*nch, hw)
        pooled_ref[...] = pooled.astype(pooled_ref.dtype)

        # Pixel coordinates of the pooled grid, flat row-major layout (1, hw).
        pf = jax.lax.broadcasted_iota(jnp.int32, (1, hw), 1).astype(jnp.float32)
        v_pix = jnp.floor((pf + 0.5) * inv_w)           # row index  = p // w
        u_pix = pf - v_pix * float(w)                   # col index  = p %  w
        qiota = jax.lax.broadcasted_iota(jnp.int32, (hw, hw), 0)

        msum = jnp.float32(0.0)
        cnt = jnp.float32(0.0)
        mx = jnp.float32(-jnp.inf)

        for b in range(B):                              # B is tiny & static
            base = b * NP
            fu = params_ref[base + 0]
            fv = params_ref[base + 1]
            cu = params_ref[base + 2]
            cv = params_ref[base + 3]
            ifu = params_ref[base + 4]                  # 1/fu (precomputed)
            ifv = params_ref[base + 5]                  # 1/fv
            r00 = params_ref[base + 6]
            r01 = params_ref[base + 7]
            r02 = params_ref[base + 8]
            r10 = params_ref[base + 9]
            r11 = params_ref[base + 10]
            r12 = params_ref[base + 11]
            r20 = params_ref[base + 12]
            r21 = params_ref[base + 13]
            r22 = params_ref[base + 14]
            t0 = params_ref[base + 15]
            t1 = params_ref[base + 16]
            t2 = params_ref[base + 17]

            row = b * nch
            rgb_b = pooled[row:row + C]                 # (C, hw)
            near_b = pooled[row + C:row + 2 * C]        # (C, hw)
            depth = pooled[row + 2 * C:row + 2 * C + 1]           # (1, hw)
            maskb = pooled[row + 2 * C + 1:row + 2 * C + 2]       # (1, hw)

            # ---- image -> pointcloud (current frame) ----
            X = depth * (u_pix - cu) * ifu
            Y = depth * (v_pix - cv) * ifv
            Z = depth

            # ---- transform current -> near frame ----
            Xn = r00 * X + r01 * Y + r02 * Z + t0
            Yn = r10 * X + r11 * Y + r12 * Z + t1
            Zn = r20 * X + r21 * Y + r22 * Z + t2
            Zc = jnp.maximum(Zn, 1e-3)
            rz = pl.reciprocal(Zc, approx=True)         # EUP, frees VALU

            # ---- project, normalize to [-1,1] and back (align_corners=True) ----
            Up = fu * Xn * rz + cu
            Vp = fv * Yn * rz + cv
            un = 2.0 * Up * inv_wm1 - 1.0
            vn = 2.0 * Vp * inv_hm1 - 1.0
            xs = (un + 1.0) * half_wm1
            ys = (vn + 1.0) * half_hm1
            # Tame wild values before int conversion (OOB corners are zeroed
            # by the in-bounds mask anyway, so this does not change results).
            xs = jnp.clip(xs, -2.0, float(w) + 1.0)
            ys = jnp.clip(ys, -2.0, float(h) + 1.0)

            # ---- bilinear sampling as a weighted one-hot matrix ----
            x0f = jnp.floor(xs)
            y0f = jnp.floor(ys)
            wx1 = xs - x0f
            wx0 = 1.0 - wx1
            wy1 = ys - y0f
            wy0 = 1.0 - wy1
            x0 = x0f.astype(jnp.int32)
            x1 = x0 + 1
            y0 = y0f.astype(jnp.int32)
            y1 = y0 + 1

            def corner(ix, iy, wgt):
                inb = ((ix >= 0) & (ix <= w - 1) &
                       (iy >= 0) & (iy <= h - 1)).astype(jnp.float32)
                q = iy * w + ix                                       # (1, hw)
                onehot = (qiota == q).astype(jnp.float32)             # (hw, hw)
                return onehot * (wgt * inb)

            s_t = (corner(x0, y0, wx0 * wy0) + corner(x1, y0, wx1 * wy0)
                   + corner(x0, y1, wx0 * wy1) + corner(x1, y1, wx1 * wy1))
            # warped[c, p] = sum_q near[c, q] * s_t[q, p]   (zeros padding)
            warped = jnp.dot(near_b, s_t, preferred_element_type=jnp.float32)

            # ---- masked photometric L1 statistics ----
            s1 = rgb_b[0:1]
            s2 = warped[0:1]
            diff = jnp.abs(rgb_b[0:1] - warped[0:1])
            for c in range(1, C):
                s1 = s1 + rgb_b[c:c + 1]
                s2 = s2 + warped[c:c + 1]
                diff = diff + jnp.abs(rgb_b[c:c + 1] - warped[c:c + 1])
            valid = (maskb != 0.0) & (s1 > 0.0) & (s2 > 0.0)
            vf = valid.astype(jnp.float32)

            msum = msum + jnp.sum(diff * vf)
            cnt = cnt + jnp.sum(vf)
            # 255-vs-1 decision is per pooled scale, as in the reference.
            mx = jnp.maximum(mx, jnp.max(rgb_b))

        stats_ref[0] = msum
        stats_ref[1] = cnt
        stats_ref[2] = mx

    return kernel


def _scale_step(params, x_flat, kT, B, C, h_out, w_out):
    nch = 2 * C + 2
    hw = h_out * w_out
    kernel = _make_scale_kernel(B, C, h_out, w_out)
    pooled, stats = pl.pallas_call(
        kernel,
        out_shape=(
            jax.ShapeDtypeStruct((B * nch, hw), jnp.float32),
            jax.ShapeDtypeStruct((3,), jnp.float32),
        ),
        in_specs=[
            pl.BlockSpec(memory_space=pltpu.MemorySpace.SMEM),   # params (B*18,)
            pl.BlockSpec(memory_space=pltpu.MemorySpace.VMEM),   # x_flat
            pl.BlockSpec(memory_space=pltpu.MemorySpace.VMEM),   # pooling matrix
        ],
        out_specs=(
            pl.BlockSpec(memory_space=pltpu.MemorySpace.VMEM),   # pooled (next scale)
            pl.BlockSpec(memory_space=pltpu.MemorySpace.SMEM),   # 3 scalars
        ),
    )(params, x_flat, kT)
    return pooled, stats


# ----------------------------------------------------------------------------
# MultiScaleMaskedPhotometricLoss.forward
# ----------------------------------------------------------------------------
def multiscale_masked_photometric_loss(pred, rgb, rgb_near, sdepth_mask,
                                       intrinsics, rotation, translation,
                                       num_scales):
    B, C, H, W = rgb.shape
    mask = jnp.logical_not(sdepth_mask).astype(jnp.float32)
    # Fuse all four multiscale pooling chains into one tensor (nch = 2C+2).
    fused = jnp.concatenate(
        [rgb.astype(jnp.float32), rgb_near.astype(jnp.float32),
         pred.astype(jnp.float32), mask], axis=1)
    nch = 2 * C + 2
    x = fused.reshape(B * nch, H * W)                   # lane-dense spatial

    rot = rotation.reshape(B, 9).astype(jnp.float32)
    trn = translation.reshape(B, 3).astype(jnp.float32)

    loss = jnp.zeros((1,), jnp.float32)
    h, w = H, W
    for scale in range(num_scales):
        h2, w2 = h // 2, w // 2
        kT = _pool_matrix_flat(h, w)
        intr = scale_intrinsics(intrinsics, (H, W), (h2, w2)).astype(jnp.float32)
        fu = intr[:, 0, 0]
        fv = intr[:, 1, 1]
        cu = intr[:, 0, 2]
        cv = intr[:, 1, 2]
        params = jnp.concatenate(
            [fu[:, None], fv[:, None], cu[:, None], cv[:, None],
             (1.0 / fu)[:, None], (1.0 / fv)[:, None], rot, trn],
            axis=1).astype(jnp.float32).reshape(-1)     # (B*18,) flat SMEM vector

        x, stats = _scale_step(params, x, kT, B, C, h2, w2)

        masked_sum, count, rgb_max = stats[0], stats[1], stats[2]
        scale_f = jnp.where(rgb_max <= 1.0, 255.0, 1.0)
        li = jnp.where(count > 0.0,
                       scale_f * masked_sum / jnp.maximum(count, 1.0), 0.0)
        loss = loss + (2.0 ** (-(scale + 1))) * li
        h, w = h2, w2
    return loss


if __name__ == "__main__":
    B, C, H, W = 2, 3, 16, 16
    num_scales = 3

    key = jax.random.PRNGKey(0)
    k1, k2, k3, k4 = jax.random.split(key, 4)

    rgb = jax.random.uniform(k1, (B, C, H, W), jnp.float32)               # in [0, 1]
    rgb_near = jax.random.uniform(k2, (B, C, H, W), jnp.float32)
    pred = 1.0 + 4.0 * jax.random.uniform(k3, (B, 1, H, W), jnp.float32)  # positive depth
    sdepth_mask = jax.random.uniform(k4, (B, 1, H, W), jnp.float32) < 0.3  # bool

    intrinsics = jnp.broadcast_to(
        jnp.array([[16.0, 0.0, 8.0],
                   [0.0, 16.0, 8.0],
                   [0.0, 0.0, 1.0]], jnp.float32), (B, 3, 3))

    angles = jnp.array([0.03, -0.02], jnp.float32)
    c, s = jnp.cos(angles), jnp.sin(angles)
    zeros = jnp.zeros_like(c)
    ones = jnp.ones_like(c)
    rotation = jnp.stack(
        [jnp.stack([c, -s, zeros], axis=-1),
         jnp.stack([s, c, zeros], axis=-1),
         jnp.stack([zeros, zeros, ones], axis=-1)],
        axis=1,
    )                                                                      # (B, 3, 3)
    translation = jnp.array([[0.05, -0.02, 0.01],
                             [-0.03, 0.04, 0.02]], jnp.float32)            # (B, 3)

    fwd = jax.jit(functools.partial(multiscale_masked_photometric_loss,
                                    num_scales=num_scales))
    loss = fwd(pred, rgb, rgb_near, sdepth_mask, intrinsics, rotation, translation)
    jax.block_until_ready(loss)
    assert loss.shape == (1,) and jnp.isfinite(loss).all()
    print("KERNEL_OK")
</pallas_src>

<mosaic_0001>
module attributes {stable_mosaic.version = 11 : i64} {
  func.func @kernel(%arg0: memref<36xf32, #tpu.memory_space<smem>>, %arg1: memref<16x16xf32, #tpu.memory_space<vmem>>, %arg2: memref<16x4xf32, #tpu.memory_space<vmem>>, %arg3: memref<16x4xf32, #tpu.memory_space<vmem>>, %arg4: memref<3xf32, #tpu.memory_space<smem>>) attributes {dimension_semantics = [], scalar_prefetch = 0 : i64, scratch_operands = 0 : i64, tpu.core_type = #tpu.core_type<tc>} {
    %c0 = arith.constant 0 : index
    %c0_0 = arith.constant 0 : index
    %0 = vector.load %arg1[%c0, %c0_0] : memref<16x16xf32, #tpu.memory_space<vmem>>, vector<16x16xf32>
    %c0_1 = arith.constant 0 : index
    %c0_2 = arith.constant 0 : index
    %1 = vector.load %arg2[%c0_1, %c0_2] : memref<16x4xf32, #tpu.memory_space<vmem>>, vector<16x4xf32>
    %cst = arith.constant dense<0.000000e+00> : vector<16x4xf32>
    %2 = tpu.matmul %0, %1, %cst {dimension_numbers = #tpu.dot_dimension_numbers<[1], [0], [0], [1], [0, 0, 1, 1], [], []>} : vector<16x16xf32>, vector<16x4xf32>, vector<16x4xf32> -> vector<16x4xf32>
    %c0_3 = arith.constant 0 : index
    %c0_4 = arith.constant 0 : index
    %3 = vector.load %arg3[%c0_3, %c0_4] : memref<16x4xf32, #tpu.memory_space<vmem>>, vector<16x4xf32>
    tpu.vector_store %arg3[%c0_3, %c0_4], %2 {strides = array<i32>} : memref<16x4xf32, #tpu.memory_space<vmem>>, vector<16x4xf32>,
    %4 = tpu.iota {dimensions = array<i32: 1>} : vector<1x4xi32>
    %5 = arith.sitofp %4 : vector<1x4xi32> to vector<1x4xf32>
    %cst_5 = arith.constant 5.000000e-01 : f32
    %6 = vector.broadcast %cst_5 : f32 to vector<1x4xf32>
    %7 = arith.addf %5, %6 : vector<1x4xf32>
    %cst_6 = arith.constant 5.000000e-01 : f32
    %8 = vector.broadcast %cst_6 : f32 to vector<1x4xf32>
    %9 = arith.mulf %7, %8 : vector<1x4xf32>
    %10 = math.floor %9 : vector<1x4xf32>
    %cst_7 = arith.constant 2.000000e+00 : f32
    %11 = vector.broadcast %cst_7 : f32 to vector<1x4xf32>
    %12 = arith.mulf %10, %11 : vector<1x4xf32>
    %13 = arith.subf %5, %12 : vector<1x4xf32>
    %14 = tpu.iota {dimensions = array<i32: 0>} : vector<4x4xi32>
    %c0_8 = arith.constant 0 : index
    %15 = memref.load %arg0[%c0_8] : memref<36xf32, #tpu.memory_space<smem>>
    %c1 = arith.constant 1 : index
    %16 = memref.load %arg0[%c1] : memref<36xf32, #tpu.memory_space<smem>>
    %c2 = arith.constant 2 : index
    %17 = memref.load %arg0[%c2] : memref<36xf32, #tpu.memory_space<smem>>
    %c3 = arith.constant 3 : index
    %18 = memref.load %arg0[%c3] : memref<36xf32, #tpu.memory_space<smem>>
    %c4 = arith.constant 4 : index
    %19 = memref.load %arg0[%c4] : memref<36xf32, #tpu.memory_space<smem>>
    %c5 = arith.constant 5 : index
    %20 = memref.load %arg0[%c5] : memref<36xf32, #tpu.memory_space<smem>>
    %c6 = arith.constant 6 : index
    %21 = memref.load %arg0[%c6] : memref<36xf32, #tpu.memory_space<smem>>
    %c7 = arith.constant 7 : index
    %22 = memref.load %arg0[%c7] : memref<36xf32, #tpu.memory_space<smem>>
    %c8 = arith.constant 8 : index
    %23 = memref.load %arg0[%c8] : memref<36xf32, #tpu.memory_space<smem>>
    %c9 = arith.constant 9 : index
    %24 = memref.load %arg0[%c9] : memref<36xf32, #tpu.memory_space<smem>>
    %c10 = arith.constant 10 : index
    %25 = memref.load %arg0[%c10] : memref<36xf32, #tpu.memory_space<smem>>
    %c11 = arith.constant 11 : index
    %26 = memref.load %arg0[%c11] : memref<36xf32, #tpu.memory_space<smem>>
    %c12 = arith.constant 12 : index
    %27 = memref.load %arg0[%c12] : memref<36xf32, #tpu.memory_space<smem>>
    %c13 = arith.constant 13 : index
    %28 = memref.load %arg0[%c13] : memref<36xf32, #tpu.memory_space<smem>>
    %c14 = arith.constant 14 : index
    %29 = memref.load %arg0[%c14] : memref<36xf32, #tpu.memory_space<smem>>
    %c15 = arith.constant 15 : index
    %30 = memref.load %arg0[%c15] : memref<36xf32, #tpu.memory_space<smem>>
    %c16 = arith.constant 16 : index
    %31 = memref.load %arg0[%c16] : memref<36xf32, #tpu.memory_space<smem>>
    %c17 = arith.constant 17 : index
    %32 = memref.load %arg0[%c17] : memref<36xf32, #tpu.memory_space<smem>>
    %33 = vector.extract_strided_slice %2 {offsets = [0, 0], sizes = [3, 4], strides = [1, 1]} : vector<16x4xf32> to vector<3x4xf32>
    %34 = vector.extract_strided_slice %2 {offsets = [3, 0], sizes = [3, 4], strides = [1, 1]} : vector<16x4xf32> to vector<3x4xf32>
    %35 = vector.extract_strided_slice %2 {offsets = [6, 0], sizes = [1, 4], strides = [1, 1]} : vector<16x4xf32> to vector<1x4xf32>
    %36 = vector.extract_strided_slice %2 {offsets = [7, 0], sizes = [1, 4], strides = [1, 1]} : vector<16x4xf32> to vector<1x4xf32>
    %37 = vector.broadcast %17 : f32 to vector<1x4xf32>
    %38 = arith.subf %13, %37 : vector<1x4xf32>
    %39 = arith.mulf %35, %38 : vector<1x4xf32>
    %40 = vector.broadcast %19 : f32 to vector<1x4xf32>
    %41 = arith.mulf %39, %40 : vector<1x4xf32>
    %42 = vector.broadcast %18 : f32 to vector<1x4xf32>
    %43 = arith.subf %10, %42 : vector<1x4xf32>
    %44 = arith.mulf %35, %43 : vector<1x4xf32>
    %45 = vector.broadcast %20 : f32 to vector<1x4xf32>
    %46 = arith.mulf %44, %45 : vector<1x4xf32>
    %47 = vector.broadcast %21 : f32 to vector<1x4xf32>
    %48 = arith.mulf %47, %41 : vector<1x4xf32>
    %49 = vector.broadcast %22 : f32 to vector<1x4xf32>
    %50 = arith.mulf %49, %46 : vector<1x4xf32>
    %51 = arith.addf %48, %50 : vector<1x4xf32>
    %52 = vector.broadcast %23 : f32 to vector<1x4xf32>
    %53 = arith.mulf %52, %35 : vector<1x4xf32>
    %54 = arith.addf %51, %53 : vector<1x4xf32>
    %55 = vector.broadcast %30 : f32 to vector<1x4xf32>
    %56 = arith.addf %54, %55 : vector<1x4xf32>
    %57 = vector.broadcast %24 : f32 to vector<1x4xf32>
    %58 = arith.mulf %57, %41 : vector<1x4xf32>
    %59 = vector.broadcast %25 : f32 to vector<1x4xf32>
    %60 = arith.mulf %59, %46 : vector<1x4xf32>
    %61 = arith.addf %58, %60 : vector<1x4xf32>
    %62 = vector.broadcast %26 : f32 to vector<1x4xf32>
    %63 = arith.mulf %62, %35 : vector<1x4xf32>
    %64 = arith.addf %61, %63 : vector<1x4xf32>
    %65 = vector.broadcast %31 : f32 to vector<1x4xf32>
    %66 = arith.addf %64, %65 : vector<1x4xf32>
    %67 = vector.broadcast %27 : f32 to vector<1x4xf32>
    %68 = arith.mulf %67, %41 : vector<1x4xf32>
    %69 = vector.broadcast %28 : f32 to vector<1x4xf32>
    %70 = arith.mulf %69, %46 : vector<1x4xf32>
    %71 = arith.addf %68, %70 : vector<1x4xf32>
    %72 = vector.broadcast %29 : f32 to vector<1x4xf32>
    %73 = arith.mulf %72, %35 : vector<1x4xf32>
    %74 = arith.addf %71, %73 : vector<1x4xf32>
    %75 = vector.broadcast %32 : f32 to vector<1x4xf32>
    %76 = arith.addf %74, %75 : vector<1x4xf32>
    %cst_9 = arith.constant 1.000000e-03 : f32
    %77 = vector.broadcast %cst_9 : f32 to vector<1x4xf32>
    %78 = arith.maximumf %76, %77 : vector<1x4xf32>
    %79 = tpu.reciprocal %78 {approx = true} : vector<1x4xf32> -> vector<1x4xf32>
    %80 = vector.broadcast %15 : f32 to vector<1x4xf32>
    %81 = arith.mulf %80, %56 : vector<1x4xf32>
    %82 = arith.mulf %81, %79 : vector<1x4xf32>
    %83 = vector.broadcast %17 : f32 to vector<1x4xf32>
    %84 = arith.addf %82, %83 : vector<1x4xf32>
    %85 = vector.broadcast %16 : f32 to vector<1x4xf32>
    %86 = arith.mulf %85, %66 : vector<1x4xf32>
    %87 = arith.mulf %86, %79 : vector<1x4xf32>
    %88 = vector.broadcast %18 : f32 to vector<1x4xf32>
    %89 = arith.addf %87, %88 : vector<1x4xf32>
    %cst_10 = arith.constant 2.000000e+00 : f32
    %90 = vector.broadcast %cst_10 : f32 to vector<1x4xf32>
    %91 = arith.mulf %90, %84 : vector<1x4xf32>
    %cst_11 = arith.constant 1.000000e+00 : f32
    %92 = vector.broadcast %cst_11 : f32 to vector<1x4xf32>
    %93 = arith.mulf %91, %92 : vector<1x4xf32>
    %cst_12 = arith.constant 1.000000e+00 : f32
    %94 = vector.broadcast %cst_12 : f32 to vector<1x4xf32>
    %95 = arith.subf %93, %94 : vector<1x4xf32>
    %cst_13 = arith.constant 2.000000e+00 : f32
    %96 = vector.broadcast %cst_13 : f32 to vector<1x4xf32>
    %97 = arith.mulf %96, %89 : vector<1x4xf32>
    %cst_14 = arith.constant 1.000000e+00 : f32
    %98 = vector.broadcast %cst_14 : f32 to vector<1x4xf32>
    %99 = arith.mulf %97, %98 : vector<1x4xf32>
    %cst_15 = arith.constant 1.000000e+00 : f32
    %100 = vector.broadcast %cst_15 : f32 to vector<1x4xf32>
    %101 = arith.subf %99, %100 : vector<1x4xf32>
    %cst_16 = arith.constant 1.000000e+00 : f32
    %102 = vector.broadcast %cst_16 : f32 to vector<1x4xf32>
    %103 = arith.addf %95, %102 : vector<1x4xf32>
    %cst_17 = arith.constant 5.000000e-01 : f32
    %104 = vector.broadcast %cst_17 : f32 to vector<1x4xf32>
    %105 = arith.mulf %103, %104 : vector<1x4xf32>
    %cst_18 = arith.constant 1.000000e+00 : f32
    %106 = vector.broadcast %cst_18 : f32 to vector<1x4xf32>
    %107 = arith.addf %101, %106 : vector<1x4xf32>
    %cst_19 = arith.constant 5.000000e-01 : f32
    %108 = vector.broadcast %cst_19 : f32 to vector<1x4xf32>
    %109 = arith.mulf %107, %108 : vector<1x4xf32>
    %cst_20 = arith.constant -2.000000e+00 : f32
    %cst_21 = arith.constant 3.000000e+00 : f32
    %110 = vector.broadcast %cst_20 : f32 to vector<1x4xf32>
    %111 = arith.maximumf %110, %105 : vector<1x4xf32>
    %112 = vector.broadcast %cst_21 : f32 to vector<1x4xf32>
    %113 = arith.minimumf %112, %111 : vector<1x4xf32>
    %cst_22 = arith.constant -2.000000e+00 : f32
    %cst_23 = arith.constant 3.000000e+00 : f32
    %114 = vector.broadcast %cst_22 : f32 to vector<1x4xf32>
    %115 = arith.maximumf %114, %109 : vector<1x4xf32>
    %116 = vector.broadcast %cst_23 : f32 to vector<1x4xf32>
    %117 = arith.minimumf %116, %115 : vector<1x4xf32>
    %118 = math.floor %113 : vector<1x4xf32>
    %119 = math.floor %117 : vector<1x4xf32>
    %120 = arith.subf %113, %118 : vector<1x4xf32>
    %cst_24 = arith.constant 1.000000e+00 : f32
    %121 = vector.broadcast %cst_24 : f32 to vector<1x4xf32>
    %122 = arith.subf %121, %120 : vector<1x4xf32>
    %123 = arith.subf %117, %119 : vector<1x4xf32>
    %cst_25 = arith.constant 1.000000e+00 : f32
    %124 = vector.broadcast %cst_25 : f32 to vector<1x4xf32>
    %125 = arith.subf %124, %123 : vector<1x4xf32>
    %126 = arith.fptosi %118 : vector<1x4xf32> to vector<1x4xi32>
    %c1_i32 = arith.constant 1 : i32
    %127 = vector.broadcast %c1_i32 : i32 to vector<1x4xi32>
    %128 = arith.addi %126, %127 : vector<1x4xi32>
    %129 = arith.fptosi %119 : vector<1x4xf32> to vector<1x4xi32>
    %c1_i32_26 = arith.constant 1 : i32
    %130 = vector.broadcast %c1_i32_26 : i32 to vector<1x4xi32>
    %131 = arith.addi %129, %130 : vector<1x4xi32>
    %132 = arith.mulf %122, %125 : vector<1x4xf32>
    %c0_i32 = arith.constant 0 : i32
    %133 = vector.broadcast %c0_i32 : i32 to vector<1x4xi32>
    %134 = arith.cmpi sge, %126, %133 : vector<1x4xi32>
    %c1_i32_27 = arith.constant 1 : i32
    %135 = vector.broadcast %c1_i32_27 : i32 to vector<1x4xi32>
    %136 = arith.cmpi sle, %126, %135 : vector<1x4xi32>
    %137 = arith.andi %134, %136 : vector<1x4xi1>
    %c0_i32_28 = arith.constant 0 : i32
    %138 = vector.broadcast %c0_i32_28 : i32 to vector<1x4xi32>
    %139 = arith.cmpi sge, %129, %138 : vector<1x4xi32>
    %140 = arith.andi %137, %139 : vector<1x4xi1>
    %c1_i32_29 = arith.constant 1 : i32
    %141 = vector.broadcast %c1_i32_29 : i32 to vector<1x4xi32>
    %142 = arith.cmpi sle, %129, %141 : vector<1x4xi32>
    %143 = arith.andi %140, %142 : vector<1x4xi1>
    %144 = arith.extui %143 : vector<1x4xi1> to vector<1x4xi32>
    %145 = arith.sitofp %144 : vector<1x4xi32> to vector<1x4xf32>
    %c2_i32 = arith.constant 2 : i32
    %146 = vector.broadcast %c2_i32 : i32 to vector<1x4xi32>
    %147 = arith.muli %129, %146 : vector<1x4xi32>
    %148 = arith.addi %147, %126 : vector<1x4xi32>
    %149 = vector.broadcast %148 : vector<1x4xi32> to vector<4x4xi32>
    %150 = arith.cmpi eq, %14, %149 : vector<4x4xi32>
    %151 = arith.extui %150 : vector<4x4xi1> to vector<4x4xi32>
    %152 = arith.sitofp %151 : vector<4x4xi32> to vector<4x4xf32>
    %153 = arith.mulf %132, %145 : vector<1x4xf32>
    %154 = vector.broadcast %153 : vector<1x4xf32> to vector<4x4xf32>
    %155 = arith.mulf %152, %154 : vector<4x4xf32>
    %156 = arith.mulf %120, %125 : vector<1x4xf32>
    %c0_i32_30 = arith.constant 0 : i32
    %157 = vector.broadcast %c0_i32_30 : i32 to vector<1x4xi32>
    %158 = arith.cmpi sge, %128, %157 : vector<1x4xi32>
    %c1_i32_31 = arith.constant 1 : i32
    %159 = vector.broadcast %c1_i32_31 : i32 to vector<1x4xi32>
    %160 = arith.cmpi sle, %128, %159 : vector<1x4xi32>
    %161 = arith.andi %158, %160 : vector<1x4xi1>
    %c0_i32_32 = arith.constant 0 : i32
    %162 = vector.broadcast %c0_i32_32 : i32 to vector<1x4xi32>
    %163 = arith.cmpi sge, %129, %162 : vector<1x4xi32>
    %164 = arith.andi %161, %163 : vector<1x4xi1>
    %c1_i32_33 = arith.constant 1 : i32
    %165 = vector.broadcast %c1_i32_33 : i32 to vector<1x4xi32>
    %166 = arith.cmpi sle, %129, %165 : vector<1x4xi32>
    %167 = arith.andi %164, %166 : vector<1x4xi1>
    %168 = arith.extui %167 : vector<1x4xi1> to vector<1x4xi32>
    %169 = arith.sitofp %168 : vector<1x4xi32> to vector<1x4xf32>
    %c2_i32_34 = arith.constant 2 : i32
    %170 = vector.broadcast %c2_i32_34 : i32 to vector<1x4xi32>
    %171 = arith.muli %129, %170 : vector<1x4xi32>
    %172 = arith.addi %171, %128 : vector<1x4xi32>
    %173 = vector.broadcast %172 : vector<1x4xi32> to vector<4x4xi32>
    %174 = arith.cmpi eq, %14, %173 : vector<4x4xi32>
    %175 = arith.extui %174 : vector<4x4xi1> to vector<4x4xi32>
    %176 = arith.sitofp %175 : vector<4x4xi32> to vector<4x4xf32>
    %177 = arith.mulf %156, %169 : vector<1x4xf32>
    %178 = vector.broadcast %177 : vector<1x4xf32> to vector<4x4xf32>
    %179 = arith.mulf %176, %178 : vector<4x4xf32>
    %180 = arith.addf %155, %179 : vector<4x4xf32>
    %181 = arith.mulf %122, %123 : vector<1x4xf32>
    %c0_i32_35 = arith.constant 0 : i32
    %182 = vector.broadcast %c0_i32_35 : i32 to vector<1x4xi32>
    %183 = arith.cmpi sge, %126, %182 : vector<1x4xi32>
    %c1_i32_36 = arith.constant 1 : i32
    %184 = vector.broadcast %c1_i32_36 : i32 to vector<1x4xi32>
    %185 = arith.cmpi sle, %126, %184 : vector<1x4xi32>
    %186 = arith.andi %183, %185 : vector<1x4xi1>
    %c0_i32_37 = arith.constant 0 : i32
    %187 = vector.broadcast %c0_i32_37 : i32 to vector<1x4xi32>
    %188 = arith.cmpi sge, %131, %187 : vector<1x4xi32>
    %189 = arith.andi %186, %188 : vector<1x4xi1>
    %c1_i32_38 = arith.constant 1 : i32
    %190 = vector.broadcast %c1_i32_38 : i32 to vector<1x4xi32>
    %191 = arith.cmpi sle, %131, %190 : vector<1x4xi32>
    %192 = arith.andi %189, %191 : vector<1x4xi1>
    %193 = arith.extui %192 : vector<1x4xi1> to vector<1x4xi32>
    %194 = arith.sitofp %193 : vector<1x4xi32> to vector<1x4xf32>
    %c2_i32_39 = arith.constant 2 : i32
    %195 = vector.broadcast %c2_i32_39 : i32 to vector<1x4xi32>
    %196 = arith.muli %131, %195 : vector<1x4xi32>
    %197 = arith.addi %196, %126 : vector<1x4xi32>
    %198 = vector.broadcast %197 : vector<1x4xi32> to vector<4x4xi32>
    %199 = arith.cmpi eq, %14, %198 : vector<4x4xi32>
    %200 = arith.extui %199 : vector<4x4xi1> to vector<4x4xi32>
    %201 = arith.sitofp %200 : vector<4x4xi32> to vector<4x4xf32>
    %202 = arith.mulf %181, %194 : vector<1x4xf32>
    %203 = vector.broadcast %202 : vector<1x4xf32> to vector<4x4xf32>
    %204 = arith.mulf %201, %203 : vector<4x4xf32>
    %205 = arith.addf %180, %204 : vector<4x4xf32>
    %206 = arith.mulf %120, %123 : vector<1x4xf32>
    %c0_i32_40 = arith.constant 0 : i32
    %207 = vector.broadcast %c0_i32_40 : i32 to vector<1x4xi32>
    %208 = arith.cmpi sge, %128, %207 : vector<1x4xi32>
    %c1_i32_41 = arith.constant 1 : i32
    %209 = vector.broadcast %c1_i32_41 : i32 to vector<1x4xi32>
    %210 = arith.cmpi sle, %128, %209 : vector<1x4xi32>
    %211 = arith.andi %208, %210 : vector<1x4xi1>
    %c0_i32_42 = arith.constant 0 : i32
    %212 = vector.broadcast %c0_i32_42 : i32 to vector<1x4xi32>
    %213 = arith.cmpi sge, %131, %212 : vector<1x4xi32>
    %214 = arith.andi %211, %213 : vector<1x4xi1>
    %c1_i32_43 = arith.constant 1 : i32
    %215 = vector.broadcast %c1_i32_43 : i32 to vector<1x4xi32>
    %216 = arith.cmpi sle, %131, %215 : vector<1x4xi32>
    %217 = arith.andi %214, %216 : vector<1x4xi1>
    %218 = arith.extui %217 : vector<1x4xi1> to vector<1x4xi32>
    %219 = arith.sitofp %218 : vector<1x4xi32> to vector<1x4xf32>
    %c2_i32_44 = arith.constant 2 : i32
    %220 = vector.broadcast %c2_i32_44 : i32 to vector<1x4xi32>
    %221 = arith.muli %131, %220 : vector<1x4xi32>
    %222 = arith.addi %221, %128 : vector<1x4xi32>
    %223 = vector.broadcast %222 : vector<1x4xi32> to vector<4x4xi32>
    %224 = arith.cmpi eq, %14, %223 : vector<4x4xi32>
    %225 = arith.extui %224 : vector<4x4xi1> to vector<4x4xi32>
    %226 = arith.sitofp %225 : vector<4x4xi32> to vector<4x4xf32>
    %227 = arith.mulf %206, %219 : vector<1x4xf32>
    %228 = vector.broadcast %227 : vector<1x4xf32> to vector<4x4xf32>
    %229 = arith.mulf %226, %228 : vector<4x4xf32>
    %230 = arith.addf %205, %229 : vector<4x4xf32>
    %cst_45 = arith.constant dense<0.000000e+00> : vector<3x4xf32>
    %231 = tpu.matmul %34, %230, %cst_45 {dimension_numbers = #tpu.dot_dimension_numbers<[1], [0], [0], [1], [0, 0, 1, 1], [], []>} : vector<3x4xf32>, vector<4x4xf32>, vector<3x4xf32> -> vector<3x4xf32>
    %232 = vector.extract_strided_slice %33 {offsets = [0, 0], sizes = [1, 4], strides = [1, 1]} : vector<3x4xf32> to vector<1x4xf32>
    %233 = vector.extract_strided_slice %231 {offsets = [0, 0], sizes = [1, 4], strides = [1, 1]} : vector<3x4xf32> to vector<1x4xf32>
    %234 = vector.extract_strided_slice %33 {offsets = [0, 0], sizes = [1, 4], strides = [1, 1]} : vector<3x4xf32> to vector<1x4xf32>
    %235 = vector.extract_strided_slice %231 {offsets = [0, 0], sizes = [1, 4], strides = [1, 1]} : vector<3x4xf32> to vector<1x4xf32>
    %236 = arith.subf %234, %235 : vector<1x4xf32>
    %237 = math.absf %236 : vector<1x4xf32>
    %238 = vector.extract_strided_slice %33 {offsets = [1, 0], sizes = [1, 4], strides = [1, 1]} : vector<3x4xf32> to vector<1x4xf32>
    %239 = arith.addf %232, %238 : vector<1x4xf32>
    %240 = vector.extract_strided_slice %231 {offsets = [1, 0], sizes = [1, 4], strides = [1, 1]} : vector<3x4xf32> to vector<1x4xf32>
    %241 = arith.addf %233, %240 : vector<1x4xf32>
    %242 = vector.extract_strided_slice %33 {offsets = [1, 0], sizes = [1, 4], strides = [1, 1]} : vector<3x4xf32> to vector<1x4xf32>
    %243 = vector.extract_strided_slice %231 {offsets = [1, 0], sizes = [1, 4], strides = [1, 1]} : vector<3x4xf32> to vector<1x4xf32>
    %244 = arith.subf %242, %243 : vector<1x4xf32>
    %245 = math.absf %244 : vector<1x4xf32>
    %246 = arith.addf %237, %245 : vector<1x4xf32>
    %247 = vector.extract_strided_slice %33 {offsets = [2, 0], sizes = [1, 4], strides = [1, 1]} : vector<3x4xf32> to vector<1x4xf32>
    %248 = arith.addf %239, %247 : vector<1x4xf32>
    %249 = vector.extract_strided_slice %231 {offsets = [2, 0], sizes = [1, 4], strides = [1, 1]} : vector<3x4xf32> to vector<1x4xf32>
    %250 = arith.addf %241, %249 : vector<1x4xf32>
    %251 = vector.extract_strided_slice %33 {offsets = [2, 0], sizes = [1, 4], strides = [1, 1]} : vector<3x4xf32> to vector<1x4xf32>
    %252 = vector.extract_strided_slice %231 {offsets = [2, 0], sizes = [1, 4], strides = [1, 1]} : vector<3x4xf32> to vector<1x4xf32>
    %253 = arith.subf %251, %252 : vector<1x4xf32>
    %254 = math.absf %253 : vector<1x4xf32>
    %255 = arith.addf %246, %254 : vector<1x4xf32>
    %cst_46 = arith.constant 0.000000e+00 : f32
    %256 = vector.broadcast %cst_46 : f32 to vector<1x4xf32>
    %257 = arith.cmpf one, %36, %256 : vector<1x4xf32>
    %cst_47 = arith.constant 0.000000e+00 : f32
    %258 = vector.broadcast %cst_47 : f32 to vector<1x4xf32>
    %259 = arith.cmpf ogt, %248, %258 : vector<1x4xf32>
    %260 = arith.andi %257, %259 : vector<1x4xi1>
    %cst_48 = arith.constant 0.000000e+00 : f32
    %261 = vector.broadcast %cst_48 : f32 to vector<1x4xf32>
    %262 = arith.cmpf ogt, %250, %261 : vector<1x4xf32>
    %263 = arith.andi %260, %262 : vector<1x4xi1>
    %264 = arith.extui %263 : vector<1x4xi1> to vector<1x4xi32>
    %265 = arith.sitofp %264 : vector<1x4xi32> to vector<1x4xf32>
    %266 = arith.mulf %255, %265 : vector<1x4xf32>
    %267 = vector.shape_cast %266 : vector<1x4xf32> to vector<1x1x4xf32>
    %cst_49 = arith.constant dense<0.000000e+00> : vector<1xf32>
    %268 = vector.multi_reduction <add>, %267, %cst_49 [1, 2] : vector<1x1x4xf32> to vector<1xf32>
    %269 = vector.shape_cast %268 : vector<1xf32> to vector<1x1x1xf32>
    %270 = vector.extract %269[0, 0, 0] : f32 from vector<1x1x1xf32>
    %cst_50 = arith.constant 0.000000e+00 : f32
    %271 = arith.addf %cst_50, %270 : f32
    %272 = vector.shape_cast %265 : vector<1x4xf32> to vector<1x1x4xf32>
    %cst_51 = arith.constant dense<0.000000e+00> : vector<1xf32>
    %273 = vector.multi_reduction <add>, %272, %cst_51 [1, 2] : vector<1x1x4xf32> to vector<1xf32>
    %274 = vector.shape_cast %273 : vector<1xf32> to vector<1x1x1xf32>
    %275 = vector.extract %274[0, 0, 0] : f32 from vector<1x1x1xf32>
    %cst_52 = arith.constant 0.000000e+00 : f32
    %276 = arith.addf %cst_52, %275 : f32
    %277 = vector.shape_cast %33 : vector<3x4xf32> to vector<1x3x4xf32>
    %cst_53 = arith.constant dense<0xFF800000> : vector<1xf32>
    %278 = vector.multi_reduction <maximumf>, %277, %cst_53 [1, 2] : vector<1x3x4xf32> to vector<1xf32>
    %279 = vector.shape_cast %278 : vector<1xf32> to vector<1x1x1xf32>
    %280 = vector.extract %279[0, 0, 0] : f32 from vector<1x1x1xf32>
    %cst_54 = arith.constant 0xFF800000 : f32
    %281 = arith.maximumf %cst_54, %280 : f32
    %c18 = arith.constant 18 : index
    %282 = memref.load %arg0[%c18] : memref<36xf32, #tpu.memory_space<smem>>
    %c19 = arith.constant 19 : index
    %283 = memref.load %arg0[%c19] : memref<36xf32, #tpu.memory_space<smem>>
    %c20 = arith.constant 20 : index
    %284 = memref.load %arg0[%c20] : memref<36xf32, #tpu.memory_space<smem>>
    %c21 = arith.constant 21 : index
    %285 = memref.load %arg0[%c21] : memref<36xf32, #tpu.memory_space<smem>>
    %c22 = arith.constant 22 : index
    %286 = memref.load %arg0[%c22] : memref<36xf32, #tpu.memory_space<smem>>
    %c23 = arith.constant 23 : index
    %287 = memref.load %arg0[%c23] : memref<36xf32, #tpu.memory_space<smem>>
    %c24 = arith.constant 24 : index
    %288 = memref.load %arg0[%c24] : memref<36xf32, #tpu.memory_space<smem>>
    %c25 = arith.constant 25 : index
    %289 = memref.load %arg0[%c25] : memref<36xf32, #tpu.memory_space<smem>>
    %c26 = arith.constant 26 : index
    %290 = memref.load %arg0[%c26] : memref<36xf32, #tpu.memory_space<smem>>
    %c27 = arith.constant 27 : index
    %291 = memref.load %arg0[%c27] : memref<36xf32, #tpu.memory_space<smem>>
    %c28 = arith.constant 28 : index
    %292 = memref.load %arg0[%c28] : memref<36xf32, #tpu.memory_space<smem>>
    %c29 = arith.constant 29 : index
    %293 = memref.load %arg0[%c29] : memref<36xf32, #tpu.memory_space<smem>>
    %c30 = arith.constant 30 : index
    %294 = memref.load %arg0[%c30] : memref<36xf32, #tpu.memory_space<smem>>
    %c31 = arith.constant 31 : index
    %295 = memref.load %arg0[%c31] : memref<36xf32, #tpu.memory_space<smem>>
    %c32 = arith.constant 32 : index
    %296 = memref.load %arg0[%c32] : memref<36xf32, #tpu.memory_space<smem>>
    %c33 = arith.constant 33 : index
    %297 = memref.load %arg0[%c33] : memref<36xf32, #tpu.memory_space<smem>>
    %c34 = arith.constant 34 : index
    %298 = memref.load %arg0[%c34] : memref<36xf32, #tpu.memory_space<smem>>
    %c35 = arith.constant 35 : index
    %299 = memref.load %arg0[%c35] : memref<36xf32, #tpu.memory_space<smem>>
    %300 = vector.extract_strided_slice %2 {offsets = [8, 0], sizes = [3, 4], strides = [1, 1]} : vector<16x4xf32> to vector<3x4xf32>
    %301 = vector.extract_strided_slice %2 {offsets = [11, 0], sizes = [3, 4], strides = [1, 1]} : vector<16x4xf32> to vector<3x4xf32>
    %302 = vector.extract_strided_slice %2 {offsets = [14, 0], sizes = [1, 4], strides = [1, 1]} : vector<16x4xf32> to vector<1x4xf32>
    %303 = vector.extract_strided_slice %2 {offsets = [15, 0], sizes = [1, 4], strides = [1, 1]} : vector<16x4xf32> to vector<1x4xf32>
    %304 = vector.broadcast %284 : f32 to vector<1x4xf32>
    %305 = arith.subf %13, %304 : vector<1x4xf32>
    %306 = arith.mulf %302, %305 : vector<1x4xf32>
    %307 = vector.broadcast %286 : f32 to vector<1x4xf32>
    %308 = arith.mulf %306, %307 : vector<1x4xf32>
    %309 = vector.broadcast %285 : f32 to vector<1x4xf32>
    %310 = arith.subf %10, %309 : vector<1x4xf32>
    %311 = arith.mulf %302, %310 : vector<1x4xf32>
    %312 = vector.broadcast %287 : f32 to vector<1x4xf32>
    %313 = arith.mulf %311, %312 : vector<1x4xf32>
    %314 = vector.broadcast %288 : f32 to vector<1x4xf32>
    %315 = arith.mulf %314, %308 : vector<1x4xf32>
    %316 = vector.broadcast %289 : f32 to vector<1x4xf32>
    %317 = arith.mulf %316, %313 : vector<1x4xf32>
    %318 = arith.addf %315, %317 : vector<1x4xf32>
    %319 = vector.broadcast %290 : f32 to vector<1x4xf32>
    %320 = arith.mulf %319, %302 : vector<1x4xf32>
    %321 = arith.addf %318, %320 : vector<1x4xf32>
    %322 = vector.broadcast %297 : f32 to vector<1x4xf32>
    %323 = arith.addf %321, %322 : vector<1x4xf32>
    %324 = vector.broadcast %291 : f32 to vector<1x4xf32>
    %325 = arith.mulf %324, %308 : vector<1x4xf32>
    %326 = vector.broadcast %292 : f32 to vector<1x4xf32>
    %327 = arith.mulf %326, %313 : vector<1x4xf32>
    %328 = arith.addf %325, %327 : vector<1x4xf32>
    %329 = vector.broadcast %293 : f32 to vector<1x4xf32>
    %330 = arith.mulf %329, %302 : vector<1x4xf32>
    %331 = arith.addf %328, %330 : vector<1x4xf32>
    %332 = vector.broadcast %298 : f32 to vector<1x4xf32>
    %333 = arith.addf %331, %332 : vector<1x4xf32>
    %334 = vector.broadcast %294 : f32 to vector<1x4xf32>
    %335 = arith.mulf %334, %308 : vector<1x4xf32>
    %336 = vector.broadcast %295 : f32 to vector<1x4xf32>
    %337 = arith.mulf %336, %313 : vector<1x4xf32>
    %338 = arith.addf %335, %337 : vector<1x4xf32>
    %339 = vector.broadcast %296 : f32 to vector<1x4xf32>
    %340 = arith.mulf %339, %302 : vector<1x4xf32>
    %341 = arith.addf %338, %340 : vector<1x4xf32>
    %342 = vector.broadcast %299 : f32 to vector<1x4xf32>
    %343 = arith.addf %341, %342 : vector<1x4xf32>
    %cst_55 = arith.constant 1.000000e-03 : f32
    %344 = vector.broadcast %cst_55 : f32 to vector<1x4xf32>
    %345 = arith.maximumf %343, %344 : vector<1x4xf32>
    %346 = tpu.reciprocal %345 {approx = true} : vector<1x4xf32> -> vector<1x4xf32>
    %347 = vector.broadcast %282 : f32 to vector<1x4xf32>
    %348 = arith.mulf %347, %323 : vector<1x4xf32>
    %349 = arith.mulf %348, %346 : vector<1x4xf32>
    %350 = vector.broadcast %284 : f32 to vector<1x4xf32>
    %351 = arith.addf %349, %350 : vector<1x4xf32>
    %352 = vector.broadcast %283 : f32 to vector<1x4xf32>
    %353 = arith.mulf %352, %333 : vector<1x4xf32>
    %354 = arith.mulf %353, %346 : vector<1x4xf32>
    %355 = vector.broadcast %285 : f32 to vector<1x4xf32>
    %356 = arith.addf %354, %355 : vector<1x4xf32>
    %cst_56 = arith.constant 2.000000e+00 : f32
    %357 = vector.broadcast %cst_56 : f32 to vector<1x4xf32>
    %358 = arith.mulf %357, %351 : vector<1x4xf32>
    %cst_57 = arith.constant 1.000000e+00 : f32
    %359 = vector.broadcast %cst_57 : f32 to vector<1x4xf32>
    %360 = arith.mulf %358, %359 : vector<1x4xf32>
    %cst_58 = arith.constant 1.000000e+00 : f32
    %361 = vector.broadcast %cst_58 : f32 to vector<1x4xf32>
    %362 = arith.subf %360, %361 : vector<1x4xf32>
    %cst_59 = arith.constant 2.000000e+00 : f32
    %363 = vector.broadcast %cst_59 : f32 to vector<1x4xf32>
    %364 = arith.mulf %363, %356 : vector<1x4xf32>
    %cst_60 = arith.constant 1.000000e+00 : f32
    %365 = vector.broadcast %cst_60 : f32 to vector<1x4xf32>
    %366 = arith.mulf %364, %365 : vector<1x4xf32>
    %cst_61 = arith.constant 1.000000e+00 : f32
    %367 = vector.broadcast %cst_61 : f32 to vector<1x4xf32>
    %368 = arith.subf %366, %367 : vector<1x4xf32>
    %cst_62 = arith.constant 1.000000e+00 : f32
    %369 = vector.broadcast %cst_62 : f32 to vector<1x4xf32>
    %370 = arith.addf %362, %369 : vector<1x4xf32>
    %cst_63 = arith.constant 5.000000e-01 : f32
    %371 = vector.broadcast %cst_63 : f32 to vector<1x4xf32>
    %372 = arith.mulf %370, %371 : vector<1x4xf32>
    %cst_64 = arith.constant 1.000000e+00 : f32
    %373 = vector.broadcast %cst_64 : f32 to vector<1x4xf32>
    %374 = arith.addf %368, %373 : vector<1x4xf32>
    %cst_65 = arith.constant 5.000000e-01 : f32
    %375 = vector.broadcast %cst_65 : f32 to vector<1x4xf32>
    %376 = arith.mulf %374, %375 : vector<1x4xf32>
    %cst_66 = arith.constant -2.000000e+00 : f32
    %cst_67 = arith.constant 3.000000e+00 : f32
    %377 = vector.broadcast %cst_66 : f32 to vector<1x4xf32>
    %378 = arith.maximumf %377, %372 : vector<1x4xf32>
    %379 = vector.broadcast %cst_67 : f32 to vector<1x4xf32>
    %380 = arith.minimumf %379, %378 : vector<1x4xf32>
    %cst_68 = arith.constant -2.000000e+00 : f32
    %cst_69 = arith.constant 3.000000e+00 : f32
    %381 = vector.broadcast %cst_68 : f32 to vector<1x4xf32>
    %382 = arith.maximumf %381, %376 : vector<1x4xf32>
    %383 = vector.broadcast %cst_69 : f32 to vector<1x4xf32>
    %384 = arith.minimumf %383, %382 : vector<1x4xf32>
    %385 = math.floor %380 : vector<1x4xf32>
    %386 = math.floor %384 : vector<1x4xf32>
    %387 = arith.subf %380, %385 : vector<1x4xf32>
    %cst_70 = arith.constant 1.000000e+00 : f32
    %388 = vector.broadcast %cst_70 : f32 to vector<1x4xf32>
    %389 = arith.subf %388, %387 : vector<1x4xf32>
    %390 = arith.subf %384, %386 : vector<1x4xf32>
    %cst_71 = arith.constant 1.000000e+00 : f32
    %391 = vector.broadcast %cst_71 : f32 to vector<1x4xf32>
    %392 = arith.subf %391, %390 : vector<1x4xf32>
    %393 = arith.fptosi %385 : vector<1x4xf32> to vector<1x4xi32>
    %c1_i32_72 = arith.constant 1 : i32
    %394 = vector.broadcast %c1_i32_72 : i32 to vector<1x4xi32>
    %395 = arith.addi %393, %394 : vector<1x4xi32>
    %396 = arith.fptosi %386 : vector<1x4xf32> to vector<1x4xi32>
    %c1_i32_73 = arith.constant 1 : i32
    %397 = vector.broadcast %c1_i32_73 : i32 to vector<1x4xi32>
    %398 = arith.addi %396, %397 : vector<1x4xi32>
    %399 = arith.mulf %389, %392 : vector<1x4xf32>
    %c0_i32_74 = arith.constant 0 : i32
    %400 = vector.broadcast %c0_i32_74 : i32 to vector<1x4xi32>
    %401 = arith.cmpi sge, %393, %400 : vector<1x4xi32>
    %c1_i32_75 = arith.constant 1 : i32
    %402 = vector.broadcast %c1_i32_75 : i32 to vector<1x4xi32>
    %403 = arith.cmpi sle, %393, %402 : vector<1x4xi32>
    %404 = arith.andi %401, %403 : vector<1x4xi1>
    %c0_i32_76 = arith.constant 0 : i32
    %405 = vector.broadcast %c0_i32_76 : i32 to vector<1x4xi32>
    %406 = arith.cmpi sge, %396, %405 : vector<1x4xi32>
    %407 = arith.andi %404, %406 : vector<1x4xi1>
    %c1_i32_77 = arith.constant 1 : i32
    %408 = vector.broadcast %c1_i32_77 : i32 to vector<1x4xi32>
    %409 = arith.cmpi sle, %396, %408 : vector<1x4xi32>
    %410 = arith.andi %407, %409 : vector<1x4xi1>
    %411 = arith.extui %410 : vector<1x4xi1> to vector<1x4xi32>
    %412 = arith.sitofp %411 : vector<1x4xi32> to vector<1x4xf32>
    %c2_i32_78 = arith.constant 2 : i32
    %413 = vector.broadcast %c2_i32_78 : i32 to vector<1x4xi32>
    %414 = arith.muli %396, %413 : vector<1x4xi32>
    %415 = arith.addi %414, %393 : vector<1x4xi32>
    %416 = vector.broadcast %415 : vector<1x4xi32> to vector<4x4xi32>
    %417 = arith.cmpi eq, %14, %416 : vector<4x4xi32>
    %418 = arith.extui %417 : vector<4x4xi1> to vector<4x4xi32>
    %419 = arith.sitofp %418 : vector<4x4xi32> to vector<4x4xf32>
    %420 = arith.mulf %399, %412 : vector<1x4xf32>
    %421 = vector.broadcast %420 : vector<1x4xf32> to vector<4x4xf32>
    %422 = arith.mulf %419, %421 : vector<4x4xf32>
    %423 = arith.mulf %387, %392 : vector<1x4xf32>
    %c0_i32_79 = arith.constant 0 : i32
    %424 = vector.broadcast %c0_i32_79 : i32 to vector<1x4xi32>
    %425 = arith.cmpi sge, %395, %424 : vector<1x4xi32>
    %c1_i32_80 = arith.constant 1 : i32
    %426 = vector.broadcast %c1_i32_80 : i32 to vector<1x4xi32>
    %427 = arith.cmpi sle, %395, %426 : vector<1x4xi32>
    %428 = arith.andi %425, %427 : vector<1x4xi1>
    %c0_i32_81 = arith.constant 0 : i32
    %429 = vector.broadcast %c0_i32_81 : i32 to vector<1x4xi32>
    %430 = arith.cmpi sge, %396, %429 : vector<1x4xi32>
    %431 = arith.andi %428, %430 : vector<1x4xi1>
    %c1_i32_82 = arith.constant 1 : i32
    %432 = vector.broadcast %c1_i32_82 : i32 to vector<1x4xi32>
    %433 = arith.cmpi sle, %396, %432 : vector<1x4xi32>
    %434 = arith.andi %431, %433 : vector<1x4xi1>
    %435 = arith.extui %434 : vector<1x4xi1> to vector<1x4xi32>
    %436 = arith.sitofp %435 : vector<1x4xi32> to vector<1x4xf32>
    %c2_i32_83 = arith.constant 2 : i32
    %437 = vector.broadcast %c2_i32_83 : i32 to vector<1x4xi32>
    %438 = arith.muli %396, %437 : vector<1x4xi32>
    %439 = arith.addi %438, %395 : vector<1x4xi32>
    %440 = vector.broadcast %439 : vector<1x4xi32> to vector<4x4xi32>
    %441 = arith.cmpi eq, %14, %440 : vector<4x4xi32>
    %442 = arith.extui %441 : vector<4x4xi1> to vector<4x4xi32>
    %443 = arith.sitofp %442 : vector<4x4xi32> to vector<4x4xf32>
    %444 = arith.mulf %423, %436 : vector<1x4xf32>
    %445 = vector.broadcast %444 : vector<1x4xf32> to vector<4x4xf32>
    %446 = arith.mulf %443, %445 : vector<4x4xf32>
    %447 = arith.addf %422, %446 : vector<4x4xf32>
    %448 = arith.mulf %389, %390 : vector<1x4xf32>
    %c0_i32_84 = arith.constant 0 : i32
    %449 = vector.broadcast %c0_i32_84 : i32 to vector<1x4xi32>
    %450 = arith.cmpi sge, %393, %449 : vector<1x4xi32>
    %c1_i32_85 = arith.constant 1 : i32
    %451 = vector.broadcast %c1_i32_85 : i32 to vector<1x4xi32>
    %452 = arith.cmpi sle, %393, %451 : vector<1x4xi32>
    %453 = arith.andi %450, %452 : vector<1x4xi1>
    %c0_i32_86 = arith.constant 0 : i32
    %454 = vector.broadcast %c0_i32_86 : i32 to vector<1x4xi32>
    %455 = arith.cmpi sge, %398, %454 : vector<1x4xi32>
    %456 = arith.andi %453, %455 : vector<1x4xi1>
    %c1_i32_87 = arith.constant 1 : i32
    %457 = vector.broadcast %c1_i32_87 : i32 to vector<1x4xi32>
    %458 = arith.cmpi sle, %398, %457 : vector<1x4xi32>
    %459 = arith.andi %456, %458 : vector<1x4xi1>
    %460 = arith.extui %459 : vector<1x4xi1> to vector<1x4xi32>
    %461 = arith.sitofp %460 : vector<1x4xi32> to vector<1x4xf32>
    %c2_i32_88 = arith.constant 2 : i32
    %462 = vector.broadcast %c2_i32_88 : i32 to vector<1x4xi32>
    %463 = arith.muli %398, %462 : vector<1x4xi32>
    %464 = arith.addi %463, %393 : vector<1x4xi32>
    %465 = vector.broadcast %464 : vector<1x4xi32> to vector<4x4xi32>
    %466 = arith.cmpi eq, %14, %465 : vector<4x4xi32>
    %467 = arith.extui %466 : vector<4x4xi1> to vector<4x4xi32>
    %468 = arith.sitofp %467 : vector<4x4xi32> to vector<4x4xf32>
    %469 = arith.mulf %448, %461 : vector<1x4xf32>
    %470 = vector.broadcast %469 : vector<1x4xf32> to vector<4x4xf32>
    %471 = arith.mulf %468, %470 : vector<4x4xf32>
    %472 = arith.addf %447, %471 : vector<4x4xf32>
    %473 = arith.mulf %387, %390 : vector<1x4xf32>
    %c0_i32_89 = arith.constant 0 : i32
    %474 = vector.broadcast %c0_i32_89 : i32 to vector<1x4xi32>
    %475 = arith.cmpi sge, %395, %474 : vector<1x4xi32>
    %c1_i32_90 = arith.constant 1 : i32
    %476 = vector.broadcast %c1_i32_90 : i32 to vector<1x4xi32>
    %477 = arith.cmpi sle, %395, %476 : vector<1x4xi32>
    %478 = arith.andi %475, %477 : vector<1x4xi1>
    %c0_i32_91 = arith.constant 0 : i32
    %479 = vector.broadcast %c0_i32_91 : i32 to vector<1x4xi32>
    %480 = arith.cmpi sge, %398, %479 : vector<1x4xi32>
    %481 = arith.andi %478, %480 : vector<1x4xi1>
    %c1_i32_92 = arith.constant 1 : i32
    %482 = vector.broadcast %c1_i32_92 : i32 to vector<1x4xi32>
    %483 = arith.cmpi sle, %398, %482 : vector<1x4xi32>
    %484 = arith.andi %481, %483 : vector<1x4xi1>
    %485 = arith.extui %484 : vector<1x4xi1> to vector<1x4xi32>
    %486 = arith.sitofp %485 : vector<1x4xi32> to vector<1x4xf32>
    %c2_i32_93 = arith.constant 2 : i32
    %487 = vector.broadcast %c2_i32_93 : i32 to vector<1x4xi32>
    %488 = arith.muli %398, %487 : vector<1x4xi32>
    %489 = arith.addi %488, %395 : vector<1x4xi32>
    %490 = vector.broadcast %489 : vector<1x4xi32> to vector<4x4xi32>
    %491 = arith.cmpi eq, %14, %490 : vector<4x4xi32>
    %492 = arith.extui %491 : vector<4x4xi1> to vector<4x4xi32>
    %493 = arith.sitofp %492 : vector<4x4xi32> to vector<4x4xf32>
    %494 = arith.mulf %473, %486 : vector<1x4xf32>
    %495 = vector.broadcast %494 : vector<1x4xf32> to vector<4x4xf32>
    %496 = arith.mulf %493, %495 : vector<4x4xf32>
    %497 = arith.addf %472, %496 : vector<4x4xf32>
    %cst_94 = arith.constant dense<0.000000e+00> : vector<3x4xf32>
    %498 = tpu.matmul %301, %497, %cst_94 {dimension_numbers = #tpu.dot_dimension_numbers<[1], [0], [0], [1], [0, 0, 1, 1], [], []>} : vector<3x4xf32>, vector<4x4xf32>, vector<3x4xf32> -> vector<3x4xf32>
    %499 = vector.extract_strided_slice %300 {offsets = [0, 0], sizes = [1, 4], strides = [1, 1]} : vector<3x4xf32> to vector<1x4xf32>
    %500 = vector.extract_strided_slice %498 {offsets = [0, 0], sizes = [1, 4], strides = [1, 1]} : vector<3x4xf32> to vector<1x4xf32>
    %501 = vector.extract_strided_slice %300 {offsets = [0, 0], sizes = [1, 4], strides = [1, 1]} : vector<3x4xf32> to vector<1x4xf32>
    %502 = vector.extract_strided_slice %498 {offsets = [0, 0], sizes = [1, 4], strides = [1, 1]} : vector<3x4xf32> to vector<1x4xf32>
    %503 = arith.subf %501, %502 : vector<1x4xf32>
    %504 = math.absf %503 : vector<1x4xf32>
    %505 = vector.extract_strided_slice %300 {offsets = [1, 0], sizes = [1, 4], strides = [1, 1]} : vector<3x4xf32> to vector<1x4xf32>
    %506 = arith.addf %499, %505 : vector<1x4xf32>
    %507 = vector.extract_strided_slice %498 {offsets = [1, 0], sizes = [1, 4], strides = [1, 1]} : vector<3x4xf32> to vector<1x4xf32>
    %508 = arith.addf %500, %507 : vector<1x4xf32>
    %509 = vector.extract_strided_slice %300 {offsets = [1, 0], sizes = [1, 4], strides = [1, 1]} : vector<3x4xf32> to vector<1x4xf32>
    %510 = vector.extract_strided_slice %498 {offsets = [1, 0], sizes = [1, 4], strides = [1, 1]} : vector<3x4xf32> to vector<1x4xf32>
    %511 = arith.subf %509, %510 : vector<1x4xf32>
    %512 = math.absf %511 : vector<1x4xf32>
    %513 = arith.addf %504, %512 : vector<1x4xf32>
    %514 = vector.extract_strided_slice %300 {offsets = [2, 0], sizes = [1, 4], strides = [1, 1]} : vector<3x4xf32> to vector<1x4xf32>
    %515 = arith.addf %506, %514 : vector<1x4xf32>
    %516 = vector.extract_strided_slice %498 {offsets = [2, 0], sizes = [1, 4], strides = [1, 1]} : vector<3x4xf32> to vector<1x4xf32>
    %517 = arith.addf %508, %516 : vector<1x4xf32>
    %518 = vector.extract_strided_slice %300 {offsets = [2, 0], sizes = [1, 4], strides = [1, 1]} : vector<3x4xf32> to vector<1x4xf32>
    %519 = vector.extract_strided_slice %498 {offsets = [2, 0], sizes = [1, 4], strides = [1, 1]} : vector<3x4xf32> to vector<1x4xf32>
    %520 = arith.subf %518, %519 : vector<1x4xf32>
    %521 = math.absf %520 : vector<1x4xf32>
    %522 = arith.addf %513, %521 : vector<1x4xf32>
    %cst_95 = arith.constant 0.000000e+00 : f32
    %523 = vector.broadcast %cst_95 : f32 to vector<1x4xf32>
    %524 = arith.cmpf one, %303, %523 : vector<1x4xf32>
    %cst_96 = arith.constant 0.000000e+00 : f32
    %525 = vector.broadcast %cst_96 : f32 to vector<1x4xf32>
    %526 = arith.cmpf ogt, %515, %525 : vector<1x4xf32>
    %527 = arith.andi %524, %526 : vector<1x4xi1>
    %cst_97 = arith.constant 0.000000e+00 : f32
    %528 = vector.broadcast %cst_97 : f32 to vector<1x4xf32>
    %529 = arith.cmpf ogt, %517, %528 : vector<1x4xf32>
    %530 = arith.andi %527, %529 : vector<1x4xi1>
    %531 = arith.extui %530 : vector<1x4xi1> to vector<1x4xi32>
    %532 = arith.sitofp %531 : vector<1x4xi32> to vector<1x4xf32>
    %533 = arith.mulf %522, %532 : vector<1x4xf32>
    %534 = vector.shape_cast %533 : vector<1x4xf32> to vector<1x1x4xf32>
    %cst_98 = arith.constant dense<0.000000e+00> : vector<1xf32>
    %535 = vector.multi_reduction <add>, %534, %cst_98 [1, 2] : vector<1x1x4xf32> to vector<1xf32>
    %536 = vector.shape_cast %535 : vector<1xf32> to vector<1x1x1xf32>
    %537 = vector.extract %536[0, 0, 0] : f32 from vector<1x1x1xf32>
    %538 = arith.addf %271, %537 : f32
    %539 = vector.shape_cast %532 : vector<1x4xf32> to vector<1x1x4xf32>
    %cst_99 = arith.constant dense<0.000000e+00> : vector<1xf32>
    %540 = vector.multi_reduction <add>, %539, %cst_99 [1, 2] : vector<1x1x4xf32> to vector<1xf32>
    %541 = vector.shape_cast %540 : vector<1xf32> to vector<1x1x1xf32>
    %542 = vector.extract %541[0, 0, 0] : f32 from vector<1x1x1xf32>
    %543 = arith.addf %276, %542 : f32
    %544 = vector.shape_cast %300 : vector<3x4xf32> to vector<1x3x4xf32>
    %cst_100 = arith.constant dense<0xFF800000> : vector<1xf32>
    %545 = vector.multi_reduction <maximumf>, %544, %cst_100 [1, 2] : vector<1x3x4xf32> to vector<1xf32>
    %546 = vector.shape_cast %545 : vector<1xf32> to vector<1x1x1xf32>
    %547 = vector.extract %546[0, 0, 0] : f32 from vector<1x1x1xf32>
    %548 = arith.maximumf %281, %547 : f32
    %c0_101 = arith.constant 0 : index
    %549 = memref.load %arg4[%c0_101] : memref<3xf32, #tpu.memory_space<smem>>
    memref.store %538, %arg4[%c0_101] : memref<3xf32, #tpu.memory_space<smem>>
    %c1_102 = arith.constant 1 : index
    %550 = memref.load %arg4[%c1_102] : memref<3xf32, #tpu.memory_space<smem>>
    memref.store %543, %arg4[%c1_102] : memref<3xf32, #tpu.memory_space<smem>>
    %c2_103 = arith.constant 2 : index
    %551 = memref.load %arg4[%c2_103] : memref<3xf32, #tpu.memory_space<smem>>
    memref.store %548, %arg4[%c2_103] : memref<3xf32, #tpu.memory_space<smem>>
    return
  }
}

module attributes {stable_mosaic.version = 11 : i64} {
  func.func @kernel(%arg0: memref<36xf32, #tpu.memory_space<smem>>, %arg1: memref<16x256xf32, #tpu.memory_space<vmem>>, %arg2: memref<256x64xf32, #tpu.memory_space<vmem>>, %arg3: memref<16x64xf32, #tpu.memory_space<vmem>>, %arg4: memref<3xf32, #tpu.memory_space<smem>>) attributes {dimension_semantics = [], scalar_prefetch = 0 : i64, scratch_operands = 0 : i64, tpu.core_type = #tpu.core_type<tc>} {
    %c0 = arith.constant 0 : index
    %c0_0 = arith.constant 0 : index
    %0 = vector.load %arg1[%c0, %c0_0] : memref<16x256xf32, #tpu.memory_space<vmem>>, vector<16x256xf32>
    %c0_1 = arith.constant 0 : index
    %c0_2 = arith.constant 0 : index
    %1 = vector.load %arg2[%c0_1, %c0_2] : memref<256x64xf32, #tpu.memory_space<vmem>>, vector<256x64xf32>
    %cst = arith.constant dense<0.000000e+00> : vector<16x64xf32>
    %2 = tpu.matmul %0, %1, %cst {dimension_numbers = #tpu.dot_dimension_numbers<[1], [0], [0], [1], [0, 0, 1, 1], [], []>} : vector<16x256xf32>, vector<256x64xf32>, vector<16x64xf32> -> vector<16x64xf32>
    %c0_3 = arith.constant 0 : index
    %c0_4 = arith.constant 0 : index
    %3 = vector.load %arg3[%c0_3, %c0_4] : memref<16x64xf32, #tpu.memory_space<vmem>>, vector<16x64xf32>
    tpu.vector_store %arg3[%c0_3, %c0_4], %2 {strides = array<i32>} : memref<16x64xf32, #tpu.memory_space<vmem>>, vector<16x64xf32>,
    %4 = tpu.iota {dimensions = array<i32: 1>} : vector<1x64xi32>
    %5 = arith.sitofp %4 : vector<1x64xi32> to vector<1x64xf32>
    %cst_5 = arith.constant 5.000000e-01 : f32
    %6 = vector.broadcast %cst_5 : f32 to vector<1x64xf32>
    %7 = arith.addf %5, %6 : vector<1x64xf32>
    %cst_6 = arith.constant 1.250000e-01 : f32
    %8 = vector.broadcast %cst_6 : f32 to vector<1x64xf32>
    %9 = arith.mulf %7, %8 : vector<1x64xf32>
    %10 = math.floor %9 : vector<1x64xf32>
    %cst_7 = arith.constant 8.000000e+00 : f32
    %11 = vector.broadcast %cst_7 : f32 to vector<1x64xf32>
    %12 = arith.mulf %10, %11 : vector<1x64xf32>
    %13 = arith.subf %5, %12 : vector<1x64xf32>
    %14 = tpu.iota {dimensions = array<i32: 0>} : vector<64x64xi32>
    %c0_8 = arith.constant 0 : index
    %15 = memref.load %arg0[%c0_8] : memref<36xf32, #tpu.memory_space<smem>>
    %c1 = arith.constant 1 : index
    %16 = memref.load %arg0[%c1] : memref<36xf32, #tpu.memory_space<smem>>
    %c2 = arith.constant 2 : index
    %17 = memref.load %arg0[%c2] : memref<36xf32, #tpu.memory_space<smem>>
    %c3 = arith.constant 3 : index
    %18 = memref.load %arg0[%c3] : memref<36xf32, #tpu.memory_space<smem>>
    %c4 = arith.constant 4 : index
    %19 = memref.load %arg0[%c4] : memref<36xf32, #tpu.memory_space<smem>>
    %c5 = arith.constant 5 : index
    %20 = memref.load %arg0[%c5] : memref<36xf32, #tpu.memory_space<smem>>
    %c6 = arith.constant 6 : index
    %21 = memref.load %arg0[%c6] : memref<36xf32, #tpu.memory_space<smem>>
    %c7 = arith.constant 7 : index
    %22 = memref.load %arg0[%c7] : memref<36xf32, #tpu.memory_space<smem>>
    %c8 = arith.constant 8 : index
    %23 = memref.load %arg0[%c8] : memref<36xf32, #tpu.memory_space<smem>>
    %c9 = arith.constant 9 : index
    %24 = memref.load %arg0[%c9] : memref<36xf32, #tpu.memory_space<smem>>
    %c10 = arith.constant 10 : index
    %25 = memref.load %arg0[%c10] : memref<36xf32, #tpu.memory_space<smem>>
    %c11 = arith.constant 11 : index
    %26 = memref.load %arg0[%c11] : memref<36xf32, #tpu.memory_space<smem>>
    %c12 = arith.constant 12 : index
    %27 = memref.load %arg0[%c12] : memref<36xf32, #tpu.memory_space<smem>>
    %c13 = arith.constant 13 : index
    %28 = memref.load %arg0[%c13] : memref<36xf32, #tpu.memory_space<smem>>
    %c14 = arith.constant 14 : index
    %29 = memref.load %arg0[%c14] : memref<36xf32, #tpu.memory_space<smem>>
    %c15 = arith.constant 15 : index
    %30 = memref.load %arg0[%c15] : memref<36xf32, #tpu.memory_space<smem>>
    %c16 = arith.constant 16 : index
    %31 = memref.load %arg0[%c16] : memref<36xf32, #tpu.memory_space<smem>>
    %c17 = arith.constant 17 : index
    %32 = memref.load %arg0[%c17] : memref<36xf32, #tpu.memory_space<smem>>
    %33 = vector.extract_strided_slice %2 {offsets = [0, 0], sizes = [3, 64], strides = [1, 1]} : vector<16x64xf32> to vector<3x64xf32>
    %34 = vector.extract_strided_slice %2 {offsets = [3, 0], sizes = [3, 64], strides = [1, 1]} : vector<16x64xf32> to vector<3x64xf32>
    %35 = vector.extract_strided_slice %2 {offsets = [6, 0], sizes = [1, 64], strides = [1, 1]} : vector<16x64xf32> to vector<1x64xf32>
    %36 = vector.extract_strided_slice %2 {offsets = [7, 0], sizes = [1, 64], strides = [1, 1]} : vector<16x64xf32> to vector<1x64xf32>
    %37 = vector.broadcast %17 : f32 to vector<1x64xf32>
    %38 = arith.subf %13, %37 : vector<1x64xf32>
    %39 = arith.mulf %35, %38 : vector<1x64xf32>
    %40 = vector.broadcast %19 : f32 to vector<1x64xf32>
    %41 = arith.mulf %39, %40 : vector<1x64xf32>
    %42 = vector.broadcast %18 : f32 to vector<1x64xf32>
    %43 = arith.subf %10, %42 : vector<1x64xf32>
    %44 = arith.mulf %35, %43 : vector<1x64xf32>
    %45 = vector.broadcast %20 : f32 to vector<1x64xf32>
    %46 = arith.mulf %44, %45 : vector<1x64xf32>
    %47 = vector.broadcast %21 : f32 to vector<1x64xf32>
    %48 = arith.mulf %47, %41 : vector<1x64xf32>
    %49 = vector.broadcast %22 : f32 to vector<1x64xf32>
    %50 = arith.mulf %49, %46 : vector<1x64xf32>
    %51 = arith.addf %48, %50 : vector<1x64xf32>
    %52 = vector.broadcast %23 : f32 to vector<1x64xf32>
    %53 = arith.mulf %52, %35 : vector<1x64xf32>
    %54 = arith.addf %51, %53 : vector<1x64xf32>
    %55 = vector.broadcast %30 : f32 to vector<1x64xf32>
    %56 = arith.addf %54, %55 : vector<1x64xf32>
    %57 = vector.broadcast %24 : f32 to vector<1x64xf32>
    %58 = arith.mulf %57, %41 : vector<1x64xf32>
    %59 = vector.broadcast %25 : f32 to vector<1x64xf32>
    %60 = arith.mulf %59, %46 : vector<1x64xf32>
    %61 = arith.addf %58, %60 : vector<1x64xf32>
    %62 = vector.broadcast %26 : f32 to vector<1x64xf32>
    %63 = arith.mulf %62, %35 : vector<1x64xf32>
    %64 = arith.addf %61, %63 : vector<1x64xf32>
    %65 = vector.broadcast %31 : f32 to vector<1x64xf32>
    %66 = arith.addf %64, %65 : vector<1x64xf32>
    %67 = vector.broadcast %27 : f32 to vector<1x64xf32>
    %68 = arith.mulf %67, %41 : vector<1x64xf32>
    %69 = vector.broadcast %28 : f32 to vector<1x64xf32>
    %70 = arith.mulf %69, %46 : vector<1x64xf32>
    %71 = arith.addf %68, %70 : vector<1x64xf32>
    %72 = vector.broadcast %29 : f32 to vector<1x64xf32>
    %73 = arith.mulf %72, %35 : vector<1x64xf32>
    %74 = arith.addf %71, %73 : vector<1x64xf32>
    %75 = vector.broadcast %32 : f32 to vector<1x64xf32>
    %76 = arith.addf %74, %75 : vector<1x64xf32>
    %cst_9 = arith.constant 1.000000e-03 : f32
    %77 = vector.broadcast %cst_9 : f32 to vector<1x64xf32>
    %78 = arith.maximumf %76, %77 : vector<1x64xf32>
    %79 = tpu.reciprocal %78 {approx = true} : vector<1x64xf32> -> vector<1x64xf32>
    %80 = vector.broadcast %15 : f32 to vector<1x64xf32>
    %81 = arith.mulf %80, %56 : vector<1x64xf32>
    %82 = arith.mulf %81, %79 : vector<1x64xf32>
    %83 = vector.broadcast %17 : f32 to vector<1x64xf32>
    %84 = arith.addf %82, %83 : vector<1x64xf32>
    %85 = vector.broadcast %16 : f32 to vector<1x64xf32>
    %86 = arith.mulf %85, %66 : vector<1x64xf32>
    %87 = arith.mulf %86, %79 : vector<1x64xf32>
    %88 = vector.broadcast %18 : f32 to vector<1x64xf32>
    %89 = arith.addf %87, %88 : vector<1x64xf32>
    %cst_10 = arith.constant 2.000000e+00 : f32
    %90 = vector.broadcast %cst_10 : f32 to vector<1x64xf32>
    %91 = arith.mulf %90, %84 : vector<1x64xf32>
    %cst_11 = arith.constant 0.142857149 : f32
    %92 = vector.broadcast %cst_11 : f32 to vector<1x64xf32>
    %93 = arith.mulf %91, %92 : vector<1x64xf32>
    %cst_12 = arith.constant 1.000000e+00 : f32
    %94 = vector.broadcast %cst_12 : f32 to vector<1x64xf32>
    %95 = arith.subf %93, %94 : vector<1x64xf32>
    %cst_13 = arith.constant 2.000000e+00 : f32
    %96 = vector.broadcast %cst_13 : f32 to vector<1x64xf32>
    %97 = arith.mulf %96, %89 : vector<1x64xf32>
    %cst_14 = arith.constant 0.142857149 : f32
    %98 = vector.broadcast %cst_14 : f32 to vector<1x64xf32>
    %99 = arith.mulf %97, %98 : vector<1x64xf32>
    %cst_15 = arith.constant 1.000000e+00 : f32
    %100 = vector.broadcast %cst_15 : f32 to vector<1x64xf32>
    %101 = arith.subf %99, %100 : vector<1x64xf32>
    %cst_16 = arith.constant 1.000000e+00 : f32
    %102 = vector.broadcast %cst_16 : f32 to vector<1x64xf32>
    %103 = arith.addf %95, %102 : vector<1x64xf32>
    %cst_17 = arith.constant 3.500000e+00 : f32
    %104 = vector.broadcast %cst_17 : f32 to vector<1x64xf32>
    %105 = arith.mulf %103, %104 : vector<1x64xf32>
    %cst_18 = arith.constant 1.000000e+00 : f32
    %106 = vector.broadcast %cst_18 : f32 to vector<1x64xf32>
    %107 = arith.addf %101, %106 : vector<1x64xf32>
    %cst_19 = arith.constant 3.500000e+00 : f32
    %108 = vector.broadcast %cst_19 : f32 to vector<1x64xf32>
    %109 = arith.mulf %107, %108 : vector<1x64xf32>
    %cst_20 = arith.constant -2.000000e+00 : f32
    %cst_21 = arith.constant 9.000000e+00 : f32
    %110 = vector.broadcast %cst_20 : f32 to vector<1x64xf32>
    %111 = arith.maximumf %110, %105 : vector<1x64xf32>
    %112 = vector.broadcast %cst_21 : f32 to vector<1x64xf32>
    %113 = arith.minimumf %112, %111 : vector<1x64xf32>
    %cst_22 = arith.constant -2.000000e+00 : f32
    %cst_23 = arith.constant 9.000000e+00 : f32
    %114 = vector.broadcast %cst_22 : f32 to vector<1x64xf32>
    %115 = arith.maximumf %114, %109 : vector<1x64xf32>
    %116 = vector.broadcast %cst_23 : f32 to vector<1x64xf32>
    %117 = arith.minimumf %116, %115 : vector<1x64xf32>
    %118 = math.floor %113 : vector<1x64xf32>
    %119 = math.floor %117 : vector<1x64xf32>
    %120 = arith.subf %113, %118 : vector<1x64xf32>
    %cst_24 = arith.constant 1.000000e+00 : f32
    %121 = vector.broadcast %cst_24 : f32 to vector<1x64xf32>
    %122 = arith.subf %121, %120 : vector<1x64xf32>
    %123 = arith.subf %117, %119 : vector<1x64xf32>
    %cst_25 = arith.constant 1.000000e+00 : f32
    %124 = vector.broadcast %cst_25 : f32 to vector<1x64xf32>
    %125 = arith.subf %124, %123 : vector<1x64xf32>
    %126 = arith.fptosi %118 : vector<1x64xf32> to vector<1x64xi32>
    %c1_i32 = arith.constant 1 : i32
    %127 = vector.broadcast %c1_i32 : i32 to vector<1x64xi32>
    %128 = arith.addi %126, %127 : vector<1x64xi32>
    %129 = arith.fptosi %119 : vector<1x64xf32> to vector<1x64xi32>
    %c1_i32_26 = arith.constant 1 : i32
    %130 = vector.broadcast %c1_i32_26 : i32 to vector<1x64xi32>
    %131 = arith.addi %129, %130 : vector<1x64xi32>
    %132 = arith.mulf %122, %125 : vector<1x64xf32>
    %c0_i32 = arith.constant 0 : i32
    %133 = vector.broadcast %c0_i32 : i32 to vector<1x64xi32>
    %134 = arith.cmpi sge, %126, %133 : vector<1x64xi32>
    %c7_i32 = arith.constant 7 : i32
    %135 = vector.broadcast %c7_i32 : i32 to vector<1x64xi32>
    %136 = arith.cmpi sle, %126, %135 : vector<1x64xi32>
    %137 = arith.andi %134, %136 : vector<1x64xi1>
    %c0_i32_27 = arith.constant 0 : i32
    %138 = vector.broadcast %c0_i32_27 : i32 to vector<1x64xi32>
    %139 = arith.cmpi sge, %129, %138 : vector<1x64xi32>
    %140 = arith.andi %137, %139 : vector<1x64xi1>
    %c7_i32_28 = arith.constant 7 : i32
    %141 = vector.broadcast %c7_i32_28 : i32 to vector<1x64xi32>
    %142 = arith.cmpi sle, %129, %141 : vector<1x64xi32>
    %143 = arith.andi %140, %142 : vector<1x64xi1>
    %144 = arith.extui %143 : vector<1x64xi1> to vector<1x64xi32>
    %145 = arith.sitofp %144 : vector<1x64xi32> to vector<1x64xf32>
    %c8_i32 = arith.constant 8 : i32
    %146 = vector.broadcast %c8_i32 : i32 to vector<1x64xi32>
    %147 = arith.muli %129, %146 : vector<1x64xi32>
    %148 = arith.addi %147, %126 : vector<1x64xi32>
    %149 = vector.broadcast %148 : vector<1x64xi32> to vector<64x64xi32>
    %150 = arith.cmpi eq, %14, %149 : vector<64x64xi32>
    %151 = arith.extui %150 : vector<64x64xi1> to vector<64x64xi32>
    %152 = arith.sitofp %151 : vector<64x64xi32> to vector<64x64xf32>
    %153 = arith.mulf %132, %145 : vector<1x64xf32>
    %154 = vector.broadcast %153 : vector<1x64xf32> to vector<64x64xf32>
    %155 = arith.mulf %152, %154 : vector<64x64xf32>
    %156 = arith.mulf %120, %125 : vector<1x64xf32>
    %c0_i32_29 = arith.constant 0 : i32
    %157 = vector.broadcast %c0_i32_29 : i32 to vector<1x64xi32>
    %158 = arith.cmpi sge, %128, %157 : vector<1x64xi32>
    %c7_i32_30 = arith.constant 7 : i32
    %159 = vector.broadcast %c7_i32_30 : i32 to vector<1x64xi32>
    %160 = arith.cmpi sle, %128, %159 : vector<1x64xi32>
    %161 = arith.andi %158, %160 : vector<1x64xi1>
    %c0_i32_31 = arith.constant 0 : i32
    %162 = vector.broadcast %c0_i32_31 : i32 to vector<1x64xi32>
    %163 = arith.cmpi sge, %129, %162 : vector<1x64xi32>
    %164 = arith.andi %161, %163 : vector<1x64xi1>
    %c7_i32_32 = arith.constant 7 : i32
    %165 = vector.broadcast %c7_i32_32 : i32 to vector<1x64xi32>
    %166 = arith.cmpi sle, %129, %165 : vector<1x64xi32>
    %167 = arith.andi %164, %166 : vector<1x64xi1>
    %168 = arith.extui %167 : vector<1x64xi1> to vector<1x64xi32>
    %169 = arith.sitofp %168 : vector<1x64xi32> to vector<1x64xf32>
    %c8_i32_33 = arith.constant 8 : i32
    %170 = vector.broadcast %c8_i32_33 : i32 to vector<1x64xi32>
    %171 = arith.muli %129, %170 : vector<1x64xi32>
    %172 = arith.addi %171, %128 : vector<1x64xi32>
    %173 = vector.broadcast %172 : vector<1x64xi32> to vector<64x64xi32>
    %174 = arith.cmpi eq, %14, %173 : vector<64x64xi32>
    %175 = arith.extui %174 : vector<64x64xi1> to vector<64x64xi32>
    %176 = arith.sitofp %175 : vector<64x64xi32> to vector<64x64xf32>
    %177 = arith.mulf %156, %169 : vector<1x64xf32>
    %178 = vector.broadcast %177 : vector<1x64xf32> to vector<64x64xf32>
    %179 = arith.mulf %176, %178 : vector<64x64xf32>
    %180 = arith.addf %155, %179 : vector<64x64xf32>
    %181 = arith.mulf %122, %123 : vector<1x64xf32>
    %c0_i32_34 = arith.constant 0 : i32
    %182 = vector.broadcast %c0_i32_34 : i32 to vector<1x64xi32>
    %183 = arith.cmpi sge, %126, %182 : vector<1x64xi32>
    %c7_i32_35 = arith.constant 7 : i32
    %184 = vector.broadcast %c7_i32_35 : i32 to vector<1x64xi32>
    %185 = arith.cmpi sle, %126, %184 : vector<1x64xi32>
    %186 = arith.andi %183, %185 : vector<1x64xi1>
    %c0_i32_36 = arith.constant 0 : i32
    %187 = vector.broadcast %c0_i32_36 : i32 to vector<1x64xi32>
    %188 = arith.cmpi sge, %131, %187 : vector<1x64xi32>
    %189 = arith.andi %186, %188 : vector<1x64xi1>
    %c7_i32_37 = arith.constant 7 : i32
    %190 = vector.broadcast %c7_i32_37 : i32 to vector<1x64xi32>
    %191 = arith.cmpi sle, %131, %190 : vector<1x64xi32>
    %192 = arith.andi %189, %191 : vector<1x64xi1>
    %193 = arith.extui %192 : vector<1x64xi1> to vector<1x64xi32>
    %194 = arith.sitofp %193 : vector<1x64xi32> to vector<1x64xf32>
    %c8_i32_38 = arith.constant 8 : i32
    %195 = vector.broadcast %c8_i32_38 : i32 to vector<1x64xi32>
    %196 = arith.muli %131, %195 : vector<1x64xi32>
    %197 = arith.addi %196, %126 : vector<1x64xi32>
    %198 = vector.broadcast %197 : vector<1x64xi32> to vector<64x64xi32>
    %199 = arith.cmpi eq, %14, %198 : vector<64x64xi32>
    %200 = arith.extui %199 : vector<64x64xi1> to vector<64x64xi32>
    %201 = arith.sitofp %200 : vector<64x64xi32> to vector<64x64xf32>
    %202 = arith.mulf %181, %194 : vector<1x64xf32>
    %203 = vector.broadcast %202 : vector<1x64xf32> to vector<64x64xf32>
    %204 = arith.mulf %201, %203 : vector<64x64xf32>
    %205 = arith.addf %180, %204 : vector<64x64xf32>
    %206 = arith.mulf %120, %123 : vector<1x64xf32>
    %c0_i32_39 = arith.constant 0 : i32
    %207 = vector.broadcast %c0_i32_39 : i32 to vector<1x64xi32>
    %208 = arith.cmpi sge, %128, %207 : vector<1x64xi32>
    %c7_i32_40 = arith.constant 7 : i32
    %209 = vector.broadcast %c7_i32_40 : i32 to vector<1x64xi32>
    %210 = arith.cmpi sle, %128, %209 : vector<1x64xi32>
    %211 = arith.andi %208, %210 : vector<1x64xi1>
    %c0_i32_41 = arith.constant 0 : i32
    %212 = vector.broadcast %c0_i32_41 : i32 to vector<1x64xi32>
    %213 = arith.cmpi sge, %131, %212 : vector<1x64xi32>
    %214 = arith.andi %211, %213 : vector<1x64xi1>
    %c7_i32_42 = arith.constant 7 : i32
    %215 = vector.broadcast %c7_i32_42 : i32 to vector<1x64xi32>
    %216 = arith.cmpi sle, %131, %215 : vector<1x64xi32>
    %217 = arith.andi %214, %216 : vector<1x64xi1>
    %218 = arith.extui %217 : vector<1x64xi1> to vector<1x64xi32>
    %219 = arith.sitofp %218 : vector<1x64xi32> to vector<1x64xf32>
    %c8_i32_43 = arith.constant 8 : i32
    %220 = vector.broadcast %c8_i32_43 : i32 to vector<1x64xi32>
    %221 = arith.muli %131, %220 : vector<1x64xi32>
    %222 = arith.addi %221, %128 : vector<1x64xi32>
    %223 = vector.broadcast %222 : vector<1x64xi32> to vector<64x64xi32>
    %224 = arith.cmpi eq, %14, %223 : vector<64x64xi32>
    %225 = arith.extui %224 : vector<64x64xi1> to vector<64x64xi32>
    %226 = arith.sitofp %225 : vector<64x64xi32> to vector<64x64xf32>
    %227 = arith.mulf %206, %219 : vector<1x64xf32>
    %228 = vector.broadcast %227 : vector<1x64xf32> to vector<64x64xf32>
    %229 = arith.mulf %226, %228 : vector<64x64xf32>
    %230 = arith.addf %205, %229 : vector<64x64xf32>
    %cst_44 = arith.constant dense<0.000000e+00> : vector<3x64xf32>
    %231 = tpu.matmul %34, %230, %cst_44 {dimension_numbers = #tpu.dot_dimension_numbers<[1], [0], [0], [1], [0, 0, 1, 1], [], []>} : vector<3x64xf32>, vector<64x64xf32>, vector<3x64xf32> -> vector<3x64xf32>
    %232 = vector.extract_strided_slice %33 {offsets = [0, 0], sizes = [1, 64], strides = [1, 1]} : vector<3x64xf32> to vector<1x64xf32>
    %233 = vector.extract_strided_slice %231 {offsets = [0, 0], sizes = [1, 64], strides = [1, 1]} : vector<3x64xf32> to vector<1x64xf32>
    %234 = vector.extract_strided_slice %33 {offsets = [0, 0], sizes = [1, 64], strides = [1, 1]} : vector<3x64xf32> to vector<1x64xf32>
    %235 = vector.extract_strided_slice %231 {offsets = [0, 0], sizes = [1, 64], strides = [1, 1]} : vector<3x64xf32> to vector<1x64xf32>
    %236 = arith.subf %234, %235 : vector<1x64xf32>
    %237 = math.absf %236 : vector<1x64xf32>
    %238 = vector.extract_strided_slice %33 {offsets = [1, 0], sizes = [1, 64], strides = [1, 1]} : vector<3x64xf32> to vector<1x64xf32>
    %239 = arith.addf %232, %238 : vector<1x64xf32>
    %240 = vector.extract_strided_slice %231 {offsets = [1, 0], sizes = [1, 64], strides = [1, 1]} : vector<3x64xf32> to vector<1x64xf32>
    %241 = arith.addf %233, %240 : vector<1x64xf32>
    %242 = vector.extract_strided_slice %33 {offsets = [1, 0], sizes = [1, 64], strides = [1, 1]} : vector<3x64xf32> to vector<1x64xf32>
    %243 = vector.extract_strided_slice %231 {offsets = [1, 0], sizes = [1, 64], strides = [1, 1]} : vector<3x64xf32> to vector<1x64xf32>
    %244 = arith.subf %242, %243 : vector<1x64xf32>
    %245 = math.absf %244 : vector<1x64xf32>
    %246 = arith.addf %237, %245 : vector<1x64xf32>
    %247 = vector.extract_strided_slice %33 {offsets = [2, 0], sizes = [1, 64], strides = [1, 1]} : vector<3x64xf32> to vector<1x64xf32>
    %248 = arith.addf %239, %247 : vector<1x64xf32>
    %249 = vector.extract_strided_slice %231 {offsets = [2, 0], sizes = [1, 64], strides = [1, 1]} : vector<3x64xf32> to vector<1x64xf32>
    %250 = arith.addf %241, %249 : vector<1x64xf32>
    %251 = vector.extract_strided_slice %33 {offsets = [2, 0], sizes = [1, 64], strides = [1, 1]} : vector<3x64xf32> to vector<1x64xf32>
    %252 = vector.extract_strided_slice %231 {offsets = [2, 0], sizes = [1, 64], strides = [1, 1]} : vector<3x64xf32> to vector<1x64xf32>
    %253 = arith.subf %251, %252 : vector<1x64xf32>
    %254 = math.absf %253 : vector<1x64xf32>
    %255 = arith.addf %246, %254 : vector<1x64xf32>
    %cst_45 = arith.constant 0.000000e+00 : f32
    %256 = vector.broadcast %cst_45 : f32 to vector<1x64xf32>
    %257 = arith.cmpf one, %36, %256 : vector<1x64xf32>
    %cst_46 = arith.constant 0.000000e+00 : f32
    %258 = vector.broadcast %cst_46 : f32 to vector<1x64xf32>
    %259 = arith.cmpf ogt, %248, %258 : vector<1x64xf32>
    %260 = arith.andi %257, %259 : vector<1x64xi1>
    %cst_47 = arith.constant 0.000000e+00 : f32
    %261 = vector.broadcast %cst_47 : f32 to vector<1x64xf32>
    %262 = arith.cmpf ogt, %250, %261 : vector<1x64xf32>
    %263 = arith.andi %260, %262 : vector<1x64xi1>
    %264 = arith.extui %263 : vector<1x64xi1> to vector<1x64xi32>
    %265 = arith.sitofp %264 : vector<1x64xi32> to vector<1x64xf32>
    %266 = arith.mulf %255, %265 : vector<1x64xf32>
    %267 = vector.shape_cast %266 : vector<1x64xf32> to vector<1x1x64xf32>
    %cst_48 = arith.constant dense<0.000000e+00> : vector<1xf32>
    %268 = vector.multi_reduction <add>, %267, %cst_48 [1, 2] : vector<1x1x64xf32> to vector<1xf32>
    %269 = vector.shape_cast %268 : vector<1xf32> to vector<1x1x1xf32>
    %270 = vector.extract %269[0, 0, 0] : f32 from vector<1x1x1xf32>
    %cst_49 = arith.constant 0.000000e+00 : f32
    %271 = arith.addf %cst_49, %270 : f32
    %272 = vector.shape_cast %265 : vector<1x64xf32> to vector<1x1x64xf32>
    %cst_50 = arith.constant dense<0.000000e+00> : vector<1xf32>
    %273 = vector.multi_reduction <add>, %272, %cst_50 [1, 2] : vector<1x1x64xf32> to vector<1xf32>
    %274 = vector.shape_cast %273 : vector<1xf32> to vector<1x1x1xf32>
    %275 = vector.extract %274[0, 0, 0] : f32 from vector<1x1x1xf32>
    %cst_51 = arith.constant 0.000000e+00 : f32
    %276 = arith.addf %cst_51, %275 : f32
    %277 = vector.shape_cast %33 : vector<3x64xf32> to vector<1x3x64xf32>
    %cst_52 = arith.constant dense<0xFF800000> : vector<1xf32>
    %278 = vector.multi_reduction <maximumf>, %277, %cst_52 [1, 2] : vector<1x3x64xf32> to vector<1xf32>
    %279 = vector.shape_cast %278 : vector<1xf32> to vector<1x1x1xf32>
    %280 = vector.extract %279[0, 0, 0] : f32 from vector<1x1x1xf32>
    %cst_53 = arith.constant 0xFF800000 : f32
    %281 = arith.maximumf %cst_53, %280 : f32
    %c18 = arith.constant 18 : index
    %282 = memref.load %arg0[%c18] : memref<36xf32, #tpu.memory_space<smem>>
    %c19 = arith.constant 19 : index
    %283 = memref.load %arg0[%c19] : memref<36xf32, #tpu.memory_space<smem>>
    %c20 = arith.constant 20 : index
    %284 = memref.load %arg0[%c20] : memref<36xf32, #tpu.memory_space<smem>>
    %c21 = arith.constant 21 : index
    %285 = memref.load %arg0[%c21] : memref<36xf32, #tpu.memory_space<smem>>
    %c22 = arith.constant 22 : index
    %286 = memref.load %arg0[%c22] : memref<36xf32, #tpu.memory_space<smem>>
    %c23 = arith.constant 23 : index
    %287 = memref.load %arg0[%c23] : memref<36xf32, #tpu.memory_space<smem>>
    %c24 = arith.constant 24 : index
    %288 = memref.load %arg0[%c24] : memref<36xf32, #tpu.memory_space<smem>>
    %c25 = arith.constant 25 : index
    %289 = memref.load %arg0[%c25] : memref<36xf32, #tpu.memory_space<smem>>
    %c26 = arith.constant 26 : index
    %290 = memref.load %arg0[%c26] : memref<36xf32, #tpu.memory_space<smem>>
    %c27 = arith.constant 27 : index
    %291 = memref.load %arg0[%c27] : memref<36xf32, #tpu.memory_space<smem>>
    %c28 = arith.constant 28 : index
    %292 = memref.load %arg0[%c28] : memref<36xf32, #tpu.memory_space<smem>>
    %c29 = arith.constant 29 : index
    %293 = memref.load %arg0[%c29] : memref<36xf32, #tpu.memory_space<smem>>
    %c30 = arith.constant 30 : index
    %294 = memref.load %arg0[%c30] : memref<36xf32, #tpu.memory_space<smem>>
    %c31 = arith.constant 31 : index
    %295 = memref.load %arg0[%c31] : memref<36xf32, #tpu.memory_space<smem>>
    %c32 = arith.constant 32 : index
    %296 = memref.load %arg0[%c32] : memref<36xf32, #tpu.memory_space<smem>>
    %c33 = arith.constant 33 : index
    %297 = memref.load %arg0[%c33] : memref<36xf32, #tpu.memory_space<smem>>
    %c34 = arith.constant 34 : index
    %298 = memref.load %arg0[%c34] : memref<36xf32, #tpu.memory_space<smem>>
    %c35 = arith.constant 35 : index
    %299 = memref.load %arg0[%c35] : memref<36xf32, #tpu.memory_space<smem>>
    %300 = vector.extract_strided_slice %2 {offsets = [8, 0], sizes = [3, 64], strides = [1, 1]} : vector<16x64xf32> to vector<3x64xf32>
    %301 = vector.extract_strided_slice %2 {offsets = [11, 0], sizes = [3, 64], strides = [1, 1]} : vector<16x64xf32> to vector<3x64xf32>
    %302 = vector.extract_strided_slice %2 {offsets = [14, 0], sizes = [1, 64], strides = [1, 1]} : vector<16x64xf32> to vector<1x64xf32>
    %303 = vector.extract_strided_slice %2 {offsets = [15, 0], sizes = [1, 64], strides = [1, 1]} : vector<16x64xf32> to vector<1x64xf32>
    %304 = vector.broadcast %284 : f32 to vector<1x64xf32>
    %305 = arith.subf %13, %304 : vector<1x64xf32>
    %306 = arith.mulf %302, %305 : vector<1x64xf32>
    %307 = vector.broadcast %286 : f32 to vector<1x64xf32>
    %308 = arith.mulf %306, %307 : vector<1x64xf32>
    %309 = vector.broadcast %285 : f32 to vector<1x64xf32>
    %310 = arith.subf %10, %309 : vector<1x64xf32>
    %311 = arith.mulf %302, %310 : vector<1x64xf32>
    %312 = vector.broadcast %287 : f32 to vector<1x64xf32>
    %313 = arith.mulf %311, %312 : vector<1x64xf32>
    %314 = vector.broadcast %288 : f32 to vector<1x64xf32>
    %315 = arith.mulf %314, %308 : vector<1x64xf32>
    %316 = vector.broadcast %289 : f32 to vector<1x64xf32>
    %317 = arith.mulf %316, %313 : vector<1x64xf32>
    %318 = arith.addf %315, %317 : vector<1x64xf32>
    %319 = vector.broadcast %290 : f32 to vector<1x64xf32>
    %320 = arith.mulf %319, %302 : vector<1x64xf32>
    %321 = arith.addf %318, %320 : vector<1x64xf32>
    %322 = vector.broadcast %297 : f32 to vector<1x64xf32>
    %323 = arith.addf %321, %322 : vector<1x64xf32>
    %324 = vector.broadcast %291 : f32 to vector<1x64xf32>
    %325 = arith.mulf %324, %308 : vector<1x64xf32>
    %326 = vector.broadcast %292 : f32 to vector<1x64xf32>
    %327 = arith.mulf %326, %313 : vector<1x64xf32>
    %328 = arith.addf %325, %327 : vector<1x64xf32>
    %329 = vector.broadcast %293 : f32 to vector<1x64xf32>
    %330 = arith.mulf %329, %302 : vector<1x64xf32>
    %331 = arith.addf %328, %330 : vector<1x64xf32>
    %332 = vector.broadcast %298 : f32 to vector<1x64xf32>
    %333 = arith.addf %331, %332 : vector<1x64xf32>
    %334 = vector.broadcast %294 : f32 to vector<1x64xf32>
    %335 = arith.mulf %334, %308 : vector<1x64xf32>
    %336 = vector.broadcast %295 : f32 to vector<1x64xf32>
    %337 = arith.mulf %336, %313 : vector<1x64xf32>
    %338 = arith.addf %335, %337 : vector<1x64xf32>
    %339 = vector.broadcast %296 : f32 to vector<1x64xf32>
    %340 = arith.mulf %339, %302 : vector<1x64xf32>
    %341 = arith.addf %338, %340 : vector<1x64xf32>
    %342 = vector.broadcast %299 : f32 to vector<1x64xf32>
    %343 = arith.addf %341, %342 : vector<1x64xf32>
    %cst_54 = arith.constant 1.000000e-03 : f32
    %344 = vector.broadcast %cst_54 : f32 to vector<1x64xf32>
    %345 = arith.maximumf %343, %344 : vector<1x64xf32>
    %346 = tpu.reciprocal %345 {approx = true} : vector<1x64xf32> -> vector<1x64xf32>
    %347 = vector.broadcast %282 : f32 to vector<1x64xf32>
    %348 = arith.mulf %347, %323 : vector<1x64xf32>
    %349 = arith.mulf %348, %346 : vector<1x64xf32>
    %350 = vector.broadcast %284 : f32 to vector<1x64xf32>
    %351 = arith.addf %349, %350 : vector<1x64xf32>
    %352 = vector.broadcast %283 : f32 to vector<1x64xf32>
    %353 = arith.mulf %352, %333 : vector<1x64xf32>
    %354 = arith.mulf %353, %346 : vector<1x64xf32>
    %355 = vector.broadcast %285 : f32 to vector<1x64xf32>
    %356 = arith.addf %354, %355 : vector<1x64xf32>
    %cst_55 = arith.constant 2.000000e+00 : f32
    %357 = vector.broadcast %cst_55 : f32 to vector<1x64xf32>
    %358 = arith.mulf %357, %351 : vector<1x64xf32>
    %cst_56 = arith.constant 0.142857149 : f32
    %359 = vector.broadcast %cst_56 : f32 to vector<1x64xf32>
    %360 = arith.mulf %358, %359 : vector<1x64xf32>
    %cst_57 = arith.constant 1.000000e+00 : f32
    %361 = vector.broadcast %cst_57 : f32 to vector<1x64xf32>
    %362 = arith.subf %360, %361 : vector<1x64xf32>
    %cst_58 = arith.constant 2.000000e+00 : f32
    %363 = vector.broadcast %cst_58 : f32 to vector<1x64xf32>
    %364 = arith.mulf %363, %356 : vector<1x64xf32>
    %cst_59 = arith.constant 0.142857149 : f32
    %365 = vector.broadcast %cst_59 : f32 to vector<1x64xf32>
    %366 = arith.mulf %364, %365 : vector<1x64xf32>
    %cst_60 = arith.constant 1.000000e+00 : f32
    %367 = vector.broadcast %cst_60 : f32 to vector<1x64xf32>
    %368 = arith.subf %366, %367 : vector<1x64xf32>
    %cst_61 = arith.constant 1.000000e+00 : f32
    %369 = vector.broadcast %cst_61 : f32 to vector<1x64xf32>
    %370 = arith.addf %362, %369 : vector<1x64xf32>
    %cst_62 = arith.constant 3.500000e+00 : f32
    %371 = vector.broadcast %cst_62 : f32 to vector<1x64xf32>
    %372 = arith.mulf %370, %371 : vector<1x64xf32>
    %cst_63 = arith.constant 1.000000e+00 : f32
    %373 = vector.broadcast %cst_63 : f32 to vector<1x64xf32>
    %374 = arith.addf %368, %373 : vector<1x64xf32>
    %cst_64 = arith.constant 3.500000e+00 : f32
    %375 = vector.broadcast %cst_64 : f32 to vector<1x64xf32>
    %376 = arith.mulf %374, %375 : vector<1x64xf32>
    %cst_65 = arith.constant -2.000000e+00 : f32
    %cst_66 = arith.constant 9.000000e+00 : f32
    %377 = vector.broadcast %cst_65 : f32 to vector<1x64xf32>
    %378 = arith.maximumf %377, %372 : vector<1x64xf32>
    %379 = vector.broadcast %cst_66 : f32 to vector<1x64xf32>
    %380 = arith.minimumf %379, %378 : vector<1x64xf32>
    %cst_67 = arith.constant -2.000000e+00 : f32
    %cst_68 = arith.constant 9.000000e+00 : f32
    %381 = vector.broadcast %cst_67 : f32 to vector<1x64xf32>
    %382 = arith.maximumf %381, %376 : vector<1x64xf32>
    %383 = vector.broadcast %cst_68 : f32 to vector<1x64xf32>
    %384 = arith.minimumf %383, %382 : vector<1x64xf32>
    %385 = math.floor %380 : vector<1x64xf32>
    %386 = math.floor %384 : vector<1x64xf32>
    %387 = arith.subf %380, %385 : vector<1x64xf32>
    %cst_69 = arith.constant 1.000000e+00 : f32
    %388 = vector.broadcast %cst_69 : f32 to vector<1x64xf32>
    %389 = arith.subf %388, %387 : vector<1x64xf32>
    %390 = arith.subf %384, %386 : vector<1x64xf32>
    %cst_70 = arith.constant 1.000000e+00 : f32
    %391 = vector.broadcast %cst_70 : f32 to vector<1x64xf32>
    %392 = arith.subf %391, %390 : vector<1x64xf32>
    %393 = arith.fptosi %385 : vector<1x64xf32> to vector<1x64xi32>
    %c1_i32_71 = arith.constant 1 : i32
    %394 = vector.broadcast %c1_i32_71 : i32 to vector<1x64xi32>
    %395 = arith.addi %393, %394 : vector<1x64xi32>
    %396 = arith.fptosi %386 : vector<1x64xf32> to vector<1x64xi32>
    %c1_i32_72 = arith.constant 1 : i32
    %397 = vector.broadcast %c1_i32_72 : i32 to vector<1x64xi32>
    %398 = arith.addi %396, %397 : vector<1x64xi32>
    %399 = arith.mulf %389, %392 : vector<1x64xf32>
    %c0_i32_73 = arith.constant 0 : i32
    %400 = vector.broadcast %c0_i32_73 : i32 to vector<1x64xi32>
    %401 = arith.cmpi sge, %393, %400 : vector<1x64xi32>
    %c7_i32_74 = arith.constant 7 : i32
    %402 = vector.broadcast %c7_i32_74 : i32 to vector<1x64xi32>
    %403 = arith.cmpi sle, %393, %402 : vector<1x64xi32>
    %404 = arith.andi %401, %403 : vector<1x64xi1>
    %c0_i32_75 = arith.constant 0 : i32
    %405 = vector.broadcast %c0_i32_75 : i32 to vector<1x64xi32>
    %406 = arith.cmpi sge, %396, %405 : vector<1x64xi32>
    %407 = arith.andi %404, %406 : vector<1x64xi1>
    %c7_i32_76 = arith.constant 7 : i32
    %408 = vector.broadcast %c7_i32_76 : i32 to vector<1x64xi32>
    %409 = arith.cmpi sle, %396, %408 : vector<1x64xi32>
    %410 = arith.andi %407, %409 : vector<1x64xi1>
    %411 = arith.extui %410 : vector<1x64xi1> to vector<1x64xi32>
    %412 = arith.sitofp %411 : vector<1x64xi32> to vector<1x64xf32>
    %c8_i32_77 = arith.constant 8 : i32
    %413 = vector.broadcast %c8_i32_77 : i32 to vector<1x64xi32>
    %414 = arith.muli %396, %413 : vector<1x64xi32>
    %415 = arith.addi %414, %393 : vector<1x64xi32>
    %416 = vector.broadcast %415 : vector<1x64xi32> to vector<64x64xi32>
    %417 = arith.cmpi eq, %14, %416 : vector<64x64xi32>
    %418 = arith.extui %417 : vector<64x64xi1> to vector<64x64xi32>
    %419 = arith.sitofp %418 : vector<64x64xi32> to vector<64x64xf32>
    %420 = arith.mulf %399, %412 : vector<1x64xf32>
    %421 = vector.broadcast %420 : vector<1x64xf32> to vector<64x64xf32>
    %422 = arith.mulf %419, %421 : vector<64x64xf32>
    %423 = arith.mulf %387, %392 : vector<1x64xf32>
    %c0_i32_78 = arith.constant 0 : i32
    %424 = vector.broadcast %c0_i32_78 : i32 to vector<1x64xi32>
    %425 = arith.cmpi sge, %395, %424 : vector<1x64xi32>
    %c7_i32_79 = arith.constant 7 : i32
    %426 = vector.broadcast %c7_i32_79 : i32 to vector<1x64xi32>
    %427 = arith.cmpi sle, %395, %426 : vector<1x64xi32>
    %428 = arith.andi %425, %427 : vector<1x64xi1>
    %c0_i32_80 = arith.constant 0 : i32
    %429 = vector.broadcast %c0_i32_80 : i32 to vector<1x64xi32>
    %430 = arith.cmpi sge, %396, %429 : vector<1x64xi32>
    %431 = arith.andi %428, %430 : vector<1x64xi1>
    %c7_i32_81 = arith.constant 7 : i32
    %432 = vector.broadcast %c7_i32_81 : i32 to vector<1x64xi32>
    %433 = arith.cmpi sle, %396, %432 : vector<1x64xi32>
    %434 = arith.andi %431, %433 : vector<1x64xi1>
    %435 = arith.extui %434 : vector<1x64xi1> to vector<1x64xi32>
    %436 = arith.sitofp %435 : vector<1x64xi32> to vector<1x64xf32>
    %c8_i32_82 = arith.constant 8 : i32
    %437 = vector.broadcast %c8_i32_82 : i32 to vector<1x64xi32>
    %438 = arith.muli %396, %437 : vector<1x64xi32>
    %439 = arith.addi %438, %395 : vector<1x64xi32>
    %440 = vector.broadcast %439 : vector<1x64xi32> to vector<64x64xi32>
    %441 = arith.cmpi eq, %14, %440 : vector<64x64xi32>
    %442 = arith.extui %441 : vector<64x64xi1> to vector<64x64xi32>
    %443 = arith.sitofp %442 : vector<64x64xi32> to vector<64x64xf32>
    %444 = arith.mulf %423, %436 : vector<1x64xf32>
    %445 = vector.broadcast %444 : vector<1x64xf32> to vector<64x64xf32>
    %446 = arith.mulf %443, %445 : vector<64x64xf32>
    %447 = arith.addf %422, %446 : vector<64x64xf32>
    %448 = arith.mulf %389, %390 : vector<1x64xf32>
    %c0_i32_83 = arith.constant 0 : i32
    %449 = vector.broadcast %c0_i32_83 : i32 to vector<1x64xi32>
    %450 = arith.cmpi sge, %393, %449 : vector<1x64xi32>
    %c7_i32_84 = arith.constant 7 : i32
    %451 = vector.broadcast %c7_i32_84 : i32 to vector<1x64xi32>
    %452 = arith.cmpi sle, %393, %451 : vector<1x64xi32>
    %453 = arith.andi %450, %452 : vector<1x64xi1>
    %c0_i32_85 = arith.constant 0 : i32
    %454 = vector.broadcast %c0_i32_85 : i32 to vector<1x64xi32>
    %455 = arith.cmpi sge, %398, %454 : vector<1x64xi32>
    %456 = arith.andi %453, %455 : vector<1x64xi1>
    %c7_i32_86 = arith.constant 7 : i32
    %457 = vector.broadcast %c7_i32_86 : i32 to vector<1x64xi32>
    %458 = arith.cmpi sle, %398, %457 : vector<1x64xi32>
    %459 = arith.andi %456, %458 : vector<1x64xi1>
    %460 = arith.extui %459 : vector<1x64xi1> to vector<1x64xi32>
    %461 = arith.sitofp %460 : vector<1x64xi32> to vector<1x64xf32>
    %c8_i32_87 = arith.constant 8 : i32
    %462 = vector.broadcast %c8_i32_87 : i32 to vector<1x64xi32>
    %463 = arith.muli %398, %462 : vector<1x64xi32>
    %464 = arith.addi %463, %393 : vector<1x64xi32>
    %465 = vector.broadcast %464 : vector<1x64xi32> to vector<64x64xi32>
    %466 = arith.cmpi eq, %14, %465 : vector<64x64xi32>
    %467 = arith.extui %466 : vector<64x64xi1> to vector<64x64xi32>
    %468 = arith.sitofp %467 : vector<64x64xi32> to vector<64x64xf32>
    %469 = arith.mulf %448, %461 : vector<1x64xf32>
    %470 = vector.broadcast %469 : vector<1x64xf32> to vector<64x64xf32>
    %471 = arith.mulf %468, %470 : vector<64x64xf32>
    %472 = arith.addf %447, %471 : vector<64x64xf32>
    %473 = arith.mulf %387, %390 : vector<1x64xf32>
    %c0_i32_88 = arith.constant 0 : i32
    %474 = vector.broadcast %c0_i32_88 : i32 to vector<1x64xi32>
    %475 = arith.cmpi sge, %395, %474 : vector<1x64xi32>
    %c7_i32_89 = arith.constant 7 : i32
    %476 = vector.broadcast %c7_i32_89 : i32 to vector<1x64xi32>
    %477 = arith.cmpi sle, %395, %476 : vector<1x64xi32>
    %478 = arith.andi %475, %477 : vector<1x64xi1>
    %c0_i32_90 = arith.constant 0 : i32
    %479 = vector.broadcast %c0_i32_90 : i32 to vector<1x64xi32>
    %480 = arith.cmpi sge, %398, %479 : vector<1x64xi32>
    %481 = arith.andi %478, %480 : vector<1x64xi1>
    %c7_i32_91 = arith.constant 7 : i32
    %482 = vector.broadcast %c7_i32_91 : i32 to vector<1x64xi32>
    %483 = arith.cmpi sle, %398, %482 : vector<1x64xi32>
    %484 = arith.andi %481, %483 : vector<1x64xi1>
    %485 = arith.extui %484 : vector<1x64xi1> to vector<1x64xi32>
    %486 = arith.sitofp %485 : vector<1x64xi32> to vector<1x64xf32>
    %c8_i32_92 = arith.constant 8 : i32
    %487 = vector.broadcast %c8_i32_92 : i32 to vector<1x64xi32>
    %488 = arith.muli %398, %487 : vector<1x64xi32>
    %489 = arith.addi %488, %395 : vector<1x64xi32>
    %490 = vector.broadcast %489 : vector<1x64xi32> to vector<64x64xi32>
    %491 = arith.cmpi eq, %14, %490 : vector<64x64xi32>
    %492 = arith.extui %491 : vector<64x64xi1> to vector<64x64xi32>
    %493 = arith.sitofp %492 : vector<64x64xi32> to vector<64x64xf32>
    %494 = arith.mulf %473, %486 : vector<1x64xf32>
    %495 = vector.broadcast %494 : vector<1x64xf32> to vector<64x64xf32>
    %496 = arith.mulf %493, %495 : vector<64x64xf32>
    %497 = arith.addf %472, %496 : vector<64x64xf32>
    %cst_93 = arith.constant dense<0.000000e+00> : vector<3x64xf32>
    %498 = tpu.matmul %301, %497, %cst_93 {dimension_numbers = #tpu.dot_dimension_numbers<[1], [0], [0], [1], [0, 0, 1, 1], [], []>} : vector<3x64xf32>, vector<64x64xf32>, vector<3x64xf32> -> vector<3x64xf32>
    %499 = vector.extract_strided_slice %300 {offsets = [0, 0], sizes = [1, 64], strides = [1, 1]} : vector<3x64xf32> to vector<1x64xf32>
    %500 = vector.extract_strided_slice %498 {offsets = [0, 0], sizes = [1, 64], strides = [1, 1]} : vector<3x64xf32> to vector<1x64xf32>
    %501 = vector.extract_strided_slice %300 {offsets = [0, 0], sizes = [1, 64], strides = [1, 1]} : vector<3x64xf32> to vector<1x64xf32>
    %502 = vector.extract_strided_slice %498 {offsets = [0, 0], sizes = [1, 64], strides = [1, 1]} : vector<3x64xf32> to vector<1x64xf32>
    %503 = arith.subf %501, %502 : vector<1x64xf32>
    %504 = math.absf %503 : vector<1x64xf32>
    %505 = vector.extract_strided_slice %300 {offsets = [1, 0], sizes = [1, 64], strides = [1, 1]} : vector<3x64xf32> to vector<1x64xf32>
    %506 = arith.addf %499, %505 : vector<1x64xf32>
    %507 = vector.extract_strided_slice %498 {offsets = [1, 0], sizes = [1, 64], strides = [1, 1]} : vector<3x64xf32> to vector<1x64xf32>
    %508 = arith.addf %500, %507 : vector<1x64xf32>
    %509 = vector.extract_strided_slice %300 {offsets = [1, 0], sizes = [1, 64], strides = [1, 1]} : vector<3x64xf32> to vector<1x64xf32>
    %510 = vector.extract_strided_slice %498 {offsets = [1, 0], sizes = [1, 64], strides = [1, 1]} : vector<3x64xf32> to vector<1x64xf32>
    %511 = arith.subf %509, %510 : vector<1x64xf32>
    %512 = math.absf %511 : vector<1x64xf32>
    %513 = arith.addf %504, %512 : vector<1x64xf32>
    %514 = vector.extract_strided_slice %300 {offsets = [2, 0], sizes = [1, 64], strides = [1, 1]} : vector<3x64xf32> to vector<1x64xf32>
    %515 = arith.addf %506, %514 : vector<1x64xf32>
    %516 = vector.extract_strided_slice %498 {offsets = [2, 0], sizes = [1, 64], strides = [1, 1]} : vector<3x64xf32> to vector<1x64xf32>
    %517 = arith.addf %508, %516 : vector<1x64xf32>
    %518 = vector.extract_strided_slice %300 {offsets = [2, 0], sizes = [1, 64], strides = [1, 1]} : vector<3x64xf32> to vector<1x64xf32>
    %519 = vector.extract_strided_slice %498 {offsets = [2, 0], sizes = [1, 64], strides = [1, 1]} : vector<3x64xf32> to vector<1x64xf32>
    %520 = arith.subf %518, %519 : vector<1x64xf32>
    %521 = math.absf %520 : vector<1x64xf32>
    %522 = arith.addf %513, %521 : vector<1x64xf32>
    %cst_94 = arith.constant 0.000000e+00 : f32
    %523 = vector.broadcast %cst_94 : f32 to vector<1x64xf32>
    %524 = arith.cmpf one, %303, %523 : vector<1x64xf32>
    %cst_95 = arith.constant 0.000000e+00 : f32
    %525 = vector.broadcast %cst_95 : f32 to vector<1x64xf32>
    %526 = arith.cmpf ogt, %515, %525 : vector<1x64xf32>
    %527 = arith.andi %524, %526 : vector<1x64xi1>
    %cst_96 = arith.constant 0.000000e+00 : f32
    %528 = vector.broadcast %cst_96 : f32 to vector<1x64xf32>
    %529 = arith.cmpf ogt, %517, %528 : vector<1x64xf32>
    %530 = arith.andi %527, %529 : vector<1x64xi1>
    %531 = arith.extui %530 : vector<1x64xi1> to vector<1x64xi32>
    %532 = arith.sitofp %531 : vector<1x64xi32> to vector<1x64xf32>
    %533 = arith.mulf %522, %532 : vector<1x64xf32>
    %534 = vector.shape_cast %533 : vector<1x64xf32> to vector<1x1x64xf32>
    %cst_97 = arith.constant dense<0.000000e+00> : vector<1xf32>
    %535 = vector.multi_reduction <add>, %534, %cst_97 [1, 2] : vector<1x1x64xf32> to vector<1xf32>
    %536 = vector.shape_cast %535 : vector<1xf32> to vector<1x1x1xf32>
    %537 = vector.extract %536[0, 0, 0] : f32 from vector<1x1x1xf32>
    %538 = arith.addf %271, %537 : f32
    %539 = vector.shape_cast %532 : vector<1x64xf32> to vector<1x1x64xf32>
    %cst_98 = arith.constant dense<0.000000e+00> : vector<1xf32>
    %540 = vector.multi_reduction <add>, %539, %cst_98 [1, 2] : vector<1x1x64xf32> to vector<1xf32>
    %541 = vector.shape_cast %540 : vector<1xf32> to vector<1x1x1xf32>
    %542 = vector.extract %541[0, 0, 0] : f32 from vector<1x1x1xf32>
    %543 = arith.addf %276, %542 : f32
    %544 = vector.shape_cast %300 : vector<3x64xf32> to vector<1x3x64xf32>
    %cst_99 = arith.constant dense<0xFF800000> : vector<1xf32>
    %545 = vector.multi_reduction <maximumf>, %544, %cst_99 [1, 2] : vector<1x3x64xf32> to vector<1xf32>
    %546 = vector.shape_cast %545 : vector<1xf32> to vector<1x1x1xf32>
    %547 = vector.extract %546[0, 0, 0] : f32 from vector<1x1x1xf32>
    %548 = arith.maximumf %281, %547 : f32
    %c0_100 = arith.constant 0 : index
    %549 = memref.load %arg4[%c0_100] : memref<3xf32, #tpu.memory_space<smem>>
    memref.store %538, %arg4[%c0_100] : memref<3xf32, #tpu.memory_space<smem>>
    %c1_101 = arith.constant 1 : index
    %550 = memref.load %arg4[%c1_101] : memref<3xf32, #tpu.memory_space<smem>>
    memref.store %543, %arg4[%c1_101] : memref<3xf32, #tpu.memory_space<smem>>
    %c2_102 = arith.constant 2 : index
    %551 = memref.load %arg4[%c2_102] : memref<3xf32, #tpu.memory_space<smem>>
    memref.store %548, %arg4[%c2_102] : memref<3xf32, #tpu.memory_space<smem>>
    return
  }
}

module attributes {stable_mosaic.version = 11 : i64} {
  func.func @kernel(%arg0: memref<36xf32, #tpu.memory_space<smem>>, %arg1: memref<16x64xf32, #tpu.memory_space<vmem>>, %arg2: memref<64x16xf32, #tpu.memory_space<vmem>>, %arg3: memref<16x16xf32, #tpu.memory_space<vmem>>, %arg4: memref<3xf32, #tpu.memory_space<smem>>) attributes {dimension_semantics = [], scalar_prefetch = 0 : i64, scratch_operands = 0 : i64, tpu.core_type = #tpu.core_type<tc>} {
    %c0 = arith.constant 0 : index
    %c0_0 = arith.constant 0 : index
    %0 = vector.load %arg1[%c0, %c0_0] : memref<16x64xf32, #tpu.memory_space<vmem>>, vector<16x64xf32>
    %c0_1 = arith.constant 0 : index
    %c0_2 = arith.constant 0 : index
    %1 = vector.load %arg2[%c0_1, %c0_2] : memref<64x16xf32, #tpu.memory_space<vmem>>, vector<64x16xf32>
    %cst = arith.constant dense<0.000000e+00> : vector<16x16xf32>
    %2 = tpu.matmul %0, %1, %cst {dimension_numbers = #tpu.dot_dimension_numbers<[1], [0], [0], [1], [0, 0, 1, 1], [], []>} : vector<16x64xf32>, vector<64x16xf32>, vector<16x16xf32> -> vector<16x16xf32>
    %c0_3 = arith.constant 0 : index
    %c0_4 = arith.constant 0 : index
    %3 = vector.load %arg3[%c0_3, %c0_4] : memref<16x16xf32, #tpu.memory_space<vmem>>, vector<16x16xf32>
    tpu.vector_store %arg3[%c0_3, %c0_4], %2 {strides = array<i32>} : memref<16x16xf32, #tpu.memory_space<vmem>>, vector<16x16xf32>,
    %4 = tpu.iota {dimensions = array<i32: 1>} : vector<1x16xi32>
    %5 = arith.sitofp %4 : vector<1x16xi32> to vector<1x16xf32>
    %cst_5 = arith.constant 5.000000e-01 : f32
    %6 = vector.broadcast %cst_5 : f32 to vector<1x16xf32>
    %7 = arith.addf %5, %6 : vector<1x16xf32>
    %cst_6 = arith.constant 2.500000e-01 : f32
    %8 = vector.broadcast %cst_6 : f32 to vector<1x16xf32>
    %9 = arith.mulf %7, %8 : vector<1x16xf32>
    %10 = math.floor %9 : vector<1x16xf32>
    %cst_7 = arith.constant 4.000000e+00 : f32
    %11 = vector.broadcast %cst_7 : f32 to vector<1x16xf32>
    %12 = arith.mulf %10, %11 : vector<1x16xf32>
    %13 = arith.subf %5, %12 : vector<1x16xf32>
    %14 = tpu.iota {dimensions = array<i32: 0>} : vector<16x16xi32>
    %c0_8 = arith.constant 0 : index
    %15 = memref.load %arg0[%c0_8] : memref<36xf32, #tpu.memory_space<smem>>
    %c1 = arith.constant 1 : index
    %16 = memref.load %arg0[%c1] : memref<36xf32, #tpu.memory_space<smem>>
    %c2 = arith.constant 2 : index
    %17 = memref.load %arg0[%c2] : memref<36xf32, #tpu.memory_space<smem>>
    %c3 = arith.constant 3 : index
    %18 = memref.load %arg0[%c3] : memref<36xf32, #tpu.memory_space<smem>>
    %c4 = arith.constant 4 : index
    %19 = memref.load %arg0[%c4] : memref<36xf32, #tpu.memory_space<smem>>
    %c5 = arith.constant 5 : index
    %20 = memref.load %arg0[%c5] : memref<36xf32, #tpu.memory_space<smem>>
    %c6 = arith.constant 6 : index
    %21 = memref.load %arg0[%c6] : memref<36xf32, #tpu.memory_space<smem>>
    %c7 = arith.constant 7 : index
    %22 = memref.load %arg0[%c7] : memref<36xf32, #tpu.memory_space<smem>>
    %c8 = arith.constant 8 : index
    %23 = memref.load %arg0[%c8] : memref<36xf32, #tpu.memory_space<smem>>
    %c9 = arith.constant 9 : index
    %24 = memref.load %arg0[%c9] : memref<36xf32, #tpu.memory_space<smem>>
    %c10 = arith.constant 10 : index
    %25 = memref.load %arg0[%c10] : memref<36xf32, #tpu.memory_space<smem>>
    %c11 = arith.constant 11 : index
    %26 = memref.load %arg0[%c11] : memref<36xf32, #tpu.memory_space<smem>>
    %c12 = arith.constant 12 : index
    %27 = memref.load %arg0[%c12] : memref<36xf32, #tpu.memory_space<smem>>
    %c13 = arith.constant 13 : index
    %28 = memref.load %arg0[%c13] : memref<36xf32, #tpu.memory_space<smem>>
    %c14 = arith.constant 14 : index
    %29 = memref.load %arg0[%c14] : memref<36xf32, #tpu.memory_space<smem>>
    %c15 = arith.constant 15 : index
    %30 = memref.load %arg0[%c15] : memref<36xf32, #tpu.memory_space<smem>>
    %c16 = arith.constant 16 : index
    %31 = memref.load %arg0[%c16] : memref<36xf32, #tpu.memory_space<smem>>
    %c17 = arith.constant 17 : index
    %32 = memref.load %arg0[%c17] : memref<36xf32, #tpu.memory_space<smem>>
    %33 = vector.extract_strided_slice %2 {offsets = [0, 0], sizes = [3, 16], strides = [1, 1]} : vector<16x16xf32> to vector<3x16xf32>
    %34 = vector.extract_strided_slice %2 {offsets = [3, 0], sizes = [3, 16], strides = [1, 1]} : vector<16x16xf32> to vector<3x16xf32>
    %35 = vector.extract_strided_slice %2 {offsets = [6, 0], sizes = [1, 16], strides = [1, 1]} : vector<16x16xf32> to vector<1x16xf32>
    %36 = vector.extract_strided_slice %2 {offsets = [7, 0], sizes = [1, 16], strides = [1, 1]} : vector<16x16xf32> to vector<1x16xf32>
    %37 = vector.broadcast %17 : f32 to vector<1x16xf32>
    %38 = arith.subf %13, %37 : vector<1x16xf32>
    %39 = arith.mulf %35, %38 : vector<1x16xf32>
    %40 = vector.broadcast %19 : f32 to vector<1x16xf32>
    %41 = arith.mulf %39, %40 : vector<1x16xf32>
    %42 = vector.broadcast %18 : f32 to vector<1x16xf32>
    %43 = arith.subf %10, %42 : vector<1x16xf32>
    %44 = arith.mulf %35, %43 : vector<1x16xf32>
    %45 = vector.broadcast %20 : f32 to vector<1x16xf32>
    %46 = arith.mulf %44, %45 : vector<1x16xf32>
    %47 = vector.broadcast %21 : f32 to vector<1x16xf32>
    %48 = arith.mulf %47, %41 : vector<1x16xf32>
    %49 = vector.broadcast %22 : f32 to vector<1x16xf32>
    %50 = arith.mulf %49, %46 : vector<1x16xf32>
    %51 = arith.addf %48, %50 : vector<1x16xf32>
    %52 = vector.broadcast %23 : f32 to vector<1x16xf32>
    %53 = arith.mulf %52, %35 : vector<1x16xf32>
    %54 = arith.addf %51, %53 : vector<1x16xf32>
    %55 = vector.broadcast %30 : f32 to vector<1x16xf32>
    %56 = arith.addf %54, %55 : vector<1x16xf32>
    %57 = vector.broadcast %24 : f32 to vector<1x16xf32>
    %58 = arith.mulf %57, %41 : vector<1x16xf32>
    %59 = vector.broadcast %25 : f32 to vector<1x16xf32>
    %60 = arith.mulf %59, %46 : vector<1x16xf32>
    %61 = arith.addf %58, %60 : vector<1x16xf32>
    %62 = vector.broadcast %26 : f32 to vector<1x16xf32>
    %63 = arith.mulf %62, %35 : vector<1x16xf32>
    %64 = arith.addf %61, %63 : vector<1x16xf32>
    %65 = vector.broadcast %31 : f32 to vector<1x16xf32>
    %66 = arith.addf %64, %65 : vector<1x16xf32>
    %67 = vector.broadcast %27 : f32 to vector<1x16xf32>
    %68 = arith.mulf %67, %41 : vector<1x16xf32>
    %69 = vector.broadcast %28 : f32 to vector<1x16xf32>
    %70 = arith.mulf %69, %46 : vector<1x16xf32>
    %71 = arith.addf %68, %70 : vector<1x16xf32>
    %72 = vector.broadcast %29 : f32 to vector<1x16xf32>
    %73 = arith.mulf %72, %35 : vector<1x16xf32>
    %74 = arith.addf %71, %73 : vector<1x16xf32>
    %75 = vector.broadcast %32 : f32 to vector<1x16xf32>
    %76 = arith.addf %74, %75 : vector<1x16xf32>
    %cst_9 = arith.constant 1.000000e-03 : f32
    %77 = vector.broadcast %cst_9 : f32 to vector<1x16xf32>
    %78 = arith.maximumf %76, %77 : vector<1x16xf32>
    %79 = tpu.reciprocal %78 {approx = true} : vector<1x16xf32> -> vector<1x16xf32>
    %80 = vector.broadcast %15 : f32 to vector<1x16xf32>
    %81 = arith.mulf %80, %56 : vector<1x16xf32>
    %82 = arith.mulf %81, %79 : vector<1x16xf32>
    %83 = vector.broadcast %17 : f32 to vector<1x16xf32>
    %84 = arith.addf %82, %83 : vector<1x16xf32>
    %85 = vector.broadcast %16 : f32 to vector<1x16xf32>
    %86 = arith.mulf %85, %66 : vector<1x16xf32>
    %87 = arith.mulf %86, %79 : vector<1x16xf32>
    %88 = vector.broadcast %18 : f32 to vector<1x16xf32>
    %89 = arith.addf %87, %88 : vector<1x16xf32>
    %cst_10 = arith.constant 2.000000e+00 : f32
    %90 = vector.broadcast %cst_10 : f32 to vector<1x16xf32>
    %91 = arith.mulf %90, %84 : vector<1x16xf32>
    %cst_11 = arith.constant 0.333333343 : f32
    %92 = vector.broadcast %cst_11 : f32 to vector<1x16xf32>
    %93 = arith.mulf %91, %92 : vector<1x16xf32>
    %cst_12 = arith.constant 1.000000e+00 : f32
    %94 = vector.broadcast %cst_12 : f32 to vector<1x16xf32>
    %95 = arith.subf %93, %94 : vector<1x16xf32>
    %cst_13 = arith.constant 2.000000e+00 : f32
    %96 = vector.broadcast %cst_13 : f32 to vector<1x16xf32>
    %97 = arith.mulf %96, %89 : vector<1x16xf32>
    %cst_14 = arith.constant 0.333333343 : f32
    %98 = vector.broadcast %cst_14 : f32 to vector<1x16xf32>
    %99 = arith.mulf %97, %98 : vector<1x16xf32>
    %cst_15 = arith.constant 1.000000e+00 : f32
    %100 = vector.broadcast %cst_15 : f32 to vector<1x16xf32>
    %101 = arith.subf %99, %100 : vector<1x16xf32>
    %cst_16 = arith.constant 1.000000e+00 : f32
    %102 = vector.broadcast %cst_16 : f32 to vector<1x16xf32>
    %103 = arith.addf %95, %102 : vector<1x16xf32>
    %cst_17 = arith.constant 1.500000e+00 : f32
    %104 = vector.broadcast %cst_17 : f32 to vector<1x16xf32>
    %105 = arith.mulf %103, %104 : vector<1x16xf32>
    %cst_18 = arith.constant 1.000000e+00 : f32
    %106 = vector.broadcast %cst_18 : f32 to vector<1x16xf32>
    %107 = arith.addf %101, %106 : vector<1x16xf32>
    %cst_19 = arith.constant 1.500000e+00 : f32
    %108 = vector.broadcast %cst_19 : f32 to vector<1x16xf32>
    %109 = arith.mulf %107, %108 : vector<1x16xf32>
    %cst_20 = arith.constant -2.000000e+00 : f32
    %cst_21 = arith.constant 5.000000e+00 : f32
    %110 = vector.broadcast %cst_20 : f32 to vector<1x16xf32>
    %111 = arith.maximumf %110, %105 : vector<1x16xf32>
    %112 = vector.broadcast %cst_21 : f32 to vector<1x16xf32>
    %113 = arith.minimumf %112, %111 : vector<1x16xf32>
    %cst_22 = arith.constant -2.000000e+00 : f32
    %cst_23 = arith.constant 5.000000e+00 : f32
    %114 = vector.broadcast %cst_22 : f32 to vector<1x16xf32>
    %115 = arith.maximumf %114, %109 : vector<1x16xf32>
    %116 = vector.broadcast %cst_23 : f32 to vector<1x16xf32>
    %117 = arith.minimumf %116, %115 : vector<1x16xf32>
    %118 = math.floor %113 : vector<1x16xf32>
    %119 = math.floor %117 : vector<1x16xf32>
    %120 = arith.subf %113, %118 : vector<1x16xf32>
    %cst_24 = arith.constant 1.000000e+00 : f32
    %121 = vector.broadcast %cst_24 : f32 to vector<1x16xf32>
    %122 = arith.subf %121, %120 : vector<1x16xf32>
    %123 = arith.subf %117, %119 : vector<1x16xf32>
    %cst_25 = arith.constant 1.000000e+00 : f32
    %124 = vector.broadcast %cst_25 : f32 to vector<1x16xf32>
    %125 = arith.subf %124, %123 : vector<1x16xf32>
    %126 = arith.fptosi %118 : vector<1x16xf32> to vector<1x16xi32>
    %c1_i32 = arith.constant 1 : i32
    %127 = vector.broadcast %c1_i32 : i32 to vector<1x16xi32>
    %128 = arith.addi %126, %127 : vector<1x16xi32>
    %129 = arith.fptosi %119 : vector<1x16xf32> to vector<1x16xi32>
    %c1_i32_26 = arith.constant 1 : i32
    %130 = vector.broadcast %c1_i32_26 : i32 to vector<1x16xi32>
    %131 = arith.addi %129, %130 : vector<1x16xi32>
    %132 = arith.mulf %122, %125 : vector<1x16xf32>
    %c0_i32 = arith.constant 0 : i32
    %133 = vector.broadcast %c0_i32 : i32 to vector<1x16xi32>
    %134 = arith.cmpi sge, %126, %133 : vector<1x16xi32>
    %c3_i32 = arith.constant 3 : i32
    %135 = vector.broadcast %c3_i32 : i32 to vector<1x16xi32>
    %136 = arith.cmpi sle, %126, %135 : vector<1x16xi32>
    %137 = arith.andi %134, %136 : vector<1x16xi1>
    %c0_i32_27 = arith.constant 0 : i32
    %138 = vector.broadcast %c0_i32_27 : i32 to vector<1x16xi32>
    %139 = arith.cmpi sge, %129, %138 : vector<1x16xi32>
    %140 = arith.andi %137, %139 : vector<1x16xi1>
    %c3_i32_28 = arith.constant 3 : i32
    %141 = vector.broadcast %c3_i32_28 : i32 to vector<1x16xi32>
    %142 = arith.cmpi sle, %129, %141 : vector<1x16xi32>
    %143 = arith.andi %140, %142 : vector<1x16xi1>
    %144 = arith.extui %143 : vector<1x16xi1> to vector<1x16xi32>
    %145 = arith.sitofp %144 : vector<1x16xi32> to vector<1x16xf32>
    %c4_i32 = arith.constant 4 : i32
    %146 = vector.broadcast %c4_i32 : i32 to vector<1x16xi32>
    %147 = arith.muli %129, %146 : vector<1x16xi32>
    %148 = arith.addi %147, %126 : vector<1x16xi32>
    %149 = vector.broadcast %148 : vector<1x16xi32> to vector<16x16xi32>
    %150 = arith.cmpi eq, %14, %149 : vector<16x16xi32>
    %151 = arith.extui %150 : vector<16x16xi1> to vector<16x16xi32>
    %152 = arith.sitofp %151 : vector<16x16xi32> to vector<16x16xf32>
    %153 = arith.mulf %132, %145 : vector<1x16xf32>
    %154 = vector.broadcast %153 : vector<1x16xf32> to vector<16x16xf32>
    %155 = arith.mulf %152, %154 : vector<16x16xf32>
    %156 = arith.mulf %120, %125 : vector<1x16xf32>
    %c0_i32_29 = arith.constant 0 : i32
    %157 = vector.broadcast %c0_i32_29 : i32 to vector<1x16xi32>
    %158 = arith.cmpi sge, %128, %157 : vector<1x16xi32>
    %c3_i32_30 = arith.constant 3 : i32
    %159 = vector.broadcast %c3_i32_30 : i32 to vector<1x16xi32>
    %160 = arith.cmpi sle, %128, %159 : vector<1x16xi32>
    %161 = arith.andi %158, %160 : vector<1x16xi1>
    %c0_i32_31 = arith.constant 0 : i32
    %162 = vector.broadcast %c0_i32_31 : i32 to vector<1x16xi32>
    %163 = arith.cmpi sge, %129, %162 : vector<1x16xi32>
    %164 = arith.andi %161, %163 : vector<1x16xi1>
    %c3_i32_32 = arith.constant 3 : i32
    %165 = vector.broadcast %c3_i32_32 : i32 to vector<1x16xi32>
    %166 = arith.cmpi sle, %129, %165 : vector<1x16xi32>
    %167 = arith.andi %164, %166 : vector<1x16xi1>
    %168 = arith.extui %167 : vector<1x16xi1> to vector<1x16xi32>
    %169 = arith.sitofp %168 : vector<1x16xi32> to vector<1x16xf32>
    %c4_i32_33 = arith.constant 4 : i32
    %170 = vector.broadcast %c4_i32_33 : i32 to vector<1x16xi32>
    %171 = arith.muli %129, %170 : vector<1x16xi32>
    %172 = arith.addi %171, %128 : vector<1x16xi32>
    %173 = vector.broadcast %172 : vector<1x16xi32> to vector<16x16xi32>
    %174 = arith.cmpi eq, %14, %173 : vector<16x16xi32>
    %175 = arith.extui %174 : vector<16x16xi1> to vector<16x16xi32>
    %176 = arith.sitofp %175 : vector<16x16xi32> to vector<16x16xf32>
    %177 = arith.mulf %156, %169 : vector<1x16xf32>
    %178 = vector.broadcast %177 : vector<1x16xf32> to vector<16x16xf32>
    %179 = arith.mulf %176, %178 : vector<16x16xf32>
    %180 = arith.addf %155, %179 : vector<16x16xf32>
    %181 = arith.mulf %122, %123 : vector<1x16xf32>
    %c0_i32_34 = arith.constant 0 : i32
    %182 = vector.broadcast %c0_i32_34 : i32 to vector<1x16xi32>
    %183 = arith.cmpi sge, %126, %182 : vector<1x16xi32>
    %c3_i32_35 = arith.constant 3 : i32
    %184 = vector.broadcast %c3_i32_35 : i32 to vector<1x16xi32>
    %185 = arith.cmpi sle, %126, %184 : vector<1x16xi32>
    %186 = arith.andi %183, %185 : vector<1x16xi1>
    %c0_i32_36 = arith.constant 0 : i32
    %187 = vector.broadcast %c0_i32_36 : i32 to vector<1x16xi32>
    %188 = arith.cmpi sge, %131, %187 : vector<1x16xi32>
    %189 = arith.andi %186, %188 : vector<1x16xi1>
    %c3_i32_37 = arith.constant 3 : i32
    %190 = vector.broadcast %c3_i32_37 : i32 to vector<1x16xi32>
    %191 = arith.cmpi sle, %131, %190 : vector<1x16xi32>
    %192 = arith.andi %189, %191 : vector<1x16xi1>
    %193 = arith.extui %192 : vector<1x16xi1> to vector<1x16xi32>
    %194 = arith.sitofp %193 : vector<1x16xi32> to vector<1x16xf32>
    %c4_i32_38 = arith.constant 4 : i32
    %195 = vector.broadcast %c4_i32_38 : i32 to vector<1x16xi32>
    %196 = arith.muli %131, %195 : vector<1x16xi32>
    %197 = arith.addi %196, %126 : vector<1x16xi32>
    %198 = vector.broadcast %197 : vector<1x16xi32> to vector<16x16xi32>
    %199 = arith.cmpi eq, %14, %198 : vector<16x16xi32>
    %200 = arith.extui %199 : vector<16x16xi1> to vector<16x16xi32>
    %201 = arith.sitofp %200 : vector<16x16xi32> to vector<16x16xf32>
    %202 = arith.mulf %181, %194 : vector<1x16xf32>
    %203 = vector.broadcast %202 : vector<1x16xf32> to vector<16x16xf32>
    %204 = arith.mulf %201, %203 : vector<16x16xf32>
    %205 = arith.addf %180, %204 : vector<16x16xf32>
    %206 = arith.mulf %120, %123 : vector<1x16xf32>
    %c0_i32_39 = arith.constant 0 : i32
    %207 = vector.broadcast %c0_i32_39 : i32 to vector<1x16xi32>
    %208 = arith.cmpi sge, %128, %207 : vector<1x16xi32>
    %c3_i32_40 = arith.constant 3 : i32
    %209 = vector.broadcast %c3_i32_40 : i32 to vector<1x16xi32>
    %210 = arith.cmpi sle, %128, %209 : vector<1x16xi32>
    %211 = arith.andi %208, %210 : vector<1x16xi1>
    %c0_i32_41 = arith.constant 0 : i32
    %212 = vector.broadcast %c0_i32_41 : i32 to vector<1x16xi32>
    %213 = arith.cmpi sge, %131, %212 : vector<1x16xi32>
    %214 = arith.andi %211, %213 : vector<1x16xi1>
    %c3_i32_42 = arith.constant 3 : i32
    %215 = vector.broadcast %c3_i32_42 : i32 to vector<1x16xi32>
    %216 = arith.cmpi sle, %131, %215 : vector<1x16xi32>
    %217 = arith.andi %214, %216 : vector<1x16xi1>
    %218 = arith.extui %217 : vector<1x16xi1> to vector<1x16xi32>
    %219 = arith.sitofp %218 : vector<1x16xi32> to vector<1x16xf32>
    %c4_i32_43 = arith.constant 4 : i32
    %220 = vector.broadcast %c4_i32_43 : i32 to vector<1x16xi32>
    %221 = arith.muli %131, %220 : vector<1x16xi32>
    %222 = arith.addi %221, %128 : vector<1x16xi32>
    %223 = vector.broadcast %222 : vector<1x16xi32> to vector<16x16xi32>
    %224 = arith.cmpi eq, %14, %223 : vector<16x16xi32>
    %225 = arith.extui %224 : vector<16x16xi1> to vector<16x16xi32>
    %226 = arith.sitofp %225 : vector<16x16xi32> to vector<16x16xf32>
    %227 = arith.mulf %206, %219 : vector<1x16xf32>
    %228 = vector.broadcast %227 : vector<1x16xf32> to vector<16x16xf32>
    %229 = arith.mulf %226, %228 : vector<16x16xf32>
    %230 = arith.addf %205, %229 : vector<16x16xf32>
    %cst_44 = arith.constant dense<0.000000e+00> : vector<3x16xf32>
    %231 = tpu.matmul %34, %230, %cst_44 {dimension_numbers = #tpu.dot_dimension_numbers<[1], [0], [0], [1], [0, 0, 1, 1], [], []>} : vector<3x16xf32>, vector<16x16xf32>, vector<3x16xf32> -> vector<3x16xf32>
    %232 = vector.extract_strided_slice %33 {offsets = [0, 0], sizes = [1, 16], strides = [1, 1]} : vector<3x16xf32> to vector<1x16xf32>
    %233 = vector.extract_strided_slice %231 {offsets = [0, 0], sizes = [1, 16], strides = [1, 1]} : vector<3x16xf32> to vector<1x16xf32>
    %234 = vector.extract_strided_slice %33 {offsets = [0, 0], sizes = [1, 16], strides = [1, 1]} : vector<3x16xf32> to vector<1x16xf32>
    %235 = vector.extract_strided_slice %231 {offsets = [0, 0], sizes = [1, 16], strides = [1, 1]} : vector<3x16xf32> to vector<1x16xf32>
    %236 = arith.subf %234, %235 : vector<1x16xf32>
    %237 = math.absf %236 : vector<1x16xf32>
    %238 = vector.extract_strided_slice %33 {offsets = [1, 0], sizes = [1, 16], strides = [1, 1]} : vector<3x16xf32> to vector<1x16xf32>
    %239 = arith.addf %232, %238 : vector<1x16xf32>
    %240 = vector.extract_strided_slice %231 {offsets = [1, 0], sizes = [1, 16], strides = [1, 1]} : vector<3x16xf32> to vector<1x16xf32>
    %241 = arith.addf %233, %240 : vector<1x16xf32>
    %242 = vector.extract_strided_slice %33 {offsets = [1, 0], sizes = [1, 16], strides = [1, 1]} : vector<3x16xf32> to vector<1x16xf32>
    %243 = vector.extract_strided_slice %231 {offsets = [1, 0], sizes = [1, 16], strides = [1, 1]} : vector<3x16xf32> to vector<1x16xf32>
    %244 = arith.subf %242, %243 : vector<1x16xf32>
    %245 = math.absf %244 : vector<1x16xf32>
    %246 = arith.addf %237, %245 : vector<1x16xf32>
    %247 = vector.extract_strided_slice %33 {offsets = [2, 0], sizes = [1, 16], strides = [1, 1]} : vector<3x16xf32> to vector<1x16xf32>
    %248 = arith.addf %239, %247 : vector<1x16xf32>
    %249 = vector.extract_strided_slice %231 {offsets = [2, 0], sizes = [1, 16], strides = [1, 1]} : vector<3x16xf32> to vector<1x16xf32>
    %250 = arith.addf %241, %249 : vector<1x16xf32>
    %251 = vector.extract_strided_slice %33 {offsets = [2, 0], sizes = [1, 16], strides = [1, 1]} : vector<3x16xf32> to vector<1x16xf32>
    %252 = vector.extract_strided_slice %231 {offsets = [2, 0], sizes = [1, 16], strides = [1, 1]} : vector<3x16xf32> to vector<1x16xf32>
    %253 = arith.subf %251, %252 : vector<1x16xf32>
    %254 = math.absf %253 : vector<1x16xf32>
    %255 = arith.addf %246, %254 : vector<1x16xf32>
    %cst_45 = arith.constant 0.000000e+00 : f32
    %256 = vector.broadcast %cst_45 : f32 to vector<1x16xf32>
    %257 = arith.cmpf one, %36, %256 : vector<1x16xf32>
    %cst_46 = arith.constant 0.000000e+00 : f32
    %258 = vector.broadcast %cst_46 : f32 to vector<1x16xf32>
    %259 = arith.cmpf ogt, %248, %258 : vector<1x16xf32>
    %260 = arith.andi %257, %259 : vector<1x16xi1>
    %cst_47 = arith.constant 0.000000e+00 : f32
    %261 = vector.broadcast %cst_47 : f32 to vector<1x16xf32>
    %262 = arith.cmpf ogt, %250, %261 : vector<1x16xf32>
    %263 = arith.andi %260, %262 : vector<1x16xi1>
    %264 = arith.extui %263 : vector<1x16xi1> to vector<1x16xi32>
    %265 = arith.sitofp %264 : vector<1x16xi32> to vector<1x16xf32>
    %266 = arith.mulf %255, %265 : vector<1x16xf32>
    %267 = vector.shape_cast %266 : vector<1x16xf32> to vector<1x1x16xf32>
    %cst_48 = arith.constant dense<0.000000e+00> : vector<1xf32>
    %268 = vector.multi_reduction <add>, %267, %cst_48 [1, 2] : vector<1x1x16xf32> to vector<1xf32>
    %269 = vector.shape_cast %268 : vector<1xf32> to vector<1x1x1xf32>
    %270 = vector.extract %269[0, 0, 0] : f32 from vector<1x1x1xf32>
    %cst_49 = arith.constant 0.000000e+00 : f32
    %271 = arith.addf %cst_49, %270 : f32
    %272 = vector.shape_cast %265 : vector<1x16xf32> to vector<1x1x16xf32>
    %cst_50 = arith.constant dense<0.000000e+00> : vector<1xf32>
    %273 = vector.multi_reduction <add>, %272, %cst_50 [1, 2] : vector<1x1x16xf32> to vector<1xf32>
    %274 = vector.shape_cast %273 : vector<1xf32> to vector<1x1x1xf32>
    %275 = vector.extract %274[0, 0, 0] : f32 from vector<1x1x1xf32>
    %cst_51 = arith.constant 0.000000e+00 : f32
    %276 = arith.addf %cst_51, %275 : f32
    %277 = vector.shape_cast %33 : vector<3x16xf32> to vector<1x3x16xf32>
    %cst_52 = arith.constant dense<0xFF800000> : vector<1xf32>
    %278 = vector.multi_reduction <maximumf>, %277, %cst_52 [1, 2] : vector<1x3x16xf32> to vector<1xf32>
    %279 = vector.shape_cast %278 : vector<1xf32> to vector<1x1x1xf32>
    %280 = vector.extract %279[0, 0, 0] : f32 from vector<1x1x1xf32>
    %cst_53 = arith.constant 0xFF800000 : f32
    %281 = arith.maximumf %cst_53, %280 : f32
    %c18 = arith.constant 18 : index
    %282 = memref.load %arg0[%c18] : memref<36xf32, #tpu.memory_space<smem>>
    %c19 = arith.constant 19 : index
    %283 = memref.load %arg0[%c19] : memref<36xf32, #tpu.memory_space<smem>>
    %c20 = arith.constant 20 : index
    %284 = memref.load %arg0[%c20] : memref<36xf32, #tpu.memory_space<smem>>
    %c21 = arith.constant 21 : index
    %285 = memref.load %arg0[%c21] : memref<36xf32, #tpu.memory_space<smem>>
    %c22 = arith.constant 22 : index
    %286 = memref.load %arg0[%c22] : memref<36xf32, #tpu.memory_space<smem>>
    %c23 = arith.constant 23 : index
    %287 = memref.load %arg0[%c23] : memref<36xf32, #tpu.memory_space<smem>>
    %c24 = arith.constant 24 : index
    %288 = memref.load %arg0[%c24] : memref<36xf32, #tpu.memory_space<smem>>
    %c25 = arith.constant 25 : index
    %289 = memref.load %arg0[%c25] : memref<36xf32, #tpu.memory_space<smem>>
    %c26 = arith.constant 26 : index
    %290 = memref.load %arg0[%c26] : memref<36xf32, #tpu.memory_space<smem>>
    %c27 = arith.constant 27 : index
    %291 = memref.load %arg0[%c27] : memref<36xf32, #tpu.memory_space<smem>>
    %c28 = arith.constant 28 : index
    %292 = memref.load %arg0[%c28] : memref<36xf32, #tpu.memory_space<smem>>
    %c29 = arith.constant 29 : index
    %293 = memref.load %arg0[%c29] : memref<36xf32, #tpu.memory_space<smem>>
    %c30 = arith.constant 30 : index
    %294 = memref.load %arg0[%c30] : memref<36xf32, #tpu.memory_space<smem>>
    %c31 = arith.constant 31 : index
    %295 = memref.load %arg0[%c31] : memref<36xf32, #tpu.memory_space<smem>>
    %c32 = arith.constant 32 : index
    %296 = memref.load %arg0[%c32] : memref<36xf32, #tpu.memory_space<smem>>
    %c33 = arith.constant 33 : index
    %297 = memref.load %arg0[%c33] : memref<36xf32, #tpu.memory_space<smem>>
    %c34 = arith.constant 34 : index
    %298 = memref.load %arg0[%c34] : memref<36xf32, #tpu.memory_space<smem>>
    %c35 = arith.constant 35 : index
    %299 = memref.load %arg0[%c35] : memref<36xf32, #tpu.memory_space<smem>>
    %300 = vector.extract_strided_slice %2 {offsets = [8, 0], sizes = [3, 16], strides = [1, 1]} : vector<16x16xf32> to vector<3x16xf32>
    %301 = vector.extract_strided_slice %2 {offsets = [11, 0], sizes = [3, 16], strides = [1, 1]} : vector<16x16xf32> to vector<3x16xf32>
    %302 = vector.extract_strided_slice %2 {offsets = [14, 0], sizes = [1, 16], strides = [1, 1]} : vector<16x16xf32> to vector<1x16xf32>
    %303 = vector.extract_strided_slice %2 {offsets = [15, 0], sizes = [1, 16], strides = [1, 1]} : vector<16x16xf32> to vector<1x16xf32>
    %304 = vector.broadcast %284 : f32 to vector<1x16xf32>
    %305 = arith.subf %13, %304 : vector<1x16xf32>
    %306 = arith.mulf %302, %305 : vector<1x16xf32>
    %307 = vector.broadcast %286 : f32 to vector<1x16xf32>
    %308 = arith.mulf %306, %307 : vector<1x16xf32>
    %309 = vector.broadcast %285 : f32 to vector<1x16xf32>
    %310 = arith.subf %10, %309 : vector<1x16xf32>
    %311 = arith.mulf %302, %310 : vector<1x16xf32>
    %312 = vector.broadcast %287 : f32 to vector<1x16xf32>
    %313 = arith.mulf %311, %312 : vector<1x16xf32>
    %314 = vector.broadcast %288 : f32 to vector<1x16xf32>
    %315 = arith.mulf %314, %308 : vector<1x16xf32>
    %316 = vector.broadcast %289 : f32 to vector<1x16xf32>
    %317 = arith.mulf %316, %313 : vector<1x16xf32>
    %318 = arith.addf %315, %317 : vector<1x16xf32>
    %319 = vector.broadcast %290 : f32 to vector<1x16xf32>
    %320 = arith.mulf %319, %302 : vector<1x16xf32>
    %321 = arith.addf %318, %320 : vector<1x16xf32>
    %322 = vector.broadcast %297 : f32 to vector<1x16xf32>
    %323 = arith.addf %321, %322 : vector<1x16xf32>
    %324 = vector.broadcast %291 : f32 to vector<1x16xf32>
    %325 = arith.mulf %324, %308 : vector<1x16xf32>
    %326 = vector.broadcast %292 : f32 to vector<1x16xf32>
    %327 = arith.mulf %326, %313 : vector<1x16xf32>
    %328 = arith.addf %325, %327 : vector<1x16xf32>
    %329 = vector.broadcast %293 : f32 to vector<1x16xf32>
    %330 = arith.mulf %329, %302 : vector<1x16xf32>
    %331 = arith.addf %328, %330 : vector<1x16xf32>
    %332 = vector.broadcast %298 : f32 to vector<1x16xf32>
    %333 = arith.addf %331, %332 : vector<1x16xf32>
    %334 = vector.broadcast %294 : f32 to vector<1x16xf32>
    %335 = arith.mulf %334, %308 : vector<1x16xf32>
    %336 = vector.broadcast %295 : f32 to vector<1x16xf32>
    %337 = arith.mulf %336, %313 : vector<1x16xf32>
    %338 = arith.addf %335, %337 : vector<1x16xf32>
    %339 = vector.broadcast %296 : f32 to vector<1x16xf32>
    %340 = arith.mulf %339, %302 : vector<1x16xf32>
    %341 = arith.addf %338, %340 : vector<1x16xf32>
    %342 = vector.broadcast %299 : f32 to vector<1x16xf32>
    %343 = arith.addf %341, %342 : vector<1x16xf32>
    %cst_54 = arith.constant 1.000000e-03 : f32
    %344 = vector.broadcast %cst_54 : f32 to vector<1x16xf32>
    %345 = arith.maximumf %343, %344 : vector<1x16xf32>
    %346 = tpu.reciprocal %345 {approx = true} : vector<1x16xf32> -> vector<1x16xf32>
    %347 = vector.broadcast %282 : f32 to vector<1x16xf32>
    %348 = arith.mulf %347, %323 : vector<1x16xf32>
    %349 = arith.mulf %348, %346 : vector<1x16xf32>
    %350 = vector.broadcast %284 : f32 to vector<1x16xf32>
    %351 = arith.addf %349, %350 : vector<1x16xf32>
    %352 = vector.broadcast %283 : f32 to vector<1x16xf32>
    %353 = arith.mulf %352, %333 : vector<1x16xf32>
    %354 = arith.mulf %353, %346 : vector<1x16xf32>
    %355 = vector.broadcast %285 : f32 to vector<1x16xf32>
    %356 = arith.addf %354, %355 : vector<1x16xf32>
    %cst_55 = arith.constant 2.000000e+00 : f32
    %357 = vector.broadcast %cst_55 : f32 to vector<1x16xf32>
    %358 = arith.mulf %357, %351 : vector<1x16xf32>
    %cst_56 = arith.constant 0.333333343 : f32
    %359 = vector.broadcast %cst_56 : f32 to vector<1x16xf32>
    %360 = arith.mulf %358, %359 : vector<1x16xf32>
    %cst_57 = arith.constant 1.000000e+00 : f32
    %361 = vector.broadcast %cst_57 : f32 to vector<1x16xf32>
    %362 = arith.subf %360, %361 : vector<1x16xf32>
    %cst_58 = arith.constant 2.000000e+00 : f32
    %363 = vector.broadcast %cst_58 : f32 to vector<1x16xf32>
    %364 = arith.mulf %363, %356 : vector<1x16xf32>
    %cst_59 = arith.constant 0.333333343 : f32
    %365 = vector.broadcast %cst_59 : f32 to vector<1x16xf32>
    %366 = arith.mulf %364, %365 : vector<1x16xf32>
    %cst_60 = arith.constant 1.000000e+00 : f32
    %367 = vector.broadcast %cst_60 : f32 to vector<1x16xf32>
    %368 = arith.subf %366, %367 : vector<1x16xf32>
    %cst_61 = arith.constant 1.000000e+00 : f32
    %369 = vector.broadcast %cst_61 : f32 to vector<1x16xf32>
    %370 = arith.addf %362, %369 : vector<1x16xf32>
    %cst_62 = arith.constant 1.500000e+00 : f32
    %371 = vector.broadcast %cst_62 : f32 to vector<1x16xf32>
    %372 = arith.mulf %370, %371 : vector<1x16xf32>
    %cst_63 = arith.constant 1.000000e+00 : f32
    %373 = vector.broadcast %cst_63 : f32 to vector<1x16xf32>
    %374 = arith.addf %368, %373 : vector<1x16xf32>
    %cst_64 = arith.constant 1.500000e+00 : f32
    %375 = vector.broadcast %cst_64 : f32 to vector<1x16xf32>
    %376 = arith.mulf %374, %375 : vector<1x16xf32>
    %cst_65 = arith.constant -2.000000e+00 : f32
    %cst_66 = arith.constant 5.000000e+00 : f32
    %377 = vector.broadcast %cst_65 : f32 to vector<1x16xf32>
    %378 = arith.maximumf %377, %372 : vector<1x16xf32>
    %379 = vector.broadcast %cst_66 : f32 to vector<1x16xf32>
    %380 = arith.minimumf %379, %378 : vector<1x16xf32>
    %cst_67 = arith.constant -2.000000e+00 : f32
    %cst_68 = arith.constant 5.000000e+00 : f32
    %381 = vector.broadcast %cst_67 : f32 to vector<1x16xf32>
    %382 = arith.maximumf %381, %376 : vector<1x16xf32>
    %383 = vector.broadcast %cst_68 : f32 to vector<1x16xf32>
    %384 = arith.minimumf %383, %382 : vector<1x16xf32>
    %385 = math.floor %380 : vector<1x16xf32>
    %386 = math.floor %384 : vector<1x16xf32>
    %387 = arith.subf %380, %385 : vector<1x16xf32>
    %cst_69 = arith.constant 1.000000e+00 : f32
    %388 = vector.broadcast %cst_69 : f32 to vector<1x16xf32>
    %389 = arith.subf %388, %387 : vector<1x16xf32>
    %390 = arith.subf %384, %386 : vector<1x16xf32>
    %cst_70 = arith.constant 1.000000e+00 : f32
    %391 = vector.broadcast %cst_70 : f32 to vector<1x16xf32>
    %392 = arith.subf %391, %390 : vector<1x16xf32>
    %393 = arith.fptosi %385 : vector<1x16xf32> to vector<1x16xi32>
    %c1_i32_71 = arith.constant 1 : i32
    %394 = vector.broadcast %c1_i32_71 : i32 to vector<1x16xi32>
    %395 = arith.addi %393, %394 : vector<1x16xi32>
    %396 = arith.fptosi %386 : vector<1x16xf32> to vector<1x16xi32>
    %c1_i32_72 = arith.constant 1 : i32
    %397 = vector.broadcast %c1_i32_72 : i32 to vector<1x16xi32>
    %398 = arith.addi %396, %397 : vector<1x16xi32>
    %399 = arith.mulf %389, %392 : vector<1x16xf32>
    %c0_i32_73 = arith.constant 0 : i32
    %400 = vector.broadcast %c0_i32_73 : i32 to vector<1x16xi32>
    %401 = arith.cmpi sge, %393, %400 : vector<1x16xi32>
    %c3_i32_74 = arith.constant 3 : i32
    %402 = vector.broadcast %c3_i32_74 : i32 to vector<1x16xi32>
    %403 = arith.cmpi sle, %393, %402 : vector<1x16xi32>
    %404 = arith.andi %401, %403 : vector<1x16xi1>
    %c0_i32_75 = arith.constant 0 : i32
    %405 = vector.broadcast %c0_i32_75 : i32 to vector<1x16xi32>
    %406 = arith.cmpi sge, %396, %405 : vector<1x16xi32>
    %407 = arith.andi %404, %406 : vector<1x16xi1>
    %c3_i32_76 = arith.constant 3 : i32
    %408 = vector.broadcast %c3_i32_76 : i32 to vector<1x16xi32>
    %409 = arith.cmpi sle, %396, %408 : vector<1x16xi32>
    %410 = arith.andi %407, %409 : vector<1x16xi1>
    %411 = arith.extui %410 : vector<1x16xi1> to vector<1x16xi32>
    %412 = arith.sitofp %411 : vector<1x16xi32> to vector<1x16xf32>
    %c4_i32_77 = arith.constant 4 : i32
    %413 = vector.broadcast %c4_i32_77 : i32 to vector<1x16xi32>
    %414 = arith.muli %396, %413 : vector<1x16xi32>
    %415 = arith.addi %414, %393 : vector<1x16xi32>
    %416 = vector.broadcast %415 : vector<1x16xi32> to vector<16x16xi32>
    %417 = arith.cmpi eq, %14, %416 : vector<16x16xi32>
    %418 = arith.extui %417 : vector<16x16xi1> to vector<16x16xi32>
    %419 = arith.sitofp %418 : vector<16x16xi32> to vector<16x16xf32>
    %420 = arith.mulf %399, %412 : vector<1x16xf32>
    %421 = vector.broadcast %420 : vector<1x16xf32> to vector<16x16xf32>
    %422 = arith.mulf %419, %421 : vector<16x16xf32>
    %423 = arith.mulf %387, %392 : vector<1x16xf32>
    %c0_i32_78 = arith.constant 0 : i32
    %424 = vector.broadcast %c0_i32_78 : i32 to vector<1x16xi32>
    %425 = arith.cmpi sge, %395, %424 : vector<1x16xi32>
    %c3_i32_79 = arith.constant 3 : i32
    %426 = vector.broadcast %c3_i32_79 : i32 to vector<1x16xi32>
    %427 = arith.cmpi sle, %395, %426 : vector<1x16xi32>
    %428 = arith.andi %425, %427 : vector<1x16xi1>
    %c0_i32_80 = arith.constant 0 : i32
    %429 = vector.broadcast %c0_i32_80 : i32 to vector<1x16xi32>
    %430 = arith.cmpi sge, %396, %429 : vector<1x16xi32>
    %431 = arith.andi %428, %430 : vector<1x16xi1>
    %c3_i32_81 = arith.constant 3 : i32
    %432 = vector.broadcast %c3_i32_81 : i32 to vector<1x16xi32>
    %433 = arith.cmpi sle, %396, %432 : vector<1x16xi32>
    %434 = arith.andi %431, %433 : vector<1x16xi1>
    %435 = arith.extui %434 : vector<1x16xi1> to vector<1x16xi32>
    %436 = arith.sitofp %435 : vector<1x16xi32> to vector<1x16xf32>
    %c4_i32_82 = arith.constant 4 : i32
    %437 = vector.broadcast %c4_i32_82 : i32 to vector<1x16xi32>
    %438 = arith.muli %396, %437 : vector<1x16xi32>
    %439 = arith.addi %438, %395 : vector<1x16xi32>
    %440 = vector.broadcast %439 : vector<1x16xi32> to vector<16x16xi32>
    %441 = arith.cmpi eq, %14, %440 : vector<16x16xi32>
    %442 = arith.extui %441 : vector<16x16xi1> to vector<16x16xi32>
    %443 = arith.sitofp %442 : vector<16x16xi32> to vector<16x16xf32>
    %444 = arith.mulf %423, %436 : vector<1x16xf32>
    %445 = vector.broadcast %444 : vector<1x16xf32> to vector<16x16xf32>
    %446 = arith.mulf %443, %445 : vector<16x16xf32>
    %447 = arith.addf %422, %446 : vector<16x16xf32>
    %448 = arith.mulf %389, %390 : vector<1x16xf32>
    %c0_i32_83 = arith.constant 0 : i32
    %449 = vector.broadcast %c0_i32_83 : i32 to vector<1x16xi32>
    %450 = arith.cmpi sge, %393, %449 : vector<1x16xi32>
    %c3_i32_84 = arith.constant 3 : i32
    %451 = vector.broadcast %c3_i32_84 : i32 to vector<1x16xi32>
    %452 = arith.cmpi sle, %393, %451 : vector<1x16xi32>
    %453 = arith.andi %450, %452 : vector<1x16xi1>
    %c0_i32_85 = arith.constant 0 : i32
    %454 = vector.broadcast %c0_i32_85 : i32 to vector<1x16xi32>
    %455 = arith.cmpi sge, %398, %454 : vector<1x16xi32>
    %456 = arith.andi %453, %455 : vector<1x16xi1>
    %c3_i32_86 = arith.constant 3 : i32
    %457 = vector.broadcast %c3_i32_86 : i32 to vector<1x16xi32>
    %458 = arith.cmpi sle, %398, %457 : vector<1x16xi32>
    %459 = arith.andi %456, %458 : vector<1x16xi1>
    %460 = arith.extui %459 : vector<1x16xi1> to vector<1x16xi32>
    %461 = arith.sitofp %460 : vector<1x16xi32> to vector<1x16xf32>
    %c4_i32_87 = arith.constant 4 : i32
    %462 = vector.broadcast %c4_i32_87 : i32 to vector<1x16xi32>
    %463 = arith.muli %398, %462 : vector<1x16xi32>
    %464 = arith.addi %463, %393 : vector<1x16xi32>
    %465 = vector.broadcast %464 : vector<1x16xi32> to vector<16x16xi32>
    %466 = arith.cmpi eq, %14, %465 : vector<16x16xi32>
    %467 = arith.extui %466 : vector<16x16xi1> to vector<16x16xi32>
    %468 = arith.sitofp %467 : vector<16x16xi32> to vector<16x16xf32>
    %469 = arith.mulf %448, %461 : vector<1x16xf32>
    %470 = vector.broadcast %469 : vector<1x16xf32> to vector<16x16xf32>
    %471 = arith.mulf %468, %470 : vector<16x16xf32>
    %472 = arith.addf %447, %471 : vector<16x16xf32>
    %473 = arith.mulf %387, %390 : vector<1x16xf32>
    %c0_i32_88 = arith.constant 0 : i32
    %474 = vector.broadcast %c0_i32_88 : i32 to vector<1x16xi32>
    %475 = arith.cmpi sge, %395, %474 : vector<1x16xi32>
    %c3_i32_89 = arith.constant 3 : i32
    %476 = vector.broadcast %c3_i32_89 : i32 to vector<1x16xi32>
    %477 = arith.cmpi sle, %395, %476 : vector<1x16xi32>
    %478 = arith.andi %475, %477 : vector<1x16xi1>
    %c0_i32_90 = arith.constant 0 : i32
    %479 = vector.broadcast %c0_i32_90 : i32 to vector<1x16xi32>
    %480 = arith.cmpi sge, %398, %479 : vector<1x16xi32>
    %481 = arith.andi %478, %480 : vector<1x16xi1>
    %c3_i32_91 = arith.constant 3 : i32
    %482 = vector.broadcast %c3_i32_91 : i32 to vector<1x16xi32>
    %483 = arith.cmpi sle, %398, %482 : vector<1x16xi32>
    %484 = arith.andi %481, %483 : vector<1x16xi1>
    %485 = arith.extui %484 : vector<1x16xi1> to vector<1x16xi32>
    %486 = arith.sitofp %485 : vector<1x16xi32> to vector<1x16xf32>
    %c4_i32_92 = arith.constant 4 : i32
    %487 = vector.broadcast %c4_i32_92 : i32 to vector<1x16xi32>
    %488 = arith.muli %398, %487 : vector<1x16xi32>
    %489 = arith.addi %488, %395 : vector<1x16xi32>
    %490 = vector.broadcast %489 : vector<1x16xi32> to vector<16x16xi32>
    %491 = arith.cmpi eq, %14, %490 : vector<16x16xi32>
    %492 = arith.extui %491 : vector<16x16xi1> to vector<16x16xi32>
    %493 = arith.sitofp %492 : vector<16x16xi32> to vector<16x16xf32>
    %494 = arith.mulf %473, %486 : vector<1x16xf32>
    %495 = vector.broadcast %494 : vector<1x16xf32> to vector<16x16xf32>
    %496 = arith.mulf %493, %495 : vector<16x16xf32>
    %497 = arith.addf %472, %496 : vector<16x16xf32>
    %cst_93 = arith.constant dense<0.000000e+00> : vector<3x16xf32>
    %498 = tpu.matmul %301, %497, %cst_93 {dimension_numbers = #tpu.dot_dimension_numbers<[1], [0], [0], [1], [0, 0, 1, 1], [], []>} : vector<3x16xf32>, vector<16x16xf32>, vector<3x16xf32> -> vector<3x16xf32>
    %499 = vector.extract_strided_slice %300 {offsets = [0, 0], sizes = [1, 16], strides = [1, 1]} : vector<3x16xf32> to vector<1x16xf32>
    %500 = vector.extract_strided_slice %498 {offsets = [0, 0], sizes = [1, 16], strides = [1, 1]} : vector<3x16xf32> to vector<1x16xf32>
    %501 = vector.extract_strided_slice %300 {offsets = [0, 0], sizes = [1, 16], strides = [1, 1]} : vector<3x16xf32> to vector<1x16xf32>
    %502 = vector.extract_strided_slice %498 {offsets = [0, 0], sizes = [1, 16], strides = [1, 1]} : vector<3x16xf32> to vector<1x16xf32>
    %503 = arith.subf %501, %502 : vector<1x16xf32>
    %504 = math.absf %503 : vector<1x16xf32>
    %505 = vector.extract_strided_slice %300 {offsets = [1, 0], sizes = [1, 16], strides = [1, 1]} : vector<3x16xf32> to vector<1x16xf32>
    %506 = arith.addf %499, %505 : vector<1x16xf32>
    %507 = vector.extract_strided_slice %498 {offsets = [1, 0], sizes = [1, 16], strides = [1, 1]} : vector<3x16xf32> to vector<1x16xf32>
    %508 = arith.addf %500, %507 : vector<1x16xf32>
    %509 = vector.extract_strided_slice %300 {offsets = [1, 0], sizes = [1, 16], strides = [1, 1]} : vector<3x16xf32> to vector<1x16xf32>
    %510 = vector.extract_strided_slice %498 {offsets = [1, 0], sizes = [1, 16], strides = [1, 1]} : vector<3x16xf32> to vector<1x16xf32>
    %511 = arith.subf %509, %510 : vector<1x16xf32>
    %512 = math.absf %511 : vector<1x16xf32>
    %513 = arith.addf %504, %512 : vector<1x16xf32>
    %514 = vector.extract_strided_slice %300 {offsets = [2, 0], sizes = [1, 16], strides = [1, 1]} : vector<3x16xf32> to vector<1x16xf32>
    %515 = arith.addf %506, %514 : vector<1x16xf32>
    %516 = vector.extract_strided_slice %498 {offsets = [2, 0], sizes = [1, 16], strides = [1, 1]} : vector<3x16xf32> to vector<1x16xf32>
    %517 = arith.addf %508, %516 : vector<1x16xf32>
    %518 = vector.extract_strided_slice %300 {offsets = [2, 0], sizes = [1, 16], strides = [1, 1]} : vector<3x16xf32> to vector<1x16xf32>
    %519 = vector.extract_strided_slice %498 {offsets = [2, 0], sizes = [1, 16], strides = [1, 1]} : vector<3x16xf32> to vector<1x16xf32>
    %520 = arith.subf %518, %519 : vector<1x16xf32>
    %521 = math.absf %520 : vector<1x16xf32>
    %522 = arith.addf %513, %521 : vector<1x16xf32>
    %cst_94 = arith.constant 0.000000e+00 : f32
    %523 = vector.broadcast %cst_94 : f32 to vector<1x16xf32>
    %524 = arith.cmpf one, %303, %523 : vector<1x16xf32>
    %cst_95 = arith.constant 0.000000e+00 : f32
    %525 = vector.broadcast %cst_95 : f32 to vector<1x16xf32>
    %526 = arith.cmpf ogt, %515, %525 : vector<1x16xf32>
    %527 = arith.andi %524, %526 : vector<1x16xi1>
    %cst_96 = arith.constant 0.000000e+00 : f32
    %528 = vector.broadcast %cst_96 : f32 to vector<1x16xf32>
    %529 = arith.cmpf ogt, %517, %528 : vector<1x16xf32>
    %530 = arith.andi %527, %529 : vector<1x16xi1>
    %531 = arith.extui %530 : vector<1x16xi1> to vector<1x16xi32>
    %532 = arith.sitofp %531 : vector<1x16xi32> to vector<1x16xf32>
    %533 = arith.mulf %522, %532 : vector<1x16xf32>
    %534 = vector.shape_cast %533 : vector<1x16xf32> to vector<1x1x16xf32>
    %cst_97 = arith.constant dense<0.000000e+00> : vector<1xf32>
    %535 = vector.multi_reduction <add>, %534, %cst_97 [1, 2] : vector<1x1x16xf32> to vector<1xf32>
    %536 = vector.shape_cast %535 : vector<1xf32> to vector<1x1x1xf32>
    %537 = vector.extract %536[0, 0, 0] : f32 from vector<1x1x1xf32>
    %538 = arith.addf %271, %537 : f32
    %539 = vector.shape_cast %532 : vector<1x16xf32> to vector<1x1x16xf32>
    %cst_98 = arith.constant dense<0.000000e+00> : vector<1xf32>
    %540 = vector.multi_reduction <add>, %539, %cst_98 [1, 2] : vector<1x1x16xf32> to vector<1xf32>
    %541 = vector.shape_cast %540 : vector<1xf32> to vector<1x1x1xf32>
    %542 = vector.extract %541[0, 0, 0] : f32 from vector<1x1x1xf32>
    %543 = arith.addf %276, %542 : f32
    %544 = vector.shape_cast %300 : vector<3x16xf32> to vector<1x3x16xf32>
    %cst_99 = arith.constant dense<0xFF800000> : vector<1xf32>
    %545 = vector.multi_reduction <maximumf>, %544, %cst_99 [1, 2] : vector<1x3x16xf32> to vector<1xf32>
    %546 = vector.shape_cast %545 : vector<1xf32> to vector<1x1x1xf32>
    %547 = vector.extract %546[0, 0, 0] : f32 from vector<1x1x1xf32>
    %548 = arith.maximumf %281, %547 : f32
    %c0_100 = arith.constant 0 : index
    %549 = memref.load %arg4[%c0_100] : memref<3xf32, #tpu.memory_space<smem>>
    memref.store %538, %arg4[%c0_100] : memref<3xf32, #tpu.memory_space<smem>>
    %c1_101 = arith.constant 1 : index
    %550 = memref.load %arg4[%c1_101] : memref<3xf32, #tpu.memory_space<smem>>
    memref.store %543, %arg4[%c1_101] : memref<3xf32, #tpu.memory_space<smem>>
    %c2_102 = arith.constant 2 : index
    %551 = memref.load %arg4[%c2_102] : memref<3xf32, #tpu.memory_space<smem>>
    memref.store %548, %arg4[%c2_102] : memref<3xf32, #tpu.memory_space<smem>>
    return
  }
}

</mosaic_0001>

<llo_original>
// kernel: multiscale_masked_photometric_loss.4
$region0: #{multiscale_masked_photometric_loss.4}
  #allocation0 [shape = 'u32[]', space=smem, size = 0x4, offset = 0x4, fixed_abs, tag = 'smem constant byte address 0x4 - core index']
  #allocation1 [shape = 'u32[144,128]{1,0:T(1,128)}', space=vmem, size = 0x12000, scoped, tag = 'internal scratch']
  %s0 = inlined_call_operand.vmem [shape: f32[36], index: 0, kind: input, shape index: {}]
  %s1 = inlined_call_operand.vmem [shape: f32[16,64], index: 1, kind: input, shape index: {}]
  %s2 = inlined_call_operand.vmem [shape: f32[64,16], index: 2, kind: input, shape index: {}]
  %s3 = inlined_call_operand.vmem [shape: f32[16,16], index: 3, kind: output, shape index: {0}]
  %s4 = inlined_call_operand.vmem [shape: f32[3], index: 4, kind: output, shape index: {1}]
  %5 = xla_tuple %s3, %s4
  %s6 = sld [smem:[#allocation0]]
  $region34: #{multiscale_masked_photometric_loss.4} parent=0
    _
  %s8 = ssub.s32 1, %s6
  %s9 = scalar_select 0, %s8, %s6
  $region1: #{multiscale_masked_photometric_loss.4} parent=0
    #allocation2 [shape = 'u8[512]{0}', space=smem, size = 0x200, scoped, tag = 'input window, operand 0, single buffered']
    #allocation3 [shape = 's32[1]{0}', space=sflag, size = 0x4, scoped, tag = 'scoped memory for multiscale_masked_photometric_loss.4']
    #allocation4 [shape = 's32[1]{0}', space=sflag, size = 0x4, scoped, tag = 'scoped memory for multiscale_masked_photometric_loss.4']
    #allocation5 [shape = 'u8[512]{0}', space=smem, size = 0x200, scoped, tag = 'output window, operand 1, single buffered']
    %10 = vsyncpa [#allocation3], 0
    %11 = vsyncpa [#allocation4], 0
    // Predicated region
    $region2: #{multiscale_masked_photometric_loss.4} parent=1 // pred_check
      _
    $region3: #{multiscale_masked_photometric_loss.4} parent=1 // pred_check_branch
      %13 = sbr.rel (0) target = $region5
    $region4: #{multiscale_masked_photometric_loss.4} parent=1 // pred_region
      %s15 = ssub.s32 16, 16
      %16 = vsyncadd [#allocation3], %s15
      %s18 = sshll.u32 %s0, 4
      %s19 = int_to_ptr.vmem [resolvable:$true] %s18
      %21 = dma.vmem_to_smem %s19, 16, [#allocation2], [#allocation3]
    $region5: #{multiscale_masked_photometric_loss.4} parent=1 // pred_fallthru
      _
    // Predicated region
    $region6: #{multiscale_masked_photometric_loss.4} parent=1 // pred_check
      _
    $region7: #{multiscale_masked_photometric_loss.4} parent=1 // pred_check_branch
      %23 = sbr.rel (0) target = $region9
    $region8: #{multiscale_masked_photometric_loss.4} parent=1 // pred_region
      _
    $region9: #{multiscale_masked_photometric_loss.4} parent=1 // pred_fallthru
      _
    // Predicated region
    $region10: #{multiscale_masked_photometric_loss.4} parent=1 // pred_check
      _
    $region11: #{multiscale_masked_photometric_loss.4} parent=1 // pred_check_branch
      %25 = sbr.rel (0) target = $region13
    $region12: #{multiscale_masked_photometric_loss.4} parent=1 // pred_region
      _
    $region13: #{multiscale_masked_photometric_loss.4} parent=1 // pred_fallthru
      _
    // Predicated region
    $region14: #{multiscale_masked_photometric_loss.4} parent=1 // pred_check
      _
    $region15: #{multiscale_masked_photometric_loss.4} parent=1 // pred_check_branch
      %27 = sbr.rel (0) target = $region17
    $region16: #{multiscale_masked_photometric_loss.4} parent=1 // pred_region
      %28 = dma.done [#allocation3], 16
    $region17: #{multiscale_masked_photometric_loss.4} parent=1 // pred_fallthru
      _
    %29 = sfence
    %v30 = vld [vmem:[%s1] sm:$0xff]
    %v31 = vld [vmem:[%s1 + $0x8] sm:$0xff]
    %v32 = vld [vmem:[%s2] sm:$0xff]
    %v33 = vld [vmem:[%s2 + $0x8] sm:$0xff]
    %v34 = vld [vmem:[%s2 + $0x10] sm:$0xff]
    %v35 = vld [vmem:[%s2 + $0x18] sm:$0xff]
    %v36 = vld [vmem:[%s2 + $0x20] sm:$0xff]
    %v37 = vld [vmem:[%s2 + $0x28] sm:$0xff]
    %v38 = vld [vmem:[%s2 + $0x30] sm:$0xff]
    %v39 = vld [vmem:[%s2 + $0x38] sm:$0xff]
    %vm40 = vcmask 523264
    %v42 = vsel %vm40, %v30, 0
    %v45 = vsel %vm40, %v31, 0
    %47 = vmatprep.subr.mxu0 0.0
    %48 = vmatpush1.msra.mxu0 0.0
    %49 = vmatprep.subr.mxu0 0.0
    %50 = vmatpush1.msra.mxu0 0.0
    %51 = vmatprep.subr.mxu0 0.0
    %52 = vmatpush1.msra.mxu0 0.0
    %53 = vmatprep.subr.mxu0 0.0
    %54 = vmatpush1.msra.mxu0 0.0
    %55 = vmatprep.subr.mxu0 0.0
    %56 = vmatpush1.msra.mxu0 0.0
    %57 = vmatprep.subr.mxu0 0.0
    %58 = vmatpush1.msra.mxu0 0.0
    %59 = vmatprep.subr.mxu0 0.0
    %60 = vmatpush1.msra.mxu0 0.0
    %61 = vmatprep.subr.mxu0 0.0
    %62 = vmatpush1.msra.mxu0 0.0
    %63 = vmatprep.subr.mxu0 0.0
    %64 = vmatpush1.msra.mxu0 %v39
    %65 = vmatprep.subr.mxu0 0.0
    %66 = vmatpush1.msra.mxu0 %v38
    %67 = vmatprep.subr.mxu0 0.0
    %68 = vmatpush1.msra.mxu0 %v37
    %69 = vmatprep.subr.mxu0 0.0
    %70 = vmatpush1.msra.mxu0 %v36
    %71 = vmatprep.subr.mxu0 0.0
    %72 = vmatpush1.msra.mxu0 %v35
    %73 = vmatprep.subr.mxu0 0.0
    %74 = vmatpush1.msra.mxu0 %v34
    %75 = vmatprep.subr.mxu0 0.0
    %76 = vmatpush1.msra.mxu0 %v33
    %77 = vmatprep.subr.mxu0 0.0
    %78 = vmatpush1.msra.mxu0 %v32
    %79 = vmatprep.subr.mxu0 0.0
    %80 = vmatpush2.msra.mxu0 0.0
    %81 = vmatprep.subr.mxu0 0.0
    %82 = vmatpush2.msra.mxu0 0.0
    %83 = vmatprep.subr.mxu0 0.0
    %84 = vmatpush2.msra.mxu0 0.0
    %85 = vmatprep.subr.mxu0 0.0
    %86 = vmatpush2.msra.mxu0 0.0
    %87 = vmatprep.subr.mxu0 0.0
    %88 = vmatpush2.msra.mxu0 0.0
    %89 = vmatprep.subr.mxu0 0.0
    %90 = vmatpush2.msra.mxu0 0.0
    %91 = vmatprep.subr.mxu0 0.0
    %92 = vmatpush2.msra.mxu0 0.0
    %93 = vmatprep.subr.mxu0 0.0
    %94 = vmatpush2.msra.mxu0 0.0
    %95 = vmatprep.subr.mxu0 0.0
    %96 = vmatpush2.msra.mxu0 0.0
    %97 = vmatprep.subr.mxu0 0.0
    %98 = vmatpush2.msra.mxu0 0.0
    %99 = vmatprep.subr.mxu0 0.0
    %100 = vmatpush2.msra.mxu0 0.0
    %101 = vmatprep.subr.mxu0 0.0
    %102 = vmatpush2.msra.mxu0 0.0
    %103 = vmatprep.subr.mxu0 0.0
    %104 = vmatpush2.msra.mxu0 0.0
    %105 = vmatprep.subr.mxu0 0.0
    %106 = vmatpush2.msra.mxu0 0.0
    %107 = vmatprep.subr.mxu0 0.0
    %108 = vmatpush2.msra.mxu0 0.0
    %109 = vmatprep.subr.mxu0 0.0
    %110 = vmatpush2.msra.mxu0 0.0
    %111 = vmatprep.mubr.f32.mxu0 0.0
    %112 = vmatmul.mubr.f32.gmra.mxu0 %v42
    %v113 = vpop.f32.mrf.mxu0
    %v114 = vadd.f32 0.0, %v113
    %v115 = vpop.f32.mrf.mxu0
    %116 = vmatprep.mubr.f32.mxu0 0.0
    %117 = vmatmul.mubr.f32.gmra.mxu0 %v45
    %v118 = vpop.f32.mrf.mxu0
    %v119 = vadd.f32 0.0, %v118
    %v120 = vpop.f32.mrf.mxu0
    %121 = vdwg.mxu0
    %vm122 = vcmask 130048
    %123 = vst.msk [vmem:[%s3] sm:$0xff] %vm122, %v114
    %124 = vst.msk [vmem:[%s3 + $0x8] sm:$0xff] %vm122, %v119
    %v125 = vlaneseq
    %v126 = vand.u32 %v125, 127
    %v127 = vcvt.s32.f32 %v126
    %v128 = vadd.f32 %v127, 0.5
    %v129 = vmul.f32 %v128, 0.25
    %v130 = vfloor.f32 %v129
    %v131 = vmul.f32 %v130, 4.0
    %v132 = vsub.f32 %v127, %v131
    %v133 = vlaneseq
    %v134 = vshrl.u32 %v133, 7
    %v135 = vadd.s32 %v134, 8
    %s136 = sld [smem:[#allocation2]]
    %s137 = sld [smem:[#allocation2 + $0x1]]
    %s138 = sld [smem:[#allocation2 + $0x2]]
    %s139 = sld [smem:[#allocation2 + $0x3]]
    %s140 = sld [smem:[#allocation2 + $0x4]]
    %s141 = sld [smem:[#allocation2 + $0x5]]
    %s142 = sld [smem:[#allocation2 + $0x6]]
    %s143 = sld [smem:[#allocation2 + $0x7]]
    %s144 = sld [smem:[#allocation2 + $0x8]]
    %s145 = sld [smem:[#allocation2 + $0x9]]
    %s146 = sld [smem:[#allocation2 + $0xa]]
    %s147 = sld [smem:[#allocation2 + $0xb]]
    %s148 = sld [smem:[#allocation2 + $0xc]]
    %s149 = sld [smem:[#allocation2 + $0xd]]
    %s150 = sld [smem:[#allocation2 + $0xe]]
    %s151 = sld [smem:[#allocation2 + $0xf]]
    %s152 = sld [smem:[#allocation2 + $0x10]]
    %s153 = sld [smem:[#allocation2 + $0x11]]
    %v154 = vstv %s138
    %v155 = vsub.f32 %v132, %v154
    %v156 = vmul.f32 %v114, %v155
    %v157 = vstv %s140
    %v158 = vmul.f32 %v156, %v157
    %v159 = vstv %s139
    %v160 = vsub.f32 %v130, %v159
    %v161 = vmul.f32 %v114, %v160
    %v162 = vstv %s141
    %v163 = vmul.f32 %v161, %v162
    %v164 = vstv %s142
    %v165 = vmul.f32 %v164, %v158
    %v166 = vstv %s143
    %v167 = vmul.f32 %v166, %v163
    %v168 = vadd.f32 %v165, %v167
    %v169 = vstv %s144
    %v170 = vmul.f32 %v169, %v114
    %v171 = vadd.f32 %v168, %v170
    %v172 = vstv %s151
    %v173 = vadd.f32 %v171, %v172
    %v174 = vstv %s145
    %v175 = vmul.f32 %v174, %v158
    %v176 = vstv %s146
    %v177 = vmul.f32 %v176, %v163
    %v178 = vadd.f32 %v175, %v177
    %v179 = vstv %s147
    %v180 = vmul.f32 %v179, %v114
    %v181 = vadd.f32 %v178, %v180
    %v182 = vstv %s152
    %v183 = vadd.f32 %v181, %v182
    %v184 = vstv %s148
    %v185 = vmul.f32 %v184, %v158
    %v186 = vstv %s149
    %v187 = vmul.f32 %v186, %v163
    %v188 = vadd.f32 %v185, %v187
    %v189 = vstv %s150
    %v190 = vmul.f32 %v189, %v114
    %v191 = vadd.f32 %v188, %v190
    %v192 = vstv %s153
    %v193 = vadd.f32 %v191, %v192
    %v194 = vmax.f32 %v193, 0.001
    %v195 = vrcp.pop %v194
    %v196 = vstv %s136
    %v197 = vmul.f32 %v196, %v173
    %v198 = vmul.f32 %v197, %v195
    %v199 = vadd.f32 %v198, %v154
    %v200 = vstv %s137
    %v201 = vmul.f32 %v200, %v183
    %v202 = vmul.f32 %v201, %v195
    %v203 = vadd.f32 %v202, %v159
    %v204 = vmul.f32 %v199, 2.0
    %v205 = vmul.f32 %v204, 0.33333334
    %v206 = vsub.f32 %v205, 1.0
    %v207 = vmul.f32 %v203, 2.0
    %v208 = vmul.f32 %v207, 0.33333334
    %v209 = vsub.f32 %v208, 1.0
    %v210 = vadd.f32 %v206, 1.0
    %v211 = vmul.f32 %v210, 1.5
    %v212 = vadd.f32 %v209, 1.0
    %v213 = vmul.f32 %v212, 1.5
    %v214 = vmax.f32 %v211, -2.0
    %v215 = vmin.f32 %v214, 5.0
    %v216 = vmax.f32 %v213, -2.0
    %v217 = vmin.f32 %v216, 5.0
    %v218 = vfloor.f32 %v215
    %v219 = vfloor.f32 %v217
    %v220 = vsub.f32 %v215, %v218
    %v221 = vsub.f32 1.0, %v220
    %v222 = vsub.f32 %v217, %v219
    %v223 = vsub.f32 1.0, %v222
    %v224 = vcvt.f32.s32.to.zero.pseudo %v218
    %v225 = vadd.s32 %v224, 1
    %v226 = vcvt.f32.s32.to.zero.pseudo %v219
    %v227 = vadd.s32 %v226, 1
    %v228 = vmul.f32 %v221, %v223
    %vm229 = vcmp.ge.s32.totalorder %v224, 0
    %vm230 = vcmp.le.s32.totalorder %v224, 3
    %vm231 = vmand %vm229, %vm230
    %vm232 = vcmp.ge.s32.totalorder %v226, 0
    %vm233 = vmand %vm231, %vm232
    %vm234 = vcmp.le.s32.totalorder %v226, 3
    %vm235 = vmand %vm233, %vm234
    %v236 = vsel %vm235, 1, 0
    %v237 = vcvt.s32.f32 %v236
    %v238 = vmul.u32 %v226, 4
    %v239 = vadd.s32 %v238, %v224
    %v240 = vlaneseq
    %v241 = vshrl.u32 %v240, 7
    %v242 = vsub.s32 6, %v241
    %v243 = vrot.slane %v239, %v242
    %vm244 = vcmp.eq.s32.totalorder %v134, %v243
    %vm245 = vcmp.eq.s32.totalorder %v135, %v243
    %v246 = vsel %vm244, 1, 0
    %v247 = vsel %vm245, 1, 0
    %v248 = vcvt.s32.f32 %v246
    %v249 = vcvt.s32.f32 %v247
    %v250 = vmul.f32 %v228, %v237
    %v251 = vlaneseq
    %v252 = vshrl.u32 %v251, 7
    %v253 = vsub.s32 6, %v252
    %v254 = vrot.slane %v250, %v253
    %v255 = vmul.f32 %v248, %v254
    %v256 = vmul.f32 %v249, %v254
    %v257 = vmul.f32 %v220, %v223
    %vm258 = vcmp.ge.s32.totalorder %v225, 0
    %vm259 = vcmp.le.s32.totalorder %v225, 3
    %vm260 = vmand %vm258, %vm259
    %vm261 = vmand %vm260, %vm232
    %vm262 = vmand %vm261, %vm234
    %v263 = vsel %vm262, 1, 0
    %v264 = vcvt.s32.f32 %v263
    %v265 = vadd.s32 %v238, %v225
    %v266 = vlaneseq
    %v267 = vshrl.u32 %v266, 7
    %v268 = vsub.s32 6, %v267
    %v269 = vrot.slane %v265, %v268
    %vm270 = vcmp.eq.s32.totalorder %v134, %v269
    %vm271 = vcmp.eq.s32.totalorder %v135, %v269
    %v272 = vsel %vm270, 1, 0
    %v273 = vsel %vm271, 1, 0
    %v274 = vcvt.s32.f32 %v272
    %v275 = vcvt.s32.f32 %v273
    %v276 = vmul.f32 %v257, %v264
    %v277 = vlaneseq
    %v278 = vshrl.u32 %v277, 7
    %v279 = vsub.s32 6, %v278
    %v280 = vrot.slane %v276, %v279
    %v281 = vmul.f32 %v274, %v280
    %v282 = vmul.f32 %v275, %v280
    %v283 = vadd.f32 %v255, %v281
    %v284 = vadd.f32 %v256, %v282
    %v285 = vmul.f32 %v221, %v222
    %vm286 = vcmp.ge.s32.totalorder %v227, 0
    %vm287 = vmand %vm231, %vm286
    %vm288 = vcmp.le.s32.totalorder %v227, 3
    %vm289 = vmand %vm287, %vm288
    %v290 = vsel %vm289, 1, 0
    %v291 = vcvt.s32.f32 %v290
    %v292 = vmul.u32 %v227, 4
    %v293 = vadd.s32 %v292, %v224
    %v294 = vlaneseq
    %v295 = vshrl.u32 %v294, 7
    %v296 = vsub.s32 6, %v295
    %v297 = vrot.slane %v293, %v296
    %vm298 = vcmp.eq.s32.totalorder %v134, %v297
    %vm299 = vcmp.eq.s32.totalorder %v135, %v297
    %v300 = vsel %vm298, 1, 0
    %v301 = vsel %vm299, 1, 0
    %v302 = vcvt.s32.f32 %v300
    %v303 = vcvt.s32.f32 %v301
    %v304 = vmul.f32 %v285, %v291
    %v305 = vlaneseq
    %v306 = vshrl.u32 %v305, 7
    %v307 = vsub.s32 6, %v306
    %v308 = vrot.slane %v304, %v307
    %v309 = vmul.f32 %v302, %v308
    %v310 = vmul.f32 %v303, %v308
    %v311 = vadd.f32 %v283, %v309
    %v312 = vadd.f32 %v284, %v310
    %v313 = vmul.f32 %v220, %v222
    %vm314 = vmand %vm260, %vm286
    %vm315 = vmand %vm314, %vm288
    %v316 = vsel %vm315, 1, 0
    %v317 = vcvt.s32.f32 %v316
    %v318 = vadd.s32 %v292, %v225
    %v319 = vlaneseq
    %v320 = vshrl.u32 %v319, 7
    %v321 = vsub.s32 6, %v320
    %v322 = vrot.slane %v318, %v321
    %vm323 = vcmp.eq.s32.totalorder %v134, %v322
    %vm324 = vcmp.eq.s32.totalorder %v135, %v322
    %v325 = vsel %vm323, 1, 0
    %v326 = vsel %vm324, 1, 0
    %v327 = vcvt.s32.f32 %v325
    %v328 = vcvt.s32.f32 %v326
    %v329 = vmul.f32 %v313, %v317
    %v330 = vlaneseq
    %v331 = vshrl.u32 %v330, 7
    %v332 = vsub.s32 6, %v331
    %v333 = vrot.slane %v329, %v332
    %v334 = vmul.f32 %v327, %v333
    %v335 = vmul.f32 %v328, %v333
    %v336 = vadd.f32 %v311, %v334
    %v337 = vadd.f32 %v312, %v335
    %v339 = vrot.slane %v114, 3
    %v340 = vsel %vm122, %v339, 0
    %342 = vmatprep.subr.mxu0 0.0
    %343 = vmatpush1.msra.mxu0 0.0
    %344 = vmatprep.subr.mxu0 0.0
    %345 = vmatpush1.msra.mxu0 0.0
    %346 = vmatprep.subr.mxu0 0.0
    %347 = vmatpush1.msra.mxu0 0.0
    %348 = vmatprep.subr.mxu0 0.0
    %349 = vmatpush1.msra.mxu0 0.0
    %350 = vmatprep.subr.mxu0 0.0
    %351 = vmatpush1.msra.mxu0 0.0
    %352 = vmatprep.subr.mxu0 0.0
    %353 = vmatpush1.msra.mxu0 0.0
    %354 = vmatprep.subr.mxu0 0.0
    %355 = vmatpush1.msra.mxu0 0.0
    %356 = vmatprep.subr.mxu0 0.0
    %357 = vmatpush1.msra.mxu0 0.0
    %358 = vmatprep.subr.mxu0 0.0
    %359 = vmatpush1.msra.mxu0 0.0
    %360 = vmatprep.subr.mxu0 0.0
    %361 = vmatpush1.msra.mxu0 0.0
    %362 = vmatprep.subr.mxu0 0.0
    %363 = vmatpush1.msra.mxu0 0.0
    %364 = vmatprep.subr.mxu0 0.0
    %365 = vmatpush1.msra.mxu0 0.0
    %366 = vmatprep.subr.mxu0 0.0
    %367 = vmatpush1.msra.mxu0 0.0
    %368 = vmatprep.subr.mxu0 0.0
    %369 = vmatpush1.msra.mxu0 0.0
    %370 = vmatprep.subr.mxu0 0.0
    %371 = vmatpush1.msra.mxu0 %v337
    %372 = vmatprep.subr.mxu0 0.0
    %373 = vmatpush1.msra.mxu0 %v336
    %374 = vmatprep.subr.mxu0 0.0
    %375 = vmatpush2.msra.mxu0 0.0
    %376 = vmatprep.subr.mxu0 0.0
    %377 = vmatpush2.msra.mxu0 0.0
    %378 = vmatprep.subr.mxu0 0.0
    %379 = vmatpush2.msra.mxu0 0.0
    %380 = vmatprep.subr.mxu0 0.0
    %381 = vmatpush2.msra.mxu0 0.0
    %382 = vmatprep.subr.mxu0 0.0
    %383 = vmatpush2.msra.mxu0 0.0
    %384 = vmatprep.subr.mxu0 0.0
    %385 = vmatpush2.msra.mxu0 0.0
    %386 = vmatprep.subr.mxu0 0.0
    %387 = vmatpush2.msra.mxu0 0.0
    %388 = vmatprep.subr.mxu0 0.0
    %389 = vmatpush2.msra.mxu0 0.0
    %390 = vmatprep.subr.mxu0 0.0
    %391 = vmatpush2.msra.mxu0 0.0
    %392 = vmatprep.subr.mxu0 0.0
    %393 = vmatpush2.msra.mxu0 0.0
    %394 = vmatprep.subr.mxu0 0.0
    %395 = vmatpush2.msra.mxu0 0.0
    %396 = vmatprep.subr.mxu0 0.0
    %397 = vmatpush2.msra.mxu0 0.0
    %398 = vmatprep.subr.mxu0 0.0
    %399 = vmatpush2.msra.mxu0 0.0
    %400 = vmatprep.subr.mxu0 0.0
    %401 = vmatpush2.msra.mxu0 0.0
    %402 = vmatprep.subr.mxu0 0.0
    %403 = vmatpush2.msra.mxu0 0.0
    %404 = vmatprep.subr.mxu0 0.0
    %405 = vmatpush2.msra.mxu0 0.0
    %406 = vmatprep.mubr.f32.mxu0 0.0
    %407 = vmatmul.mubr.f32.gmra.mxu0 %v340
    %v408 = vpop.f32.mrf.mxu0
    %v409 = vadd.f32 0.0, %v408
    %v410 = vpop.f32.mrf.mxu0
    %411 = vdwg.mxu0
    %v412 = vsub.f32 %v114, %v409
    %v413 = vand.u32 2147483647, %v412
    %v414 = vrot.slane %v114, 1
    %v416 = vadd.f32 %v114, %v414
    %v418 = vrot.slane %v409, 1
    %v420 = vadd.f32 %v409, %v418
    %v422 = vrot.slane %v413, 1
    %v424 = vadd.f32 %v413, %v422
    %v425 = vrot.slane %v114, 2
    %v427 = vadd.f32 %v416, %v425
    %v428 = vrot.slane %v409, 2
    %v430 = vadd.f32 %v420, %v428
    %v431 = vrot.slane %v413, 2
    %v433 = vadd.f32 %v424, %v431
    %vm434 = vcmp.ne.f32.partialorder %v114, 0.0
    %vm435 = vcmp.gt.f32.partialorder %v427, 0.0
    %v436 = vsel %vm435, 1, 0
    %v437 = vrot.slane %v436, 1
    %vm438 = vcmp.ne.s32.totalorder %v437, 0
    %vm439 = vmand %vm434, %vm438
    %vm440 = vcmp.gt.f32.partialorder %v430, 0.0
    %v441 = vsel %vm440, 1, 0
    %v442 = vrot.slane %v441, 1
    %vm443 = vcmp.ne.s32.totalorder %v442, 0
    %vm444 = vmand %vm439, %vm443
    %v445 = vsel %vm444, 1, 0
    %v446 = vcvt.s32.f32 %v445
    %v448 = vrot.slane %v446, 7
    %v450 = vmul.f32 %v433, %v448
    %vm451 = vcmask 122880
    %v452 = vsel %vm451, %v450, 0.0
    %453 = vadd.xlane.f32.xlu0 %v452
    %v454 = vpop.xlane.xlu0 %453
    %v455 = vrot.slane %v454, 4
    %v456 = vadd.f32 %v454, %v455
    %v457 = vrot.slane %v456, 2
    %v458 = vadd.f32 %v456, %v457
    %v459 = vrot.slane %v458, 1
    %v460 = vadd.f32 %v458, %v459
    %s461 = vtos %v460
    %s462 = sadd.f32 %s461, 0.0
    %v463 = vsel %vm451, %v448, 0.0
    %464 = vadd.xlane.f32.xlu0 %v463
    %v465 = vpop.xlane.xlu0 %464
    %v466 = vrot.slane %v465, 4
    %v467 = vadd.f32 %v465, %v466
    %v468 = vrot.slane %v467, 2
    %v469 = vadd.f32 %v467, %v468
    %v470 = vrot.slane %v469, 1
    %v471 = vadd.f32 %v469, %v470
    %s472 = vtos %v471
    %s473 = sadd.f32 %s472, 0.0
    %vm474 = vcmask 124928
    %v475 = vsel %vm474, %v114, -inf
    %476 = vmax.xlane.f32.xlu0 %v475
    %v477 = vpop.xlane.xlu0 %476
    %v478 = vrot.slane %v477, 4
    %v479 = vmax.f32 %v477, %v478
    %v480 = vrot.slane %v479, 2
    %v481 = vmax.f32 %v479, %v480
    %v482 = vrot.slane %v481, 1
    %v483 = vmax.f32 %v481, %v482
    %s484 = vtos %v483
    %s485 = sld [smem:[#allocation2 + $0x12]]
    %s486 = sld [smem:[#allocation2 + $0x13]]
    %s487 = sld [smem:[#allocation2 + $0x14]]
    %s488 = sld [smem:[#allocation2 + $0x15]]
    %s489 = sld [smem:[#allocation2 + $0x16]]
    %s490 = sld [smem:[#allocation2 + $0x17]]
    %s491 = sld [smem:[#allocation2 + $0x18]]
    %s492 = sld [smem:[#allocation2 + $0x19]]
    %s493 = sld [smem:[#allocation2 + $0x1a]]
    %s494 = sld [smem:[#allocation2 + $0x1b]]
    %s495 = sld [smem:[#allocation2 + $0x1c]]
    %s496 = sld [smem:[#allocation2 + $0x1d]]
    %s497 = sld [smem:[#allocation2 + $0x1e]]
    %s498 = sld [smem:[#allocation2 + $0x1f]]
    %s499 = sld [smem:[#allocation2 + $0x20]]
    %s500 = sld [smem:[#allocation2 + $0x21]]
    %s501 = sld [smem:[#allocation2 + $0x22]]
    %s502 = sld [smem:[#allocation2 + $0x23]]
    %v503 = vstv %s487
    %v504 = vsub.f32 %v132, %v503
    %v505 = vmul.f32 %v119, %v504
    %v506 = vstv %s489
    %v507 = vmul.f32 %v505, %v506
    %v508 = vstv %s488
    %v509 = vsub.f32 %v130, %v508
    %v510 = vmul.f32 %v119, %v509
    %v511 = vstv %s490
    %v512 = vmul.f32 %v510, %v511
    %v513 = vstv %s491
    %v514 = vmul.f32 %v513, %v507
    %v515 = vstv %s492
    %v516 = vmul.f32 %v515, %v512
    %v517 = vadd.f32 %v514, %v516
    %v518 = vstv %s493
    %v519 = vmul.f32 %v518, %v119
    %v520 = vadd.f32 %v517, %v519
    %v521 = vstv %s500
    %v522 = vadd.f32 %v520, %v521
    %v523 = vstv %s494
    %v524 = vmul.f32 %v523, %v507
    %v525 = vstv %s495
    %v526 = vmul.f32 %v525, %v512
    %v527 = vadd.f32 %v524, %v526
    %v528 = vstv %s496
    %v529 = vmul.f32 %v528, %v119
    %v530 = vadd.f32 %v527, %v529
    %v531 = vstv %s501
    %v532 = vadd.f32 %v530, %v531
    %v533 = vstv %s497
    %v534 = vmul.f32 %v533, %v507
    %v535 = vstv %s498
    %v536 = vmul.f32 %v535, %v512
    %v537 = vadd.f32 %v534, %v536
    %v538 = vstv %s499
    %v539 = vmul.f32 %v538, %v119
    %v540 = vadd.f32 %v537, %v539
    %v541 = vstv %s502
    %v542 = vadd.f32 %v540, %v541
    %v543 = vmax.f32 %v542, 0.001
    %v544 = vrcp.pop %v543
    %v545 = vstv %s485
    %v546 = vmul.f32 %v545, %v522
    %v547 = vmul.f32 %v546, %v544
    %v548 = vadd.f32 %v547, %v503
    %v549 = vstv %s486
    %v550 = vmul.f32 %v549, %v532
    %v551 = vmul.f32 %v550, %v544
    %v552 = vadd.f32 %v551, %v508
    %v553 = vmul.f32 %v548, 2.0
    %v554 = vmul.f32 %v553, 0.33333334
    %v555 = vsub.f32 %v554, 1.0
    %v556 = vmul.f32 %v552, 2.0
    %v557 = vmul.f32 %v556, 0.33333334
    %v558 = vsub.f32 %v557, 1.0
    %v559 = vadd.f32 %v555, 1.0
    %v560 = vmul.f32 %v559, 1.5
    %v561 = vadd.f32 %v558, 1.0
    %v562 = vmul.f32 %v561, 1.5
    %v563 = vmax.f32 %v560, -2.0
    %v564 = vmin.f32 %v563, 5.0
    %v565 = vmax.f32 %v562, -2.0
    %v566 = vmin.f32 %v565, 5.0
    %v567 = vfloor.f32 %v564
    %v568 = vfloor.f32 %v566
    %v569 = vsub.f32 %v564, %v567
    %v570 = vsub.f32 1.0, %v569
    %v571 = vsub.f32 %v566, %v568
    %v572 = vsub.f32 1.0, %v571
    %v573 = vcvt.f32.s32.to.zero.pseudo %v567
    %v574 = vadd.s32 %v573, 1
    %v575 = vcvt.f32.s32.to.zero.pseudo %v568
    %v576 = vadd.s32 %v575, 1
    %v577 = vmul.f32 %v570, %v572
    %vm578 = vcmp.ge.s32.totalorder %v573, 0
    %vm579 = vcmp.le.s32.totalorder %v573, 3
    %vm580 = vmand %vm578, %vm579
    %vm581 = vcmp.ge.s32.totalorder %v575, 0
    %vm582 = vmand %vm580, %vm581
    %vm583 = vcmp.le.s32.totalorder %v575, 3
    %vm584 = vmand %vm582, %vm583
    %v585 = vsel %vm584, 1, 0
    %v586 = vcvt.s32.f32 %v585
    %v587 = vmul.u32 %v575, 4
    %v588 = vadd.s32 %v587, %v573
    %v589 = vlaneseq
    %v590 = vshrl.u32 %v589, 7
    %v591 = vsub.s32 6, %v590
    %v592 = vrot.slane %v588, %v591
    %vm593 = vcmp.eq.s32.totalorder %v134, %v592
    %vm594 = vcmp.eq.s32.totalorder %v135, %v592
    %v595 = vsel %vm593, 1, 0
    %v596 = vsel %vm594, 1, 0
    %v597 = vcvt.s32.f32 %v595
    %v598 = vcvt.s32.f32 %v596
    %v599 = vmul.f32 %v577, %v586
    %v600 = vlaneseq
    %v601 = vshrl.u32 %v600, 7
    %v602 = vsub.s32 6, %v601
    %v603 = vrot.slane %v599, %v602
    %v604 = vmul.f32 %v597, %v603
    %v605 = vmul.f32 %v598, %v603
    %v606 = vmul.f32 %v569, %v572
    %vm607 = vcmp.ge.s32.totalorder %v574, 0
    %vm608 = vcmp.le.s32.totalorder %v574, 3
    %vm609 = vmand %vm607, %vm608
    %vm610 = vmand %vm609, %vm581
    %vm611 = vmand %vm610, %vm583
    %v612 = vsel %vm611, 1, 0
    %v613 = vcvt.s32.f32 %v612
    %v614 = vadd.s32 %v587, %v574
    %v615 = vlaneseq
    %v616 = vshrl.u32 %v615, 7
    %v617 = vsub.s32 6, %v616
    %v618 = vrot.slane %v614, %v617
    %vm619 = vcmp.eq.s32.totalorder %v134, %v618
    %vm620 = vcmp.eq.s32.totalorder %v135, %v618
    %v621 = vsel %vm619, 1, 0
    %v622 = vsel %vm620, 1, 0
    %v623 = vcvt.s32.f32 %v621
    %v624 = vcvt.s32.f32 %v622
    %v625 = vmul.f32 %v606, %v613
    %v626 = vlaneseq
    %v627 = vshrl.u32 %v626, 7
    %v628 = vsub.s32 6, %v627
    %v629 = vrot.slane %v625, %v628
    %v630 = vmul.f32 %v623, %v629
    %v631 = vmul.f32 %v624, %v629
    %v632 = vadd.f32 %v604, %v630
    %v633 = vadd.f32 %v605, %v631
    %v634 = vmul.f32 %v570, %v571
    %vm635 = vcmp.ge.s32.totalorder %v576, 0
    %vm636 = vmand %vm580, %vm635
    %vm637 = vcmp.le.s32.totalorder %v576, 3
    %vm638 = vmand %vm636, %vm637
    %v639 = vsel %vm638, 1, 0
    %v640 = vcvt.s32.f32 %v639
    %v641 = vmul.u32 %v576, 4
    %v642 = vadd.s32 %v641, %v573
    %v643 = vlaneseq
    %v644 = vshrl.u32 %v643, 7
    %v645 = vsub.s32 6, %v644
    %v646 = vrot.slane %v642, %v645
    %vm647 = vcmp.eq.s32.totalorder %v134, %v646
    %vm648 = vcmp.eq.s32.totalorder %v135, %v646
    %v649 = vsel %vm647, 1, 0
    %v650 = vsel %vm648, 1, 0
    %v651 = vcvt.s32.f32 %v649
    %v652 = vcvt.s32.f32 %v650
    %v653 = vmul.f32 %v634, %v640
    %v654 = vlaneseq
    %v655 = vshrl.u32 %v654, 7
    %v656 = vsub.s32 6, %v655
    %v657 = vrot.slane %v653, %v656
    %v658 = vmul.f32 %v651, %v657
    %v659 = vmul.f32 %v652, %v657
    %v660 = vadd.f32 %v632, %v658
    %v661 = vadd.f32 %v633, %v659
    %v662 = vmul.f32 %v569, %v571
    %vm663 = vmand %vm609, %vm635
    %vm664 = vmand %vm663, %vm637
    %v665 = vsel %vm664, 1, 0
    %v666 = vcvt.s32.f32 %v665
    %v667 = vadd.s32 %v641, %v574
    %v668 = vlaneseq
    %v669 = vshrl.u32 %v668, 7
    %v670 = vsub.s32 6, %v669
    %v671 = vrot.slane %v667, %v670
    %vm672 = vcmp.eq.s32.totalorder %v134, %v671
    %vm673 = vcmp.eq.s32.totalorder %v135, %v671
    %v674 = vsel %vm672, 1, 0
    %v675 = vsel %vm673, 1, 0
    %v676 = vcvt.s32.f32 %v674
    %v677 = vcvt.s32.f32 %v675
    %v678 = vmul.f32 %v662, %v666
    %v679 = vlaneseq
    %v680 = vshrl.u32 %v679, 7
    %v681 = vsub.s32 6, %v680
    %v682 = vrot.slane %v678, %v681
    %v683 = vmul.f32 %v676, %v682
    %v684 = vmul.f32 %v677, %v682
    %v685 = vadd.f32 %v660, %v683
    %v686 = vadd.f32 %v661, %v684
    %v688 = vrot.slane %v119, 3
    %v689 = vsel %vm122, %v688, 0
    %691 = vmatprep.subr.mxu0 0.0
    %692 = vmatpush1.msra.mxu0 0.0
    %693 = vmatprep.subr.mxu0 0.0
    %694 = vmatpush1.msra.mxu0 0.0
    %695 = vmatprep.subr.mxu0 0.0
    %696 = vmatpush1.msra.mxu0 0.0
    %697 = vmatprep.subr.mxu0 0.0
    %698 = vmatpush1.msra.mxu0 0.0
    %699 = vmatprep.subr.mxu0 0.0
    %700 = vmatpush1.msra.mxu0 0.0
    %701 = vmatprep.subr.mxu0 0.0
    %702 = vmatpush1.msra.mxu0 0.0
    %703 = vmatprep.subr.mxu0 0.0
    %704 = vmatpush1.msra.mxu0 0.0
    %705 = vmatprep.subr.mxu0 0.0
    %706 = vmatpush1.msra.mxu0 0.0
    %707 = vmatprep.subr.mxu0 0.0
    %708 = vmatpush1.msra.mxu0 0.0
    %709 = vmatprep.subr.mxu0 0.0
    %710 = vmatpush1.msra.mxu0 0.0
    %711 = vmatprep.subr.mxu0 0.0
    %712 = vmatpush1.msra.mxu0 0.0
    %713 = vmatprep.subr.mxu0 0.0
    %714 = vmatpush1.msra.mxu0 0.0
    %715 = vmatprep.subr.mxu0 0.0
    %716 = vmatpush1.msra.mxu0 0.0
    %717 = vmatprep.subr.mxu0 0.0
    %718 = vmatpush1.msra.mxu0 0.0
    %719 = vmatprep.subr.mxu0 0.0
    %720 = vmatpush1.msra.mxu0 %v686
    %721 = vmatprep.subr.mxu0 0.0
    %722 = vmatpush1.msra.mxu0 %v685
    %723 = vmatprep.subr.mxu0 0.0
    %724 = vmatpush2.msra.mxu0 0.0
    %725 = vmatprep.subr.mxu0 0.0
    %726 = vmatpush2.msra.mxu0 0.0
    %727 = vmatprep.subr.mxu0 0.0
    %728 = vmatpush2.msra.mxu0 0.0
    %729 = vmatprep.subr.mxu0 0.0
    %730 = vmatpush2.msra.mxu0 0.0
    %731 = vmatprep.subr.mxu0 0.0
    %732 = vmatpush2.msra.mxu0 0.0
    %733 = vmatprep.subr.mxu0 0.0
    %734 = vmatpush2.msra.mxu0 0.0
    %735 = vmatprep.subr.mxu0 0.0
    %736 = vmatpush2.msra.mxu0 0.0
    %737 = vmatprep.subr.mxu0 0.0
    %738 = vmatpush2.msra.mxu0 0.0
    %739 = vmatprep.subr.mxu0 0.0
    %740 = vmatpush2.msra.mxu0 0.0
    %741 = vmatprep.subr.mxu0 0.0
    %742 = vmatpush2.msra.mxu0 0.0
    %743 = vmatprep.subr.mxu0 0.0
    %744 = vmatpush2.msra.mxu0 0.0
    %745 = vmatprep.subr.mxu0 0.0
    %746 = vmatpush2.msra.mxu0 0.0
    %747 = vmatprep.subr.mxu0 0.0
    %748 = vmatpush2.msra.mxu0 0.0
    %749 = vmatprep.subr.mxu0 0.0
    %750 = vmatpush2.msra.mxu0 0.0
    %751 = vmatprep.subr.mxu0 0.0
    %752 = vmatpush2.msra.mxu0 0.0
    %753 = vmatprep.subr.mxu0 0.0
    %754 = vmatpush2.msra.mxu0 0.0
    %755 = vmatprep.mubr.f32.mxu0 0.0
    %756 = vmatmul.mubr.f32.gmra.mxu0 %v689
    %v757 = vpop.f32.mrf.mxu0
    %v758 = vadd.f32 0.0, %v757
    %v759 = vpop.f32.mrf.mxu0
    %760 = vdwg.mxu0
    %v761 = vsub.f32 %v119, %v758
    %v762 = vand.u32 2147483647, %v761
    %v763 = vrot.slane %v119, 1
    %v765 = vadd.f32 %v119, %v763
    %v767 = vrot.slane %v758, 1
    %v769 = vadd.f32 %v758, %v767
    %v771 = vrot.slane %v762, 1
    %v773 = vadd.f32 %v762, %v771
    %v774 = vrot.slane %v119, 2
    %v776 = vadd.f32 %v765, %v774
    %v777 = vrot.slane %v758, 2
    %v779 = vadd.f32 %v769, %v777
    %v780 = vrot.slane %v762, 2
    %v782 = vadd.f32 %v773, %v780
    %vm783 = vcmp.ne.f32.partialorder %v119, 0.0
    %vm784 = vcmp.gt.f32.partialorder %v776, 0.0
    %v785 = vsel %vm784, 1, 0
    %v786 = vrot.slane %v785, 1
    %vm787 = vcmp.ne.s32.totalorder %v786, 0
    %vm788 = vmand %vm783, %vm787
    %vm789 = vcmp.gt.f32.partialorder %v779, 0.0
    %v790 = vsel %vm789, 1, 0
    %v791 = vrot.slane %v790, 1
    %vm792 = vcmp.ne.s32.totalorder %v791, 0
    %vm793 = vmand %vm788, %vm792
    %v794 = vsel %vm793, 1, 0
    %v795 = vcvt.s32.f32 %v794
    %v797 = vrot.slane %v795, 7
    %v799 = vmul.f32 %v782, %v797
    %v800 = vsel %vm451, %v799, 0.0
    %801 = vadd.xlane.f32.xlu0 %v800
    %v802 = vpop.xlane.xlu0 %801
    %v803 = vrot.slane %v802, 4
    %v804 = vadd.f32 %v802, %v803
    %v805 = vrot.slane %v804, 2
    %v806 = vadd.f32 %v804, %v805
    %v807 = vrot.slane %v806, 1
    %v808 = vadd.f32 %v806, %v807
    %s809 = vtos %v808
    %s810 = sadd.f32 %s462, %s809
    %v811 = vsel %vm451, %v797, 0.0
    %812 = vadd.xlane.f32.xlu0 %v811
    %v813 = vpop.xlane.xlu0 %812
    %v814 = vrot.slane %v813, 4
    %v815 = vadd.f32 %v813, %v814
    %v816 = vrot.slane %v815, 2
    %v817 = vadd.f32 %v815, %v816
    %v818 = vrot.slane %v817, 1
    %v819 = vadd.f32 %v817, %v818
    %s820 = vtos %v819
    %s821 = sadd.f32 %s473, %s820
    %v822 = vsel %vm474, %v119, -inf
    %823 = vmax.xlane.f32.xlu0 %v822
    %v824 = vpop.xlane.xlu0 %823
    %v825 = vrot.slane %v824, 4
    %v826 = vmax.f32 %v824, %v825
    %v827 = vrot.slane %v826, 2
    %v828 = vmax.f32 %v826, %v827
    %v829 = vrot.slane %v828, 1
    %v830 = vmax.f32 %v828, %v829
    %s831 = vtos %v830
    %s832 = smax.f32 %s484, %s831
    %s833 = scalar_lea.smem [#allocation5], 0
    %834 = sst [smem:[%s833]] %s810
    %s835 = scalar_lea.smem [#allocation5], 1
    %836 = sst [smem:[%s835]] %s821
    %s837 = scalar_lea.smem [#allocation5], 2
    %838 = sst [smem:[%s837]] %s832
    // Predicated region
    $region18: #{multiscale_masked_photometric_loss.4} parent=1 // pred_check
      _
    $region19: #{multiscale_masked_photometric_loss.4} parent=1 // pred_check_branch
      %840 = sbr.rel (0) target = $region21
    $region20: #{multiscale_masked_photometric_loss.4} parent=1 // pred_region
      _
    $region21: #{multiscale_masked_photometric_loss.4} parent=1 // pred_fallthru
      _
    // Predicated region
    $region22: #{multiscale_masked_photometric_loss.4} parent=1 // pred_check
      _
    $region23: #{multiscale_masked_photometric_loss.4} parent=1 // pred_check_branch
      %842 = sbr.rel (0) target = $region25
    $region24: #{multiscale_masked_photometric_loss.4} parent=1 // pred_region
      %s844 = ssub.s32 16, 16
      %845 = vsyncadd [#allocation4], %s844
      %s847 = sshll.u32 %s4, 4
      %s848 = int_to_ptr.vmem [resolvable:$true] %s847
      %850 = dma.smem_to_vmem [#allocation5], 16, %s848, [#allocation4]
    $region25: #{multiscale_masked_photometric_loss.4} parent=1 // pred_fallthru
      _
    // Predicated region
    $region26: #{multiscale_masked_photometric_loss.4} parent=1 // pred_check
      _
    $region27: #{multiscale_masked_photometric_loss.4} parent=1 // pred_check_branch
      %852 = sbr.rel (0) target = $region29
    $region28: #{multiscale_masked_photometric_loss.4} parent=1 // pred_region
      _
    $region29: #{multiscale_masked_photometric_loss.4} parent=1 // pred_fallthru
      _
    // Predicated region
    $region30: #{multiscale_masked_photometric_loss.4} parent=1 // pred_check
      _
    $region31: #{multiscale_masked_photometric_loss.4} parent=1 // pred_check_branch
      %854 = sbr.rel (0) target = $region33
    $region32: #{multiscale_masked_photometric_loss.4} parent=1 // pred_region
      %855 = dma.done [#allocation4], 16
    $region33: #{multiscale_masked_photometric_loss.4} parent=1 // pred_fallthru
      _
    %856 = sfence
    %857 = vsyncpa [#allocation3], 1
    %858 = vsyncpa [#allocation4], 1

// kernel: multiscale_masked_photometric_loss.5
$region0: #{multiscale_masked_photometric_loss.5}
  #allocation0 [shape = 'u32[]', space=smem, size = 0x4, offset = 0x4, fixed_abs, tag = 'smem constant byte address 0x4 - core index']
  #allocation1 [shape = 'u32[144,128]{1,0:T(1,128)}', space=vmem, size = 0x12000, scoped, tag = 'internal scratch']
  %s0 = inlined_call_operand.vmem [shape: f32[36], index: 0, kind: input, shape index: {}]
  %s1 = inlined_call_operand.vmem [shape: f32[16,16], index: 1, kind: input, shape index: {}]
  %s2 = inlined_call_operand.vmem [shape: f32[16,4], index: 2, kind: input, shape index: {}]
  %s3 = inlined_call_operand.hbm [shape: f32[16,4], index: 3, kind: output, shape index: {0}]
  %s4 = inlined_call_operand.vmem [shape: f32[3], index: 4, kind: output, shape index: {1}]
  %5 = xla_tuple %s3, %s4
  %s6 = sld [smem:[#allocation0]]
  $region34: #{multiscale_masked_photometric_loss.5} parent=0
    _
  %s8 = ssub.s32 1, %s6
  %s9 = scalar_select 0, %s8, %s6
  $region1: #{multiscale_masked_photometric_loss.5} parent=0
    #allocation2 [shape = 'u8[512]{0}', space=smem, size = 0x200, scoped, tag = 'input window, operand 0, single buffered']
    #allocation3 [shape = 's32[1]{0}', space=sflag, size = 0x4, scoped, tag = 'scoped memory for multiscale_masked_photometric_loss.5']
    #allocation4 [shape = 's32[1]{0}', space=sflag, size = 0x4, scoped, tag = 'scoped memory for multiscale_masked_photometric_loss.5']
    #allocation5 [shape = 's32[1]{0}', space=sflag, size = 0x4, scoped, tag = 'scoped memory for multiscale_masked_photometric_loss.5']
    #allocation6 [shape = 'u8[8192]{0}', space=vmem, size = 0x2000, scoped, tag = 'output window, operand 0, single buffered']
    #allocation7 [shape = 'u8[512]{0}', space=smem, size = 0x200, scoped, tag = 'output window, operand 1, single buffered']
    %10 = vsyncpa [#allocation4], 0
    %11 = vsyncpa [#allocation3], 0
    %12 = vsyncpa [#allocation5], 0
    // Predicated region
    $region2: #{multiscale_masked_photometric_loss.5} parent=1 // pred_check
      _
    $region3: #{multiscale_masked_photometric_loss.5} parent=1 // pred_check_branch
      %14 = sbr.rel (0) target = $region5
    $region4: #{multiscale_masked_photometric_loss.5} parent=1 // pred_region
      %s16 = ssub.s32 16, 16
      %17 = vsyncadd [#allocation4], %s16
      %s19 = sshll.u32 %s0, 4
      %s20 = int_to_ptr.vmem [resolvable:$true] %s19
      %22 = dma.vmem_to_smem %s20, 16, [#allocation2], [#allocation4]
    $region5: #{multiscale_masked_photometric_loss.5} parent=1 // pred_fallthru
      _
    // Predicated region
    $region6: #{multiscale_masked_photometric_loss.5} parent=1 // pred_check
      _
    $region7: #{multiscale_masked_photometric_loss.5} parent=1 // pred_check_branch
      %24 = sbr.rel (0) target = $region9
    $region8: #{multiscale_masked_photometric_loss.5} parent=1 // pred_region
      _
    $region9: #{multiscale_masked_photometric_loss.5} parent=1 // pred_fallthru
      _
    // Predicated region
    $region10: #{multiscale_masked_photometric_loss.5} parent=1 // pred_check
      _
    $region11: #{multiscale_masked_photometric_loss.5} parent=1 // pred_check_branch
      %26 = sbr.rel (0) target = $region13
    $region12: #{multiscale_masked_photometric_loss.5} parent=1 // pred_region
      _
    $region13: #{multiscale_masked_photometric_loss.5} parent=1 // pred_fallthru
      _
    // Predicated region
    $region14: #{multiscale_masked_photometric_loss.5} parent=1 // pred_check
      _
    $region15: #{multiscale_masked_photometric_loss.5} parent=1 // pred_check_branch
      %28 = sbr.rel (0) target = $region17
    $region16: #{multiscale_masked_photometric_loss.5} parent=1 // pred_region
      %29 = dma.done [#allocation4], 16
    $region17: #{multiscale_masked_photometric_loss.5} parent=1 // pred_fallthru
      _
    %30 = sfence
    %v31 = vld [vmem:[%s1] sm:$0xff]
    %v32 = vld [vmem:[%s1 + $0x8] sm:$0xff]
    %v33 = vld [vmem:[%s2] sm:$0xff]
    %v34 = vld [vmem:[%s2 + $0x8] sm:$0xff]
    %vm35 = vcmask 130048
    %v37 = vsel %vm35, %v31, 0
    %v40 = vsel %vm35, %v32, 0
    %42 = vmatprep.subr.mxu0 0.0
    %43 = vmatpush1.msra.mxu0 0.0
    %44 = vmatprep.subr.mxu0 0.0
    %45 = vmatpush1.msra.mxu0 0.0
    %46 = vmatprep.subr.mxu0 0.0
    %47 = vmatpush1.msra.mxu0 0.0
    %48 = vmatprep.subr.mxu0 0.0
    %49 = vmatpush1.msra.mxu0 0.0
    %50 = vmatprep.subr.mxu0 0.0
    %51 = vmatpush1.msra.mxu0 0.0
    %52 = vmatprep.subr.mxu0 0.0
    %53 = vmatpush1.msra.mxu0 0.0
    %54 = vmatprep.subr.mxu0 0.0
    %55 = vmatpush1.msra.mxu0 0.0
    %56 = vmatprep.subr.mxu0 0.0
    %57 = vmatpush1.msra.mxu0 0.0
    %58 = vmatprep.subr.mxu0 0.0
    %59 = vmatpush1.msra.mxu0 0.0
    %60 = vmatprep.subr.mxu0 0.0
    %61 = vmatpush1.msra.mxu0 0.0
    %62 = vmatprep.subr.mxu0 0.0
    %63 = vmatpush1.msra.mxu0 0.0
    %64 = vmatprep.subr.mxu0 0.0
    %65 = vmatpush1.msra.mxu0 0.0
    %66 = vmatprep.subr.mxu0 0.0
    %67 = vmatpush1.msra.mxu0 0.0
    %68 = vmatprep.subr.mxu0 0.0
    %69 = vmatpush1.msra.mxu0 0.0
    %70 = vmatprep.subr.mxu0 0.0
    %71 = vmatpush1.msra.mxu0 %v34
    %72 = vmatprep.subr.mxu0 0.0
    %73 = vmatpush1.msra.mxu0 %v33
    %74 = vmatprep.subr.mxu0 0.0
    %75 = vmatpush2.msra.mxu0 0.0
    %76 = vmatprep.subr.mxu0 0.0
    %77 = vmatpush2.msra.mxu0 0.0
    %78 = vmatprep.subr.mxu0 0.0
    %79 = vmatpush2.msra.mxu0 0.0
    %80 = vmatprep.subr.mxu0 0.0
    %81 = vmatpush2.msra.mxu0 0.0
    %82 = vmatprep.subr.mxu0 0.0
    %83 = vmatpush2.msra.mxu0 0.0
    %84 = vmatprep.subr.mxu0 0.0
    %85 = vmatpush2.msra.mxu0 0.0
    %86 = vmatprep.subr.mxu0 0.0
    %87 = vmatpush2.msra.mxu0 0.0
    %88 = vmatprep.subr.mxu0 0.0
    %89 = vmatpush2.msra.mxu0 0.0
    %90 = vmatprep.subr.mxu0 0.0
    %91 = vmatpush2.msra.mxu0 0.0
    %92 = vmatprep.subr.mxu0 0.0
    %93 = vmatpush2.msra.mxu0 0.0
    %94 = vmatprep.subr.mxu0 0.0
    %95 = vmatpush2.msra.mxu0 0.0
    %96 = vmatprep.subr.mxu0 0.0
    %97 = vmatpush2.msra.mxu0 0.0
    %98 = vmatprep.subr.mxu0 0.0
    %99 = vmatpush2.msra.mxu0 0.0
    %100 = vmatprep.subr.mxu0 0.0
    %101 = vmatpush2.msra.mxu0 0.0
    %102 = vmatprep.subr.mxu0 0.0
    %103 = vmatpush2.msra.mxu0 0.0
    %104 = vmatprep.subr.mxu0 0.0
    %105 = vmatpush2.msra.mxu0 0.0
    %106 = vmatprep.mubr.f32.mxu0 0.0
    %107 = vmatmul.mubr.f32.gmra.mxu0 %v37
    %v108 = vpop.f32.mrf.mxu0
    %v109 = vadd.f32 0.0, %v108
    %v110 = vpop.f32.mrf.mxu0
    %111 = vmatprep.mubr.f32.mxu0 0.0
    %112 = vmatmul.mubr.f32.gmra.mxu0 %v40
    %v113 = vpop.f32.mrf.mxu0
    %v114 = vadd.f32 0.0, %v113
    %v115 = vpop.f32.mrf.mxu0
    %116 = vdwg.mxu0
    %vm117 = vcmask 31744
    %118 = vst.msk [vmem:[#allocation6] sm:$0xff] %vm117, %v109
    %119 = vst.msk [vmem:[#allocation6 + $0x8] sm:$0xff] %vm117, %v114
    %v120 = vlaneseq
    %v121 = vand.u32 %v120, 127
    %v122 = vcvt.s32.f32 %v121
    %v123 = vadd.f32 %v122, 0.5
    %v124 = vmul.f32 %v123, 0.5
    %v125 = vfloor.f32 %v124
    %v126 = vmul.f32 %v125, 2.0
    %v127 = vsub.f32 %v122, %v126
    %v128 = vlaneseq
    %v129 = vshrl.u32 %v128, 7
    %s130 = sld [smem:[#allocation2]]
    %s131 = sld [smem:[#allocation2 + $0x1]]
    %s132 = sld [smem:[#allocation2 + $0x2]]
    %s133 = sld [smem:[#allocation2 + $0x3]]
    %s134 = sld [smem:[#allocation2 + $0x4]]
    %s135 = sld [smem:[#allocation2 + $0x5]]
    %s136 = sld [smem:[#allocation2 + $0x6]]
    %s137 = sld [smem:[#allocation2 + $0x7]]
    %s138 = sld [smem:[#allocation2 + $0x8]]
    %s139 = sld [smem:[#allocation2 + $0x9]]
    %s140 = sld [smem:[#allocation2 + $0xa]]
    %s141 = sld [smem:[#allocation2 + $0xb]]
    %s142 = sld [smem:[#allocation2 + $0xc]]
    %s143 = sld [smem:[#allocation2 + $0xd]]
    %s144 = sld [smem:[#allocation2 + $0xe]]
    %s145 = sld [smem:[#allocation2 + $0xf]]
    %s146 = sld [smem:[#allocation2 + $0x10]]
    %s147 = sld [smem:[#allocation2 + $0x11]]
    %v148 = vstv %s132
    %v149 = vsub.f32 %v127, %v148
    %v150 = vmul.f32 %v109, %v149
    %v151 = vstv %s134
    %v152 = vmul.f32 %v150, %v151
    %v153 = vstv %s133
    %v154 = vsub.f32 %v125, %v153
    %v155 = vmul.f32 %v109, %v154
    %v156 = vstv %s135
    %v157 = vmul.f32 %v155, %v156
    %v158 = vstv %s136
    %v159 = vmul.f32 %v158, %v152
    %v160 = vstv %s137
    %v161 = vmul.f32 %v160, %v157
    %v162 = vadd.f32 %v159, %v161
    %v163 = vstv %s138
    %v164 = vmul.f32 %v163, %v109
    %v165 = vadd.f32 %v162, %v164
    %v166 = vstv %s145
    %v167 = vadd.f32 %v165, %v166
    %v168 = vstv %s139
    %v169 = vmul.f32 %v168, %v152
    %v170 = vstv %s140
    %v171 = vmul.f32 %v170, %v157
    %v172 = vadd.f32 %v169, %v171
    %v173 = vstv %s141
    %v174 = vmul.f32 %v173, %v109
    %v175 = vadd.f32 %v172, %v174
    %v176 = vstv %s146
    %v177 = vadd.f32 %v175, %v176
    %v178 = vstv %s142
    %v179 = vmul.f32 %v178, %v152
    %v180 = vstv %s143
    %v181 = vmul.f32 %v180, %v157
    %v182 = vadd.f32 %v179, %v181
    %v183 = vstv %s144
    %v184 = vmul.f32 %v183, %v109
    %v185 = vadd.f32 %v182, %v184
    %v186 = vstv %s147
    %v187 = vadd.f32 %v185, %v186
    %v188 = vmax.f32 %v187, 0.001
    %v189 = vrcp.pop %v188
    %v190 = vstv %s130
    %v191 = vmul.f32 %v190, %v167
    %v192 = vmul.f32 %v191, %v189
    %v193 = vadd.f32 %v192, %v148
    %v194 = vstv %s131
    %v195 = vmul.f32 %v194, %v177
    %v196 = vmul.f32 %v195, %v189
    %v197 = vadd.f32 %v196, %v153
    %v198 = vmul.f32 %v193, 2.0
    %v199 = vsub.f32 %v198, 1.0
    %v200 = vmul.f32 %v197, 2.0
    %v201 = vsub.f32 %v200, 1.0
    %v202 = vadd.f32 %v199, 1.0
    %v203 = vmul.f32 %v202, 0.5
    %v204 = vadd.f32 %v201, 1.0
    %v205 = vmul.f32 %v204, 0.5
    %v206 = vmax.f32 %v203, -2.0
    %v207 = vmin.f32 %v206, 3.0
    %v208 = vmax.f32 %v205, -2.0
    %v209 = vmin.f32 %v208, 3.0
    %v210 = vfloor.f32 %v207
    %v211 = vfloor.f32 %v209
    %v212 = vsub.f32 %v207, %v210
    %v213 = vsub.f32 1.0, %v212
    %v214 = vsub.f32 %v209, %v211
    %v215 = vsub.f32 1.0, %v214
    %v216 = vcvt.f32.s32.to.zero.pseudo %v210
    %v217 = vadd.s32 %v216, 1
    %v218 = vcvt.f32.s32.to.zero.pseudo %v211
    %v219 = vadd.s32 %v218, 1
    %v220 = vmul.f32 %v213, %v215
    %vm221 = vcmp.ge.s32.totalorder %v216, 0
    %vm222 = vcmp.le.s32.totalorder %v216, 1
    %vm223 = vmand %vm221, %vm222
    %vm224 = vcmp.ge.s32.totalorder %v218, 0
    %vm225 = vmand %vm223, %vm224
    %vm226 = vcmp.le.s32.totalorder %v218, 1
    %vm227 = vmand %vm225, %vm226
    %v228 = vsel %vm227, 1, 0
    %v229 = vcvt.s32.f32 %v228
    %v230 = vmul.u32 %v218, 2
    %v231 = vadd.s32 %v230, %v216
    %v232 = vlaneseq
    %v233 = vshrl.u32 %v232, 7
    %v234 = vsub.s32 6, %v233
    %v235 = vrot.slane %v231, %v234
    %vm236 = vcmp.eq.s32.totalorder %v129, %v235
    %v237 = vsel %vm236, 1, 0
    %v238 = vcvt.s32.f32 %v237
    %v239 = vmul.f32 %v220, %v229
    %v240 = vlaneseq
    %v241 = vshrl.u32 %v240, 7
    %v242 = vsub.s32 6, %v241
    %v243 = vrot.slane %v239, %v242
    %v244 = vmul.f32 %v238, %v243
    %v245 = vmul.f32 %v212, %v215
    %vm246 = vcmp.ge.s32.totalorder %v217, 0
    %vm247 = vcmp.le.s32.totalorder %v217, 1
    %vm248 = vmand %vm246, %vm247
    %vm249 = vmand %vm248, %vm224
    %vm250 = vmand %vm249, %vm226
    %v251 = vsel %vm250, 1, 0
    %v252 = vcvt.s32.f32 %v251
    %v253 = vadd.s32 %v230, %v217
    %v254 = vlaneseq
    %v255 = vshrl.u32 %v254, 7
    %v256 = vsub.s32 6, %v255
    %v257 = vrot.slane %v253, %v256
    %vm258 = vcmp.eq.s32.totalorder %v129, %v257
    %v259 = vsel %vm258, 1, 0
    %v260 = vcvt.s32.f32 %v259
    %v261 = vmul.f32 %v245, %v252
    %v262 = vlaneseq
    %v263 = vshrl.u32 %v262, 7
    %v264 = vsub.s32 6, %v263
    %v265 = vrot.slane %v261, %v264
    %v266 = vmul.f32 %v260, %v265
    %v267 = vadd.f32 %v244, %v266
    %v268 = vmul.f32 %v213, %v214
    %vm269 = vcmp.ge.s32.totalorder %v219, 0
    %vm270 = vmand %vm223, %vm269
    %vm271 = vcmp.le.s32.totalorder %v219, 1
    %vm272 = vmand %vm270, %vm271
    %v273 = vsel %vm272, 1, 0
    %v274 = vcvt.s32.f32 %v273
    %v275 = vmul.u32 %v219, 2
    %v276 = vadd.s32 %v275, %v216
    %v277 = vlaneseq
    %v278 = vshrl.u32 %v277, 7
    %v279 = vsub.s32 6, %v278
    %v280 = vrot.slane %v276, %v279
    %vm281 = vcmp.eq.s32.totalorder %v129, %v280
    %v282 = vsel %vm281, 1, 0
    %v283 = vcvt.s32.f32 %v282
    %v284 = vmul.f32 %v268, %v274
    %v285 = vlaneseq
    %v286 = vshrl.u32 %v285, 7
    %v287 = vsub.s32 6, %v286
    %v288 = vrot.slane %v284, %v287
    %v289 = vmul.f32 %v283, %v288
    %v290 = vadd.f32 %v267, %v289
    %v291 = vmul.f32 %v212, %v214
    %vm292 = vmand %vm248, %vm269
    %vm293 = vmand %vm292, %vm271
    %v294 = vsel %vm293, 1, 0
    %v295 = vcvt.s32.f32 %v294
    %v296 = vadd.s32 %v275, %v217
    %v297 = vlaneseq
    %v298 = vshrl.u32 %v297, 7
    %v299 = vsub.s32 6, %v298
    %v300 = vrot.slane %v296, %v299
    %vm301 = vcmp.eq.s32.totalorder %v129, %v300
    %v302 = vsel %vm301, 1, 0
    %v303 = vcvt.s32.f32 %v302
    %v304 = vmul.f32 %v291, %v295
    %v305 = vlaneseq
    %v306 = vshrl.u32 %v305, 7
    %v307 = vsub.s32 6, %v306
    %v308 = vrot.slane %v304, %v307
    %v309 = vmul.f32 %v303, %v308
    %v310 = vadd.f32 %v290, %v309
    %v312 = vrot.slane %v109, 3
    %v313 = vsel %vm117, %v312, 0
    %vm315 = vcmask 1043456
    %v317 = vsel %vm315, %v310, 0
    %319 = vmatprep.subr.mxu0 0.0
    %320 = vmatpush1.msra.mxu0 0.0
    %321 = vmatprep.subr.mxu0 0.0
    %322 = vmatpush1.msra.mxu0 0.0
    %323 = vmatprep.subr.mxu0 0.0
    %324 = vmatpush1.msra.mxu0 0.0
    %325 = vmatprep.subr.mxu0 0.0
    %326 = vmatpush1.msra.mxu0 0.0
    %327 = vmatprep.subr.mxu0 0.0
    %328 = vmatpush1.msra.mxu0 0.0
    %329 = vmatprep.subr.mxu0 0.0
    %330 = vmatpush1.msra.mxu0 0.0
    %331 = vmatprep.subr.mxu0 0.0
    %332 = vmatpush1.msra.mxu0 0.0
    %333 = vmatprep.subr.mxu0 0.0
    %334 = vmatpush1.msra.mxu0 0.0
    %335 = vmatprep.subr.mxu0 0.0
    %336 = vmatpush1.msra.mxu0 0.0
    %337 = vmatprep.subr.mxu0 0.0
    %338 = vmatpush1.msra.mxu0 0.0
    %339 = vmatprep.subr.mxu0 0.0
    %340 = vmatpush1.msra.mxu0 0.0
    %341 = vmatprep.subr.mxu0 0.0
    %342 = vmatpush1.msra.mxu0 0.0
    %343 = vmatprep.subr.mxu0 0.0
    %344 = vmatpush1.msra.mxu0 0.0
    %345 = vmatprep.subr.mxu0 0.0
    %346 = vmatpush1.msra.mxu0 0.0
    %347 = vmatprep.subr.mxu0 0.0
    %348 = vmatpush1.msra.mxu0 0.0
    %349 = vmatprep.subr.mxu0 0.0
    %350 = vmatpush1.msra.mxu0 %v317
    %351 = vmatprep.subr.mxu0 0.0
    %352 = vmatpush2.msra.mxu0 0.0
    %353 = vmatprep.subr.mxu0 0.0
    %354 = vmatpush2.msra.mxu0 0.0
    %355 = vmatprep.subr.mxu0 0.0
    %356 = vmatpush2.msra.mxu0 0.0
    %357 = vmatprep.subr.mxu0 0.0
    %358 = vmatpush2.msra.mxu0 0.0
    %359 = vmatprep.subr.mxu0 0.0
    %360 = vmatpush2.msra.mxu0 0.0
    %361 = vmatprep.subr.mxu0 0.0
    %362 = vmatpush2.msra.mxu0 0.0
    %363 = vmatprep.subr.mxu0 0.0
    %364 = vmatpush2.msra.mxu0 0.0
    %365 = vmatprep.subr.mxu0 0.0
    %366 = vmatpush2.msra.mxu0 0.0
    %367 = vmatprep.subr.mxu0 0.0
    %368 = vmatpush2.msra.mxu0 0.0
    %369 = vmatprep.subr.mxu0 0.0
    %370 = vmatpush2.msra.mxu0 0.0
    %371 = vmatprep.subr.mxu0 0.0
    %372 = vmatpush2.msra.mxu0 0.0
    %373 = vmatprep.subr.mxu0 0.0
    %374 = vmatpush2.msra.mxu0 0.0
    %375 = vmatprep.subr.mxu0 0.0
    %376 = vmatpush2.msra.mxu0 0.0
    %377 = vmatprep.subr.mxu0 0.0
    %378 = vmatpush2.msra.mxu0 0.0
    %379 = vmatprep.subr.mxu0 0.0
    %380 = vmatpush2.msra.mxu0 0.0
    %381 = vmatprep.subr.mxu0 0.0
    %382 = vmatpush2.msra.mxu0 0.0
    %383 = vmatprep.mubr.f32.mxu0 0.0
    %384 = vmatmul.mubr.f32.gmra.mxu0 %v313
    %v385 = vpop.f32.mrf.mxu0
    %v386 = vadd.f32 0.0, %v385
    %v387 = vpop.f32.mrf.mxu0
    %388 = vdwg.mxu0
    %v389 = vsub.f32 %v109, %v386
    %v390 = vand.u32 2147483647, %v389
    %v391 = vrot.slane %v109, 1
    %v393 = vadd.f32 %v109, %v391
    %v395 = vrot.slane %v386, 1
    %v397 = vadd.f32 %v386, %v395
    %v399 = vrot.slane %v390, 1
    %v401 = vadd.f32 %v390, %v399
    %v402 = vrot.slane %v109, 2
    %v404 = vadd.f32 %v393, %v402
    %v405 = vrot.slane %v386, 2
    %v407 = vadd.f32 %v397, %v405
    %v408 = vrot.slane %v390, 2
    %v410 = vadd.f32 %v401, %v408
    %vm411 = vcmp.ne.f32.partialorder %v109, 0.0
    %vm412 = vcmp.gt.f32.partialorder %v404, 0.0
    %v413 = vsel %vm412, 1, 0
    %v414 = vrot.slane %v413, 1
    %vm415 = vcmp.ne.s32.totalorder %v414, 0
    %vm416 = vmand %vm411, %vm415
    %vm417 = vcmp.gt.f32.partialorder %v407, 0.0
    %v418 = vsel %vm417, 1, 0
    %v419 = vrot.slane %v418, 1
    %vm420 = vcmp.ne.s32.totalorder %v419, 0
    %vm421 = vmand %vm416, %vm420
    %v422 = vsel %vm421, 1, 0
    %v423 = vcvt.s32.f32 %v422
    %v425 = vrot.slane %v423, 7
    %v427 = vmul.f32 %v410, %v425
    %vm428 = vcmask 24576
    %v429 = vsel %vm428, %v427, 0.0
    %430 = vadd.xlane.f32.xlu0 %v429
    %v431 = vpop.xlane.xlu0 %430
    %v432 = vrot.slane %v431, 4
    %v433 = vadd.f32 %v431, %v432
    %v434 = vrot.slane %v433, 2
    %v435 = vadd.f32 %v433, %v434
    %v436 = vrot.slane %v435, 1
    %v437 = vadd.f32 %v435, %v436
    %s438 = vtos %v437
    %s439 = sadd.f32 %s438, 0.0
    %v440 = vsel %vm428, %v425, 0.0
    %441 = vadd.xlane.f32.xlu0 %v440
    %v442 = vpop.xlane.xlu0 %441
    %v443 = vrot.slane %v442, 4
    %v444 = vadd.f32 %v442, %v443
    %v445 = vrot.slane %v444, 2
    %v446 = vadd.f32 %v444, %v445
    %v447 = vrot.slane %v446, 1
    %v448 = vadd.f32 %v446, %v447
    %s449 = vtos %v448
    %s450 = sadd.f32 %s449, 0.0
    %vm451 = vcmask 26624
    %v452 = vsel %vm451, %v109, -inf
    %453 = vmax.xlane.f32.xlu0 %v452
    %v454 = vpop.xlane.xlu0 %453
    %v455 = vrot.slane %v454, 4
    %v456 = vmax.f32 %v454, %v455
    %v457 = vrot.slane %v456, 2
    %v458 = vmax.f32 %v456, %v457
    %v459 = vrot.slane %v458, 1
    %v460 = vmax.f32 %v458, %v459
    %s461 = vtos %v460
    %s462 = sld [smem:[#allocation2 + $0x12]]
    %s463 = sld [smem:[#allocation2 + $0x13]]
    %s464 = sld [smem:[#allocation2 + $0x14]]
    %s465 = sld [smem:[#allocation2 + $0x15]]
    %s466 = sld [smem:[#allocation2 + $0x16]]
    %s467 = sld [smem:[#allocation2 + $0x17]]
    %s468 = sld [smem:[#allocation2 + $0x18]]
    %s469 = sld [smem:[#allocation2 + $0x19]]
    %s470 = sld [smem:[#allocation2 + $0x1a]]
    %s471 = sld [smem:[#allocation2 + $0x1b]]
    %s472 = sld [smem:[#allocation2 + $0x1c]]
    %s473 = sld [smem:[#allocation2 + $0x1d]]
    %s474 = sld [smem:[#allocation2 + $0x1e]]
    %s475 = sld [smem:[#allocation2 + $0x1f]]
    %s476 = sld [smem:[#allocation2 + $0x20]]
    %s477 = sld [smem:[#allocation2 + $0x21]]
    %s478 = sld [smem:[#allocation2 + $0x22]]
    %s479 = sld [smem:[#allocation2 + $0x23]]
    %v480 = vstv %s464
    %v481 = vsub.f32 %v127, %v480
    %v482 = vmul.f32 %v114, %v481
    %v483 = vstv %s466
    %v484 = vmul.f32 %v482, %v483
    %v485 = vstv %s465
    %v486 = vsub.f32 %v125, %v485
    %v487 = vmul.f32 %v114, %v486
    %v488 = vstv %s467
    %v489 = vmul.f32 %v487, %v488
    %v490 = vstv %s468
    %v491 = vmul.f32 %v490, %v484
    %v492 = vstv %s469
    %v493 = vmul.f32 %v492, %v489
    %v494 = vadd.f32 %v491, %v493
    %v495 = vstv %s470
    %v496 = vmul.f32 %v495, %v114
    %v497 = vadd.f32 %v494, %v496
    %v498 = vstv %s477
    %v499 = vadd.f32 %v497, %v498
    %v500 = vstv %s471
    %v501 = vmul.f32 %v500, %v484
    %v502 = vstv %s472
    %v503 = vmul.f32 %v502, %v489
    %v504 = vadd.f32 %v501, %v503
    %v505 = vstv %s473
    %v506 = vmul.f32 %v505, %v114
    %v507 = vadd.f32 %v504, %v506
    %v508 = vstv %s478
    %v509 = vadd.f32 %v507, %v508
    %v510 = vstv %s474
    %v511 = vmul.f32 %v510, %v484
    %v512 = vstv %s475
    %v513 = vmul.f32 %v512, %v489
    %v514 = vadd.f32 %v511, %v513
    %v515 = vstv %s476
    %v516 = vmul.f32 %v515, %v114
    %v517 = vadd.f32 %v514, %v516
    %v518 = vstv %s479
    %v519 = vadd.f32 %v517, %v518
    %v520 = vmax.f32 %v519, 0.001
    %v521 = vrcp.pop %v520
    %v522 = vstv %s462
    %v523 = vmul.f32 %v522, %v499
    %v524 = vmul.f32 %v523, %v521
    %v525 = vadd.f32 %v524, %v480
    %v526 = vstv %s463
    %v527 = vmul.f32 %v526, %v509
    %v528 = vmul.f32 %v527, %v521
    %v529 = vadd.f32 %v528, %v485
    %v530 = vmul.f32 %v525, 2.0
    %v531 = vsub.f32 %v530, 1.0
    %v532 = vmul.f32 %v529, 2.0
    %v533 = vsub.f32 %v532, 1.0
    %v534 = vadd.f32 %v531, 1.0
    %v535 = vmul.f32 %v534, 0.5
    %v536 = vadd.f32 %v533, 1.0
    %v537 = vmul.f32 %v536, 0.5
    %v538 = vmax.f32 %v535, -2.0
    %v539 = vmin.f32 %v538, 3.0
    %v540 = vmax.f32 %v537, -2.0
    %v541 = vmin.f32 %v540, 3.0
    %v542 = vfloor.f32 %v539
    %v543 = vfloor.f32 %v541
    %v544 = vsub.f32 %v539, %v542
    %v545 = vsub.f32 1.0, %v544
    %v546 = vsub.f32 %v541, %v543
    %v547 = vsub.f32 1.0, %v546
    %v548 = vcvt.f32.s32.to.zero.pseudo %v542
    %v549 = vadd.s32 %v548, 1
    %v550 = vcvt.f32.s32.to.zero.pseudo %v543
    %v551 = vadd.s32 %v550, 1
    %v552 = vmul.f32 %v545, %v547
    %vm553 = vcmp.ge.s32.totalorder %v548, 0
    %vm554 = vcmp.le.s32.totalorder %v548, 1
    %vm555 = vmand %vm553, %vm554
    %vm556 = vcmp.ge.s32.totalorder %v550, 0
    %vm557 = vmand %vm555, %vm556
    %vm558 = vcmp.le.s32.totalorder %v550, 1
    %vm559 = vmand %vm557, %vm558
    %v560 = vsel %vm559, 1, 0
    %v561 = vcvt.s32.f32 %v560
    %v562 = vmul.u32 %v550, 2
    %v563 = vadd.s32 %v562, %v548
    %v564 = vlaneseq
    %v565 = vshrl.u32 %v564, 7
    %v566 = vsub.s32 6, %v565
    %v567 = vrot.slane %v563, %v566
    %vm568 = vcmp.eq.s32.totalorder %v129, %v567
    %v569 = vsel %vm568, 1, 0
    %v570 = vcvt.s32.f32 %v569
    %v571 = vmul.f32 %v552, %v561
    %v572 = vlaneseq
    %v573 = vshrl.u32 %v572, 7
    %v574 = vsub.s32 6, %v573
    %v575 = vrot.slane %v571, %v574
    %v576 = vmul.f32 %v570, %v575
    %v577 = vmul.f32 %v544, %v547
    %vm578 = vcmp.ge.s32.totalorder %v549, 0
    %vm579 = vcmp.le.s32.totalorder %v549, 1
    %vm580 = vmand %vm578, %vm579
    %vm581 = vmand %vm580, %vm556
    %vm582 = vmand %vm581, %vm558
    %v583 = vsel %vm582, 1, 0
    %v584 = vcvt.s32.f32 %v583
    %v585 = vadd.s32 %v562, %v549
    %v586 = vlaneseq
    %v587 = vshrl.u32 %v586, 7
    %v588 = vsub.s32 6, %v587
    %v589 = vrot.slane %v585, %v588
    %vm590 = vcmp.eq.s32.totalorder %v129, %v589
    %v591 = vsel %vm590, 1, 0
    %v592 = vcvt.s32.f32 %v591
    %v593 = vmul.f32 %v577, %v584
    %v594 = vlaneseq
    %v595 = vshrl.u32 %v594, 7
    %v596 = vsub.s32 6, %v595
    %v597 = vrot.slane %v593, %v596
    %v598 = vmul.f32 %v592, %v597
    %v599 = vadd.f32 %v576, %v598
    %v600 = vmul.f32 %v545, %v546
    %vm601 = vcmp.ge.s32.totalorder %v551, 0
    %vm602 = vmand %vm555, %vm601
    %vm603 = vcmp.le.s32.totalorder %v551, 1
    %vm604 = vmand %vm602, %vm603
    %v605 = vsel %vm604, 1, 0
    %v606 = vcvt.s32.f32 %v605
    %v607 = vmul.u32 %v551, 2
    %v608 = vadd.s32 %v607, %v548
    %v609 = vlaneseq
    %v610 = vshrl.u32 %v609, 7
    %v611 = vsub.s32 6, %v610
    %v612 = vrot.slane %v608, %v611
    %vm613 = vcmp.eq.s32.totalorder %v129, %v612
    %v614 = vsel %vm613, 1, 0
    %v615 = vcvt.s32.f32 %v614
    %v616 = vmul.f32 %v600, %v606
    %v617 = vlaneseq
    %v618 = vshrl.u32 %v617, 7
    %v619 = vsub.s32 6, %v618
    %v620 = vrot.slane %v616, %v619
    %v621 = vmul.f32 %v615, %v620
    %v622 = vadd.f32 %v599, %v621
    %v623 = vmul.f32 %v544, %v546
    %vm624 = vmand %vm580, %vm601
    %vm625 = vmand %vm624, %vm603
    %v626 = vsel %vm625, 1, 0
    %v627 = vcvt.s32.f32 %v626
    %v628 = vadd.s32 %v607, %v549
    %v629 = vlaneseq
    %v630 = vshrl.u32 %v629, 7
    %v631 = vsub.s32 6, %v630
    %v632 = vrot.slane %v628, %v631
    %vm633 = vcmp.eq.s32.totalorder %v129, %v632
    %v634 = vsel %vm633, 1, 0
    %v635 = vcvt.s32.f32 %v634
    %v636 = vmul.f32 %v623, %v627
    %v637 = vlaneseq
    %v638 = vshrl.u32 %v637, 7
    %v639 = vsub.s32 6, %v638
    %v640 = vrot.slane %v636, %v639
    %v641 = vmul.f32 %v635, %v640
    %v642 = vadd.f32 %v622, %v641
    %v644 = vrot.slane %v114, 3
    %v645 = vsel %vm117, %v644, 0
    %v648 = vsel %vm315, %v642, 0
    %650 = vmatprep.subr.mxu0 0.0
    %651 = vmatpush1.msra.mxu0 0.0
    %652 = vmatprep.subr.mxu0 0.0
    %653 = vmatpush1.msra.mxu0 0.0
    %654 = vmatprep.subr.mxu0 0.0
    %655 = vmatpush1.msra.mxu0 0.0
    %656 = vmatprep.subr.mxu0 0.0
    %657 = vmatpush1.msra.mxu0 0.0
    %658 = vmatprep.subr.mxu0 0.0
    %659 = vmatpush1.msra.mxu0 0.0
    %660 = vmatprep.subr.mxu0 0.0
    %661 = vmatpush1.msra.mxu0 0.0
    %662 = vmatprep.subr.mxu0 0.0
    %663 = vmatpush1.msra.mxu0 0.0
    %664 = vmatprep.subr.mxu0 0.0
    %665 = vmatpush1.msra.mxu0 0.0
    %666 = vmatprep.subr.mxu0 0.0
    %667 = vmatpush1.msra.mxu0 0.0
    %668 = vmatprep.subr.mxu0 0.0
    %669 = vmatpush1.msra.mxu0 0.0
    %670 = vmatprep.subr.mxu0 0.0
    %671 = vmatpush1.msra.mxu0 0.0
    %672 = vmatprep.subr.mxu0 0.0
    %673 = vmatpush1.msra.mxu0 0.0
    %674 = vmatprep.subr.mxu0 0.0
    %675 = vmatpush1.msra.mxu0 0.0
    %676 = vmatprep.subr.mxu0 0.0
    %677 = vmatpush1.msra.mxu0 0.0
    %678 = vmatprep.subr.mxu0 0.0
    %679 = vmatpush1.msra.mxu0 0.0
    %680 = vmatprep.subr.mxu0 0.0
    %681 = vmatpush1.msra.mxu0 %v648
    %682 = vmatprep.subr.mxu0 0.0
    %683 = vmatpush2.msra.mxu0 0.0
    %684 = vmatprep.subr.mxu0 0.0
    %685 = vmatpush2.msra.mxu0 0.0
    %686 = vmatprep.subr.mxu0 0.0
    %687 = vmatpush2.msra.mxu0 0.0
    %688 = vmatprep.subr.mxu0 0.0
    %689 = vmatpush2.msra.mxu0 0.0
    %690 = vmatprep.subr.mxu0 0.0
    %691 = vmatpush2.msra.mxu0 0.0
    %692 = vmatprep.subr.mxu0 0.0
    %693 = vmatpush2.msra.mxu0 0.0
    %694 = vmatprep.subr.mxu0 0.0
    %695 = vmatpush2.msra.mxu0 0.0
    %696 = vmatprep.subr.mxu0 0.0
    %697 = vmatpush2.msra.mxu0 0.0
    %698 = vmatprep.subr.mxu0 0.0
    %699 = vmatpush2.msra.mxu0 0.0
    %700 = vmatprep.subr.mxu0 0.0
    %701 = vmatpush2.msra.mxu0 0.0
    %702 = vmatprep.subr.mxu0 0.0
    %703 = vmatpush2.msra.mxu0 0.0
    %704 = vmatprep.subr.mxu0 0.0
    %705 = vmatpush2.msra.mxu0 0.0
    %706 = vmatprep.subr.mxu0 0.0
    %707 = vmatpush2.msra.mxu0 0.0
    %708 = vmatprep.subr.mxu0 0.0
    %709 = vmatpush2.msra.mxu0 0.0
    %710 = vmatprep.subr.mxu0 0.0
    %711 = vmatpush2.msra.mxu0 0.0
    %712 = vmatprep.subr.mxu0 0.0
    %713 = vmatpush2.msra.mxu0 0.0
    %714 = vmatprep.mubr.f32.mxu0 0.0
    %715 = vmatmul.mubr.f32.gmra.mxu0 %v645
    %v716 = vpop.f32.mrf.mxu0
    %v717 = vadd.f32 0.0, %v716
    %v718 = vpop.f32.mrf.mxu0
    %719 = vdwg.mxu0
    %v720 = vsub.f32 %v114, %v717
    %v721 = vand.u32 2147483647, %v720
    %v722 = vrot.slane %v114, 1
    %v724 = vadd.f32 %v114, %v722
    %v726 = vrot.slane %v717, 1
    %v728 = vadd.f32 %v717, %v726
    %v730 = vrot.slane %v721, 1
    %v732 = vadd.f32 %v721, %v730
    %v733 = vrot.slane %v114, 2
    %v735 = vadd.f32 %v724, %v733
    %v736 = vrot.slane %v717, 2
    %v738 = vadd.f32 %v728, %v736
    %v739 = vrot.slane %v721, 2
    %v741 = vadd.f32 %v732, %v739
    %vm742 = vcmp.ne.f32.partialorder %v114, 0.0
    %vm743 = vcmp.gt.f32.partialorder %v735, 0.0
    %v744 = vsel %vm743, 1, 0
    %v745 = vrot.slane %v744, 1
    %vm746 = vcmp.ne.s32.totalorder %v745, 0
    %vm747 = vmand %vm742, %vm746
    %vm748 = vcmp.gt.f32.partialorder %v738, 0.0
    %v749 = vsel %vm748, 1, 0
    %v750 = vrot.slane %v749, 1
    %vm751 = vcmp.ne.s32.totalorder %v750, 0
    %vm752 = vmand %vm747, %vm751
    %v753 = vsel %vm752, 1, 0
    %v754 = vcvt.s32.f32 %v753
    %v756 = vrot.slane %v754, 7
    %v758 = vmul.f32 %v741, %v756
    %v759 = vsel %vm428, %v758, 0.0
    %760 = vadd.xlane.f32.xlu0 %v759
    %v761 = vpop.xlane.xlu0 %760
    %v762 = vrot.slane %v761, 4
    %v763 = vadd.f32 %v761, %v762
    %v764 = vrot.slane %v763, 2
    %v765 = vadd.f32 %v763, %v764
    %v766 = vrot.slane %v765, 1
    %v767 = vadd.f32 %v765, %v766
    %s768 = vtos %v767
    %s769 = sadd.f32 %s439, %s768
    %v770 = vsel %vm428, %v756, 0.0
    %771 = vadd.xlane.f32.xlu0 %v770
    %v772 = vpop.xlane.xlu0 %771
    %v773 = vrot.slane %v772, 4
    %v774 = vadd.f32 %v772, %v773
    %v775 = vrot.slane %v774, 2
    %v776 = vadd.f32 %v774, %v775
    %v777 = vrot.slane %v776, 1
    %v778 = vadd.f32 %v776, %v777
    %s779 = vtos %v778
    %s780 = sadd.f32 %s450, %s779
    %v781 = vsel %vm451, %v114, -inf
    %782 = vmax.xlane.f32.xlu0 %v781
    %v783 = vpop.xlane.xlu0 %782
    %v784 = vrot.slane %v783, 4
    %v785 = vmax.f32 %v783, %v784
    %v786 = vrot.slane %v785, 2
    %v787 = vmax.f32 %v785, %v786
    %v788 = vrot.slane %v787, 1
    %v789 = vmax.f32 %v787, %v788
    %s790 = vtos %v789
    %s791 = smax.f32 %s461, %s790
    %s792 = scalar_lea.smem [#allocation7], 0
    %793 = sst [smem:[%s792]] %s769
    %s794 = scalar_lea.smem [#allocation7], 1
    %795 = sst [smem:[%s794]] %s780
    %s796 = scalar_lea.smem [#allocation7], 2
    %797 = sst [smem:[%s796]] %s791
    // Predicated region
    $region18: #{multiscale_masked_photometric_loss.5} parent=1 // pred_check
      _
    $region19: #{multiscale_masked_photometric_loss.5} parent=1 // pred_check_branch
      %799 = sbr.rel (0) target = $region21
    $region20: #{multiscale_masked_photometric_loss.5} parent=1 // pred_region
      %s801 = ssub.s32 256, 256
      %802 = vsyncadd [#allocation3], %s801
      %s803 = sshll.u32 [#allocation6], 4
      %s804 = int_to_ptr.vmem [resolvable:$true] %s803
      %809 = dma.vmem_to_hbm [thread:$0]  %s804, 256, %s3, [#allocation3], 128, 128, 8
    $region21: #{multiscale_masked_photometric_loss.5} parent=1 // pred_fallthru
      _
    // Predicated region
    $region22: #{multiscale_masked_photometric_loss.5} parent=1 // pred_check
      _
    $region23: #{multiscale_masked_photometric_loss.5} parent=1 // pred_check_branch
      %811 = sbr.rel (0) target = $region25
    $region24: #{multiscale_masked_photometric_loss.5} parent=1 // pred_region
      %s813 = ssub.s32 16, 16
      %814 = vsyncadd [#allocation5], %s813
      %s816 = sshll.u32 %s4, 4
      %s817 = int_to_ptr.vmem [resolvable:$true] %s816
      %819 = dma.smem_to_vmem [#allocation7], 16, %s817, [#allocation5]
    $region25: #{multiscale_masked_photometric_loss.5} parent=1 // pred_fallthru
      _
    // Predicated region
    $region26: #{multiscale_masked_photometric_loss.5} parent=1 // pred_check
      _
    $region27: #{multiscale_masked_photometric_loss.5} parent=1 // pred_check_branch
      %821 = sbr.rel (0) target = $region29
    $region28: #{multiscale_masked_photometric_loss.5} parent=1 // pred_region
      %822 = dma.done [#allocation3], 256
    $region29: #{multiscale_masked_photometric_loss.5} parent=1 // pred_fallthru
      _
    // Predicated region
    $region30: #{multiscale_masked_photometric_loss.5} parent=1 // pred_check
      _
    $region31: #{multiscale_masked_photometric_loss.5} parent=1 // pred_check_branch
      %824 = sbr.rel (0) target = $region33
    $region32: #{multiscale_masked_photometric_loss.5} parent=1 // pred_region
      %825 = dma.done [#allocation5], 16
    $region33: #{multiscale_masked_photometric_loss.5} parent=1 // pred_fallthru
      _
    %826 = sfence
    %827 = vsyncpa [#allocation3], 1
    %828 = vsyncpa [#allocation4], 1
    %829 = vsyncpa [#allocation5], 1

// kernel: multiscale_masked_photometric_loss.3
$region0: #{multiscale_masked_photometric_loss.3}
  #allocation0 [shape = 'u32[]', space=smem, size = 0x4, offset = 0x4, fixed_abs, tag = 'smem constant byte address 0x4 - core index']
  #allocation1 [shape = 'u32[144,128]{1,0:T(1,128)}', space=vmem, size = 0x12000, scoped, tag = 'internal scratch']
  %s0 = inlined_call_operand.vmem [shape: f32[36], index: 0, kind: input, shape index: {}]
  %s1 = inlined_call_operand.vmem [shape: f32[16,256], index: 1, kind: input, shape index: {}]
  %s2 = inlined_call_operand.vmem [shape: f32[256,64], index: 2, kind: input, shape index: {}]
  %s3 = inlined_call_operand.vmem [shape: f32[16,64], index: 3, kind: output, shape index: {0}]
  %s4 = inlined_call_operand.vmem [shape: f32[3], index: 4, kind: output, shape index: {1}]
  %5 = xla_tuple %s3, %s4
  %s6 = sld [smem:[#allocation0]]
  $region34: #{multiscale_masked_photometric_loss.3} parent=0
    _
  %s8 = ssub.s32 1, %s6
  %s9 = scalar_select 0, %s8, %s6
  $region1: #{multiscale_masked_photometric_loss.3} parent=0
    #allocation2 [shape = 'u8[512]{0}', space=smem, size = 0x200, scoped, tag = 'input window, operand 0, single buffered']
    #allocation3 [shape = 's32[1]{0}', space=sflag, size = 0x4, scoped, tag = 'scoped memory for multiscale_masked_photometric_loss.3']
    #allocation4 [shape = 's32[1]{0}', space=sflag, size = 0x4, scoped, tag = 'scoped memory for multiscale_masked_photometric_loss.3']
    #allocation5 [shape = 'u8[512]{0}', space=smem, size = 0x200, scoped, tag = 'output window, operand 1, single buffered']
    %10 = vsyncpa [#allocation3], 0
    %11 = vsyncpa [#allocation4], 0
    // Predicated region
    $region2: #{multiscale_masked_photometric_loss.3} parent=1 // pred_check
      _
    $region3: #{multiscale_masked_photometric_loss.3} parent=1 // pred_check_branch
      %13 = sbr.rel (0) target = $region5
    $region4: #{multiscale_masked_photometric_loss.3} parent=1 // pred_region
      %s15 = ssub.s32 16, 16
      %16 = vsyncadd [#allocation3], %s15
      %s18 = sshll.u32 %s0, 4
      %s19 = int_to_ptr.vmem [resolvable:$true] %s18
      %21 = dma.vmem_to_smem %s19, 16, [#allocation2], [#allocation3]
    $region5: #{multiscale_masked_photometric_loss.3} parent=1 // pred_fallthru
      _
    // Predicated region
    $region6: #{multiscale_masked_photometric_loss.3} parent=1 // pred_check
      _
    $region7: #{multiscale_masked_photometric_loss.3} parent=1 // pred_check_branch
      %23 = sbr.rel (0) target = $region9
    $region8: #{multiscale_masked_photometric_loss.3} parent=1 // pred_region
      _
    $region9: #{multiscale_masked_photometric_loss.3} parent=1 // pred_fallthru
      _
    // Predicated region
    $region10: #{multiscale_masked_photometric_loss.3} parent=1 // pred_check
      _
    $region11: #{multiscale_masked_photometric_loss.3} parent=1 // pred_check_branch
      %25 = sbr.rel (0) target = $region13
    $region12: #{multiscale_masked_photometric_loss.3} parent=1 // pred_region
      _
    $region13: #{multiscale_masked_photometric_loss.3} parent=1 // pred_fallthru
      _
    // Predicated region
    $region14: #{multiscale_masked_photometric_loss.3} parent=1 // pred_check
      _
    $region15: #{multiscale_masked_photometric_loss.3} parent=1 // pred_check_branch
      %27 = sbr.rel (0) target = $region17
    $region16: #{multiscale_masked_photometric_loss.3} parent=1 // pred_region
      %28 = dma.done [#allocation3], 16
    $region17: #{multiscale_masked_photometric_loss.3} parent=1 // pred_fallthru
      _
    %29 = sfence
    %v30 = vld [vmem:[%s1] sm:$0xff]
    %v31 = vld [vmem:[%s1 + $0x8] sm:$0xff]
    %v32 = vld [vmem:[%s1 + $0x10] sm:$0xff]
    %v33 = vld [vmem:[%s1 + $0x18] sm:$0xff]
    %v34 = vld [vmem:[%s2] sm:$0xff]
    %v35 = vld [vmem:[%s2 + $0x8] sm:$0xff]
    %v36 = vld [vmem:[%s2 + $0x10] sm:$0xff]
    %v37 = vld [vmem:[%s2 + $0x18] sm:$0xff]
    %v38 = vld [vmem:[%s2 + $0x20] sm:$0xff]
    %v39 = vld [vmem:[%s2 + $0x28] sm:$0xff]
    %v40 = vld [vmem:[%s2 + $0x30] sm:$0xff]
    %v41 = vld [vmem:[%s2 + $0x38] sm:$0xff]
    %v42 = vld [vmem:[%s2 + $0x40] sm:$0xff]
    %v43 = vld [vmem:[%s2 + $0x48] sm:$0xff]
    %v44 = vld [vmem:[%s2 + $0x50] sm:$0xff]
    %v45 = vld [vmem:[%s2 + $0x58] sm:$0xff]
    %v46 = vld [vmem:[%s2 + $0x60] sm:$0xff]
    %v47 = vld [vmem:[%s2 + $0x68] sm:$0xff]
    %v48 = vld [vmem:[%s2 + $0x70] sm:$0xff]
    %v49 = vld [vmem:[%s2 + $0x78] sm:$0xff]
    %v50 = vld [vmem:[%s2 + $0x80] sm:$0xff]
    %v51 = vld [vmem:[%s2 + $0x88] sm:$0xff]
    %v52 = vld [vmem:[%s2 + $0x90] sm:$0xff]
    %v53 = vld [vmem:[%s2 + $0x98] sm:$0xff]
    %v54 = vld [vmem:[%s2 + $0xa0] sm:$0xff]
    %v55 = vld [vmem:[%s2 + $0xa8] sm:$0xff]
    %v56 = vld [vmem:[%s2 + $0xb0] sm:$0xff]
    %v57 = vld [vmem:[%s2 + $0xb8] sm:$0xff]
    %v58 = vld [vmem:[%s2 + $0xc0] sm:$0xff]
    %v59 = vld [vmem:[%s2 + $0xc8] sm:$0xff]
    %v60 = vld [vmem:[%s2 + $0xd0] sm:$0xff]
    %v61 = vld [vmem:[%s2 + $0xd8] sm:$0xff]
    %v62 = vld [vmem:[%s2 + $0xe0] sm:$0xff]
    %v63 = vld [vmem:[%s2 + $0xe8] sm:$0xff]
    %v64 = vld [vmem:[%s2 + $0xf0] sm:$0xff]
    %v65 = vld [vmem:[%s2 + $0xf8] sm:$0xff]
    %66 = vmatprep.subr.mxu0 0.0
    %67 = vmatpush1.msra.mxu0 %v49
    %68 = vmatprep.subr.mxu0 0.0
    %69 = vmatpush1.msra.mxu0 %v48
    %70 = vmatprep.subr.mxu0 0.0
    %71 = vmatpush1.msra.mxu0 %v47
    %72 = vmatprep.subr.mxu0 0.0
    %73 = vmatpush1.msra.mxu0 %v46
    %74 = vmatprep.subr.mxu0 0.0
    %75 = vmatpush1.msra.mxu0 %v45
    %76 = vmatprep.subr.mxu0 0.0
    %77 = vmatpush1.msra.mxu0 %v44
    %78 = vmatprep.subr.mxu0 0.0
    %79 = vmatpush1.msra.mxu0 %v43
    %80 = vmatprep.subr.mxu0 0.0
    %81 = vmatpush1.msra.mxu0 %v42
    %82 = vmatprep.subr.mxu0 0.0
    %83 = vmatpush1.msra.mxu0 %v41
    %84 = vmatprep.subr.mxu0 0.0
    %85 = vmatpush1.msra.mxu0 %v40
    %86 = vmatprep.subr.mxu0 0.0
    %87 = vmatpush1.msra.mxu0 %v39
    %88 = vmatprep.subr.mxu0 0.0
    %89 = vmatpush1.msra.mxu0 %v38
    %90 = vmatprep.subr.mxu0 0.0
    %91 = vmatpush1.msra.mxu0 %v37
    %92 = vmatprep.subr.mxu0 0.0
    %93 = vmatpush1.msra.mxu0 %v36
    %94 = vmatprep.subr.mxu0 0.0
    %95 = vmatpush1.msra.mxu0 %v35
    %96 = vmatprep.subr.mxu0 0.0
    %97 = vmatpush1.msra.mxu0 %v34
    %98 = vmatprep.subr.mxu0 0.0
    %99 = vmatpush2.msra.mxu0 %v65
    %100 = vmatprep.subr.mxu0 0.0
    %101 = vmatpush2.msra.mxu0 %v64
    %102 = vmatprep.subr.mxu0 0.0
    %103 = vmatpush2.msra.mxu0 %v63
    %104 = vmatprep.subr.mxu0 0.0
    %105 = vmatpush2.msra.mxu0 %v62
    %106 = vmatprep.subr.mxu0 0.0
    %107 = vmatpush2.msra.mxu0 %v61
    %108 = vmatprep.subr.mxu0 0.0
    %109 = vmatpush2.msra.mxu0 %v60
    %110 = vmatprep.subr.mxu0 0.0
    %111 = vmatpush2.msra.mxu0 %v59
    %112 = vmatprep.subr.mxu0 0.0
    %113 = vmatpush2.msra.mxu0 %v58
    %114 = vmatprep.subr.mxu0 0.0
    %115 = vmatpush2.msra.mxu0 %v57
    %116 = vmatprep.subr.mxu0 0.0
    %117 = vmatpush2.msra.mxu0 %v56
    %118 = vmatprep.subr.mxu0 0.0
    %119 = vmatpush2.msra.mxu0 %v55
    %120 = vmatprep.subr.mxu0 0.0
    %121 = vmatpush2.msra.mxu0 %v54
    %122 = vmatprep.subr.mxu0 0.0
    %123 = vmatpush2.msra.mxu0 %v53
    %124 = vmatprep.subr.mxu0 0.0
    %125 = vmatpush2.msra.mxu0 %v52
    %126 = vmatprep.subr.mxu0 0.0
    %127 = vmatpush2.msra.mxu0 %v51
    %128 = vmatprep.subr.mxu0 0.0
    %129 = vmatpush2.msra.mxu0 %v50
    %130 = vmatprep.mubr.f32.mxu0 %v31
    %131 = vmatmul.mubr.f32.gmra.mxu0 %v30
    %v132 = vpop.f32.mrf.mxu0
    %v133 = vadd.f32 0.0, %v132
    %v134 = vpop.f32.mrf.mxu0
    %135 = vmatprep.mubr.f32.mxu0 %v33
    %136 = vmatmul.mubr.f32.gmra.mxu0 %v32
    %v137 = vpop.f32.mrf.mxu0
    %v138 = vadd.f32 0.0, %v137
    %v139 = vpop.f32.mrf.mxu0
    %140 = vdwg.mxu0
    %vm141 = vcmask 523264
    %142 = vst.msk [vmem:[%s3] sm:$0xff] %vm141, %v133
    %143 = vst.msk [vmem:[%s3 + $0x8] sm:$0xff] %vm141, %v138
    %v144 = vlaneseq
    %v145 = vand.u32 %v144, 127
    %v146 = vcvt.s32.f32 %v145
    %v147 = vadd.f32 %v146, 0.5
    %v148 = vmul.f32 %v147, 0.125
    %v149 = vfloor.f32 %v148
    %v150 = vmul.f32 %v149, 8.0
    %v151 = vsub.f32 %v146, %v150
    %v152 = vlaneseq
    %v153 = vshrl.u32 %v152, 7
    %v154 = vadd.s32 %v153, 8
    %v155 = vadd.s32 %v153, 16
    %v156 = vadd.s32 %v153, 24
    %v157 = vadd.s32 %v153, 32
    %v158 = vadd.s32 %v153, 40
    %v159 = vadd.s32 %v153, 48
    %v160 = vadd.s32 %v153, 56
    %s161 = sld [smem:[#allocation2]]
    %s162 = sld [smem:[#allocation2 + $0x1]]
    %s163 = sld [smem:[#allocation2 + $0x2]]
    %s164 = sld [smem:[#allocation2 + $0x3]]
    %s165 = sld [smem:[#allocation2 + $0x4]]
    %s166 = sld [smem:[#allocation2 + $0x5]]
    %s167 = sld [smem:[#allocation2 + $0x6]]
    %s168 = sld [smem:[#allocation2 + $0x7]]
    %s169 = sld [smem:[#allocation2 + $0x8]]
    %s170 = sld [smem:[#allocation2 + $0x9]]
    %s171 = sld [smem:[#allocation2 + $0xa]]
    %s172 = sld [smem:[#allocation2 + $0xb]]
    %s173 = sld [smem:[#allocation2 + $0xc]]
    %s174 = sld [smem:[#allocation2 + $0xd]]
    %s175 = sld [smem:[#allocation2 + $0xe]]
    %s176 = sld [smem:[#allocation2 + $0xf]]
    %s177 = sld [smem:[#allocation2 + $0x10]]
    %s178 = sld [smem:[#allocation2 + $0x11]]
    %v179 = vstv %s163
    %v180 = vsub.f32 %v151, %v179
    %v181 = vmul.f32 %v133, %v180
    %v182 = vstv %s165
    %v183 = vmul.f32 %v181, %v182
    %v184 = vstv %s164
    %v185 = vsub.f32 %v149, %v184
    %v186 = vmul.f32 %v133, %v185
    %v187 = vstv %s166
    %v188 = vmul.f32 %v186, %v187
    %v189 = vstv %s167
    %v190 = vmul.f32 %v189, %v183
    %v191 = vstv %s168
    %v192 = vmul.f32 %v191, %v188
    %v193 = vadd.f32 %v190, %v192
    %v194 = vstv %s169
    %v195 = vmul.f32 %v194, %v133
    %v196 = vadd.f32 %v193, %v195
    %v197 = vstv %s176
    %v198 = vadd.f32 %v196, %v197
    %v199 = vstv %s170
    %v200 = vmul.f32 %v199, %v183
    %v201 = vstv %s171
    %v202 = vmul.f32 %v201, %v188
    %v203 = vadd.f32 %v200, %v202
    %v204 = vstv %s172
    %v205 = vmul.f32 %v204, %v133
    %v206 = vadd.f32 %v203, %v205
    %v207 = vstv %s177
    %v208 = vadd.f32 %v206, %v207
    %v209 = vstv %s173
    %v210 = vmul.f32 %v209, %v183
    %v211 = vstv %s174
    %v212 = vmul.f32 %v211, %v188
    %v213 = vadd.f32 %v210, %v212
    %v214 = vstv %s175
    %v215 = vmul.f32 %v214, %v133
    %v216 = vadd.f32 %v213, %v215
    %v217 = vstv %s178
    %v218 = vadd.f32 %v216, %v217
    %v219 = vmax.f32 %v218, 0.001
    %v220 = vrcp.pop %v219
    %v221 = vstv %s161
    %v222 = vmul.f32 %v221, %v198
    %v223 = vmul.f32 %v222, %v220
    %v224 = vadd.f32 %v223, %v179
    %v225 = vstv %s162
    %v226 = vmul.f32 %v225, %v208
    %v227 = vmul.f32 %v226, %v220
    %v228 = vadd.f32 %v227, %v184
    %v229 = vmul.f32 %v224, 2.0
    %v230 = vmul.f32 %v229, 0.14285715
    %v231 = vsub.f32 %v230, 1.0
    %v232 = vmul.f32 %v228, 2.0
    %v233 = vmul.f32 %v232, 0.14285715
    %v234 = vsub.f32 %v233, 1.0
    %v235 = vadd.f32 %v231, 1.0
    %v236 = vmul.f32 %v235, 3.5
    %v237 = vadd.f32 %v234, 1.0
    %v238 = vmul.f32 %v237, 3.5
    %v239 = vmax.f32 %v236, -2.0
    %v240 = vmin.f32 %v239, 9.0
    %v241 = vmax.f32 %v238, -2.0
    %v242 = vmin.f32 %v241, 9.0
    %v243 = vfloor.f32 %v240
    %v244 = vfloor.f32 %v242
    %v245 = vsub.f32 %v240, %v243
    %v246 = vsub.f32 1.0, %v245
    %v247 = vsub.f32 %v242, %v244
    %v248 = vsub.f32 1.0, %v247
    %v249 = vcvt.f32.s32.to.zero.pseudo %v243
    %v250 = vadd.s32 %v249, 1
    %v251 = vcvt.f32.s32.to.zero.pseudo %v244
    %v252 = vadd.s32 %v251, 1
    %v253 = vmul.f32 %v246, %v248
    %vm254 = vcmp.ge.s32.totalorder %v249, 0
    %vm255 = vcmp.le.s32.totalorder %v249, 7
    %vm256 = vmand %vm254, %vm255
    %vm257 = vcmp.ge.s32.totalorder %v251, 0
    %vm258 = vmand %vm256, %vm257
    %vm259 = vcmp.le.s32.totalorder %v251, 7
    %vm260 = vmand %vm258, %vm259
    %v261 = vsel %vm260, 1, 0
    %v262 = vcvt.s32.f32 %v261
    %v263 = vmul.u32 %v251, 8
    %v264 = vadd.s32 %v263, %v249
    %v265 = vlaneseq
    %v266 = vshrl.u32 %v265, 7
    %v267 = vsub.s32 6, %v266
    %v268 = vrot.slane %v264, %v267
    %vm269 = vcmp.eq.s32.totalorder %v153, %v268
    %vm270 = vcmp.eq.s32.totalorder %v154, %v268
    %vm271 = vcmp.eq.s32.totalorder %v155, %v268
    %vm272 = vcmp.eq.s32.totalorder %v156, %v268
    %vm273 = vcmp.eq.s32.totalorder %v157, %v268
    %vm274 = vcmp.eq.s32.totalorder %v158, %v268
    %vm275 = vcmp.eq.s32.totalorder %v159, %v268
    %vm276 = vcmp.eq.s32.totalorder %v160, %v268
    %v277 = vsel %vm269, 1, 0
    %v278 = vsel %vm270, 1, 0
    %v279 = vsel %vm271, 1, 0
    %v280 = vsel %vm272, 1, 0
    %v281 = vsel %vm273, 1, 0
    %v282 = vsel %vm274, 1, 0
    %v283 = vsel %vm275, 1, 0
    %v284 = vsel %vm276, 1, 0
    %v285 = vcvt.s32.f32 %v277
    %v286 = vcvt.s32.f32 %v278
    %v287 = vcvt.s32.f32 %v279
    %v288 = vcvt.s32.f32 %v280
    %v289 = vcvt.s32.f32 %v281
    %v290 = vcvt.s32.f32 %v282
    %v291 = vcvt.s32.f32 %v283
    %v292 = vcvt.s32.f32 %v284
    %v293 = vmul.f32 %v253, %v262
    %v294 = vlaneseq
    %v295 = vshrl.u32 %v294, 7
    %v296 = vsub.s32 6, %v295
    %v297 = vrot.slane %v293, %v296
    %v298 = vmul.f32 %v285, %v297
    %v299 = vmul.f32 %v286, %v297
    %v300 = vmul.f32 %v287, %v297
    %v301 = vmul.f32 %v288, %v297
    %v302 = vmul.f32 %v289, %v297
    %v303 = vmul.f32 %v290, %v297
    %v304 = vmul.f32 %v291, %v297
    %v305 = vmul.f32 %v292, %v297
    %v306 = vmul.f32 %v245, %v248
    %vm307 = vcmp.ge.s32.totalorder %v250, 0
    %vm308 = vcmp.le.s32.totalorder %v250, 7
    %vm309 = vmand %vm307, %vm308
    %vm310 = vmand %vm309, %vm257
    %vm311 = vmand %vm310, %vm259
    %v312 = vsel %vm311, 1, 0
    %v313 = vcvt.s32.f32 %v312
    %v314 = vadd.s32 %v263, %v250
    %v315 = vlaneseq
    %v316 = vshrl.u32 %v315, 7
    %v317 = vsub.s32 6, %v316
    %v318 = vrot.slane %v314, %v317
    %vm319 = vcmp.eq.s32.totalorder %v153, %v318
    %vm320 = vcmp.eq.s32.totalorder %v154, %v318
    %vm321 = vcmp.eq.s32.totalorder %v155, %v318
    %vm322 = vcmp.eq.s32.totalorder %v156, %v318
    %vm323 = vcmp.eq.s32.totalorder %v157, %v318
    %vm324 = vcmp.eq.s32.totalorder %v158, %v318
    %vm325 = vcmp.eq.s32.totalorder %v159, %v318
    %vm326 = vcmp.eq.s32.totalorder %v160, %v318
    %v327 = vsel %vm319, 1, 0
    %v328 = vsel %vm320, 1, 0
    %v329 = vsel %vm321, 1, 0
    %v330 = vsel %vm322, 1, 0
    %v331 = vsel %vm323, 1, 0
    %v332 = vsel %vm324, 1, 0
    %v333 = vsel %vm325, 1, 0
    %v334 = vsel %vm326, 1, 0
    %v335 = vcvt.s32.f32 %v327
    %v336 = vcvt.s32.f32 %v328
    %v337 = vcvt.s32.f32 %v329
    %v338 = vcvt.s32.f32 %v330
    %v339 = vcvt.s32.f32 %v331
    %v340 = vcvt.s32.f32 %v332
    %v341 = vcvt.s32.f32 %v333
    %v342 = vcvt.s32.f32 %v334
    %v343 = vmul.f32 %v306, %v313
    %v344 = vlaneseq
    %v345 = vshrl.u32 %v344, 7
    %v346 = vsub.s32 6, %v345
    %v347 = vrot.slane %v343, %v346
    %v348 = vmul.f32 %v335, %v347
    %v349 = vmul.f32 %v336, %v347
    %v350 = vmul.f32 %v337, %v347
    %v351 = vmul.f32 %v338, %v347
    %v352 = vmul.f32 %v339, %v347
    %v353 = vmul.f32 %v340, %v347
    %v354 = vmul.f32 %v341, %v347
    %v355 = vmul.f32 %v342, %v347
    %v356 = vadd.f32 %v298, %v348
    %v357 = vadd.f32 %v299, %v349
    %v358 = vadd.f32 %v300, %v350
    %v359 = vadd.f32 %v301, %v351
    %v360 = vadd.f32 %v302, %v352
    %v361 = vadd.f32 %v303, %v353
    %v362 = vadd.f32 %v304, %v354
    %v363 = vadd.f32 %v305, %v355
    %v364 = vmul.f32 %v246, %v247
    %vm365 = vcmp.ge.s32.totalorder %v252, 0
    %vm366 = vmand %vm256, %vm365
    %vm367 = vcmp.le.s32.totalorder %v252, 7
    %vm368 = vmand %vm366, %vm367
    %v369 = vsel %vm368, 1, 0
    %v370 = vcvt.s32.f32 %v369
    %v371 = vmul.u32 %v252, 8
    %v372 = vadd.s32 %v371, %v249
    %v373 = vlaneseq
    %v374 = vshrl.u32 %v373, 7
    %v375 = vsub.s32 6, %v374
    %v376 = vrot.slane %v372, %v375
    %vm377 = vcmp.eq.s32.totalorder %v153, %v376
    %vm378 = vcmp.eq.s32.totalorder %v154, %v376
    %vm379 = vcmp.eq.s32.totalorder %v155, %v376
    %vm380 = vcmp.eq.s32.totalorder %v156, %v376
    %vm381 = vcmp.eq.s32.totalorder %v157, %v376
    %vm382 = vcmp.eq.s32.totalorder %v158, %v376
    %vm383 = vcmp.eq.s32.totalorder %v159, %v376
    %vm384 = vcmp.eq.s32.totalorder %v160, %v376
    %v385 = vsel %vm377, 1, 0
    %v386 = vsel %vm378, 1, 0
    %v387 = vsel %vm379, 1, 0
    %v388 = vsel %vm380, 1, 0
    %v389 = vsel %vm381, 1, 0
    %v390 = vsel %vm382, 1, 0
    %v391 = vsel %vm383, 1, 0
    %v392 = vsel %vm384, 1, 0
    %v393 = vcvt.s32.f32 %v385
    %v394 = vcvt.s32.f32 %v386
    %v395 = vcvt.s32.f32 %v387
    %v396 = vcvt.s32.f32 %v388
    %v397 = vcvt.s32.f32 %v389
    %v398 = vcvt.s32.f32 %v390
    %v399 = vcvt.s32.f32 %v391
    %v400 = vcvt.s32.f32 %v392
    %v401 = vmul.f32 %v364, %v370
    %v402 = vlaneseq
    %v403 = vshrl.u32 %v402, 7
    %v404 = vsub.s32 6, %v403
    %v405 = vrot.slane %v401, %v404
    %v406 = vmul.f32 %v393, %v405
    %v407 = vmul.f32 %v394, %v405
    %v408 = vmul.f32 %v395, %v405
    %v409 = vmul.f32 %v396, %v405
    %v410 = vmul.f32 %v397, %v405
    %v411 = vmul.f32 %v398, %v405
    %v412 = vmul.f32 %v399, %v405
    %v413 = vmul.f32 %v400, %v405
    %v414 = vadd.f32 %v356, %v406
    %v415 = vadd.f32 %v357, %v407
    %v416 = vadd.f32 %v358, %v408
    %v417 = vadd.f32 %v359, %v409
    %v418 = vadd.f32 %v360, %v410
    %v419 = vadd.f32 %v361, %v411
    %v420 = vadd.f32 %v362, %v412
    %v421 = vadd.f32 %v363, %v413
    %v422 = vmul.f32 %v245, %v247
    %vm423 = vmand %vm309, %vm365
    %vm424 = vmand %vm423, %vm367
    %v425 = vsel %vm424, 1, 0
    %v426 = vcvt.s32.f32 %v425
    %v427 = vadd.s32 %v371, %v250
    %v428 = vlaneseq
    %v429 = vshrl.u32 %v428, 7
    %v430 = vsub.s32 6, %v429
    %v431 = vrot.slane %v427, %v430
    %vm432 = vcmp.eq.s32.totalorder %v153, %v431
    %vm433 = vcmp.eq.s32.totalorder %v154, %v431
    %vm434 = vcmp.eq.s32.totalorder %v155, %v431
    %vm435 = vcmp.eq.s32.totalorder %v156, %v431
    %vm436 = vcmp.eq.s32.totalorder %v157, %v431
    %vm437 = vcmp.eq.s32.totalorder %v158, %v431
    %vm438 = vcmp.eq.s32.totalorder %v159, %v431
    %vm439 = vcmp.eq.s32.totalorder %v160, %v431
    %v440 = vsel %vm432, 1, 0
    %v441 = vsel %vm433, 1, 0
    %v442 = vsel %vm434, 1, 0
    %v443 = vsel %vm435, 1, 0
    %v444 = vsel %vm436, 1, 0
    %v445 = vsel %vm437, 1, 0
    %v446 = vsel %vm438, 1, 0
    %v447 = vsel %vm439, 1, 0
    %v448 = vcvt.s32.f32 %v440
    %v449 = vcvt.s32.f32 %v441
    %v450 = vcvt.s32.f32 %v442
    %v451 = vcvt.s32.f32 %v443
    %v452 = vcvt.s32.f32 %v444
    %v453 = vcvt.s32.f32 %v445
    %v454 = vcvt.s32.f32 %v446
    %v455 = vcvt.s32.f32 %v447
    %v456 = vmul.f32 %v422, %v426
    %v457 = vlaneseq
    %v458 = vshrl.u32 %v457, 7
    %v459 = vsub.s32 6, %v458
    %v460 = vrot.slane %v456, %v459
    %v461 = vmul.f32 %v448, %v460
    %v462 = vmul.f32 %v449, %v460
    %v463 = vmul.f32 %v450, %v460
    %v464 = vmul.f32 %v451, %v460
    %v465 = vmul.f32 %v452, %v460
    %v466 = vmul.f32 %v453, %v460
    %v467 = vmul.f32 %v454, %v460
    %v468 = vmul.f32 %v455, %v460
    %v469 = vadd.f32 %v414, %v461
    %v470 = vadd.f32 %v415, %v462
    %v471 = vadd.f32 %v416, %v463
    %v472 = vadd.f32 %v417, %v464
    %v473 = vadd.f32 %v418, %v465
    %v474 = vadd.f32 %v419, %v466
    %v475 = vadd.f32 %v420, %v467
    %v476 = vadd.f32 %v421, %v468
    %v478 = vrot.slane %v133, 3
    %v479 = vsel %vm141, %v478, 0
    %481 = vmatprep.subr.mxu0 0.0
    %482 = vmatpush1.msra.mxu0 0.0
    %483 = vmatprep.subr.mxu0 0.0
    %484 = vmatpush1.msra.mxu0 0.0
    %485 = vmatprep.subr.mxu0 0.0
    %486 = vmatpush1.msra.mxu0 0.0
    %487 = vmatprep.subr.mxu0 0.0
    %488 = vmatpush1.msra.mxu0 0.0
    %489 = vmatprep.subr.mxu0 0.0
    %490 = vmatpush1.msra.mxu0 0.0
    %491 = vmatprep.subr.mxu0 0.0
    %492 = vmatpush1.msra.mxu0 0.0
    %493 = vmatprep.subr.mxu0 0.0
    %494 = vmatpush1.msra.mxu0 0.0
    %495 = vmatprep.subr.mxu0 0.0
    %496 = vmatpush1.msra.mxu0 0.0
    %497 = vmatprep.subr.mxu0 0.0
    %498 = vmatpush1.msra.mxu0 %v476
    %499 = vmatprep.subr.mxu0 0.0
    %500 = vmatpush1.msra.mxu0 %v475
    %501 = vmatprep.subr.mxu0 0.0
    %502 = vmatpush1.msra.mxu0 %v474
    %503 = vmatprep.subr.mxu0 0.0
    %504 = vmatpush1.msra.mxu0 %v473
    %505 = vmatprep.subr.mxu0 0.0
    %506 = vmatpush1.msra.mxu0 %v472
    %507 = vmatprep.subr.mxu0 0.0
    %508 = vmatpush1.msra.mxu0 %v471
    %509 = vmatprep.subr.mxu0 0.0
    %510 = vmatpush1.msra.mxu0 %v470
    %511 = vmatprep.subr.mxu0 0.0
    %512 = vmatpush1.msra.mxu0 %v469
    %513 = vmatprep.subr.mxu0 0.0
    %514 = vmatpush2.msra.mxu0 0.0
    %515 = vmatprep.subr.mxu0 0.0
    %516 = vmatpush2.msra.mxu0 0.0
    %517 = vmatprep.subr.mxu0 0.0
    %518 = vmatpush2.msra.mxu0 0.0
    %519 = vmatprep.subr.mxu0 0.0
    %520 = vmatpush2.msra.mxu0 0.0
    %521 = vmatprep.subr.mxu0 0.0
    %522 = vmatpush2.msra.mxu0 0.0
    %523 = vmatprep.subr.mxu0 0.0
    %524 = vmatpush2.msra.mxu0 0.0
    %525 = vmatprep.subr.mxu0 0.0
    %526 = vmatpush2.msra.mxu0 0.0
    %527 = vmatprep.subr.mxu0 0.0
    %528 = vmatpush2.msra.mxu0 0.0
    %529 = vmatprep.subr.mxu0 0.0
    %530 = vmatpush2.msra.mxu0 0.0
    %531 = vmatprep.subr.mxu0 0.0
    %532 = vmatpush2.msra.mxu0 0.0
    %533 = vmatprep.subr.mxu0 0.0
    %534 = vmatpush2.msra.mxu0 0.0
    %535 = vmatprep.subr.mxu0 0.0
    %536 = vmatpush2.msra.mxu0 0.0
    %537 = vmatprep.subr.mxu0 0.0
    %538 = vmatpush2.msra.mxu0 0.0
    %539 = vmatprep.subr.mxu0 0.0
    %540 = vmatpush2.msra.mxu0 0.0
    %541 = vmatprep.subr.mxu0 0.0
    %542 = vmatpush2.msra.mxu0 0.0
    %543 = vmatprep.subr.mxu0 0.0
    %544 = vmatpush2.msra.mxu0 0.0
    %545 = vmatprep.mubr.f32.mxu0 0.0
    %546 = vmatmul.mubr.f32.gmra.mxu0 %v479
    %v547 = vpop.f32.mrf.mxu0
    %v548 = vadd.f32 0.0, %v547
    %v549 = vpop.f32.mrf.mxu0
    %550 = vdwg.mxu0
    %v551 = vsub.f32 %v133, %v548
    %v552 = vand.u32 2147483647, %v551
    %v553 = vrot.slane %v133, 1
    %v555 = vadd.f32 %v133, %v553
    %v557 = vrot.slane %v548, 1
    %v559 = vadd.f32 %v548, %v557
    %v561 = vrot.slane %v552, 1
    %v563 = vadd.f32 %v552, %v561
    %v564 = vrot.slane %v133, 2
    %v566 = vadd.f32 %v555, %v564
    %v567 = vrot.slane %v548, 2
    %v569 = vadd.f32 %v559, %v567
    %v570 = vrot.slane %v552, 2
    %v572 = vadd.f32 %v563, %v570
    %vm573 = vcmp.ne.f32.partialorder %v133, 0.0
    %vm574 = vcmp.gt.f32.partialorder %v566, 0.0
    %v575 = vsel %vm574, 1, 0
    %v576 = vrot.slane %v575, 1
    %vm577 = vcmp.ne.s32.totalorder %v576, 0
    %vm578 = vmand %vm573, %vm577
    %vm579 = vcmp.gt.f32.partialorder %v569, 0.0
    %v580 = vsel %vm579, 1, 0
    %v581 = vrot.slane %v580, 1
    %vm582 = vcmp.ne.s32.totalorder %v581, 0
    %vm583 = vmand %vm578, %vm582
    %v584 = vsel %vm583, 1, 0
    %v585 = vcvt.s32.f32 %v584
    %v587 = vrot.slane %v585, 7
    %v589 = vmul.f32 %v572, %v587
    %vm590 = vcmask 516096
    %v591 = vsel %vm590, %v589, 0.0
    %592 = vadd.xlane.f32.xlu0 %v591
    %v593 = vpop.xlane.xlu0 %592
    %v594 = vrot.slane %v593, 4
    %v595 = vadd.f32 %v593, %v594
    %v596 = vrot.slane %v595, 2
    %v597 = vadd.f32 %v595, %v596
    %v598 = vrot.slane %v597, 1
    %v599 = vadd.f32 %v597, %v598
    %s600 = vtos %v599
    %s601 = sadd.f32 %s600, 0.0
    %v602 = vsel %vm590, %v587, 0.0
    %603 = vadd.xlane.f32.xlu0 %v602
    %v604 = vpop.xlane.xlu0 %603
    %v605 = vrot.slane %v604, 4
    %v606 = vadd.f32 %v604, %v605
    %v607 = vrot.slane %v606, 2
    %v608 = vadd.f32 %v606, %v607
    %v609 = vrot.slane %v608, 1
    %v610 = vadd.f32 %v608, %v609
    %s611 = vtos %v610
    %s612 = sadd.f32 %s611, 0.0
    %vm613 = vcmask 518144
    %v614 = vsel %vm613, %v133, -inf
    %615 = vmax.xlane.f32.xlu0 %v614
    %v616 = vpop.xlane.xlu0 %615
    %v617 = vrot.slane %v616, 4
    %v618 = vmax.f32 %v616, %v617
    %v619 = vrot.slane %v618, 2
    %v620 = vmax.f32 %v618, %v619
    %v621 = vrot.slane %v620, 1
    %v622 = vmax.f32 %v620, %v621
    %s623 = vtos %v622
    %s624 = sld [smem:[#allocation2 + $0x12]]
    %s625 = sld [smem:[#allocation2 + $0x13]]
    %s626 = sld [smem:[#allocation2 + $0x14]]
    %s627 = sld [smem:[#allocation2 + $0x15]]
    %s628 = sld [smem:[#allocation2 + $0x16]]
    %s629 = sld [smem:[#allocation2 + $0x17]]
    %s630 = sld [smem:[#allocation2 + $0x18]]
    %s631 = sld [smem:[#allocation2 + $0x19]]
    %s632 = sld [smem:[#allocation2 + $0x1a]]
    %s633 = sld [smem:[#allocation2 + $0x1b]]
    %s634 = sld [smem:[#allocation2 + $0x1c]]
    %s635 = sld [smem:[#allocation2 + $0x1d]]
    %s636 = sld [smem:[#allocation2 + $0x1e]]
    %s637 = sld [smem:[#allocation2 + $0x1f]]
    %s638 = sld [smem:[#allocation2 + $0x20]]
    %s639 = sld [smem:[#allocation2 + $0x21]]
    %s640 = sld [smem:[#allocation2 + $0x22]]
    %s641 = sld [smem:[#allocation2 + $0x23]]
    %v642 = vstv %s626
    %v643 = vsub.f32 %v151, %v642
    %v644 = vmul.f32 %v138, %v643
    %v645 = vstv %s628
    %v646 = vmul.f32 %v644, %v645
    %v647 = vstv %s627
    %v648 = vsub.f32 %v149, %v647
    %v649 = vmul.f32 %v138, %v648
    %v650 = vstv %s629
    %v651 = vmul.f32 %v649, %v650
    %v652 = vstv %s630
    %v653 = vmul.f32 %v652, %v646
    %v654 = vstv %s631
    %v655 = vmul.f32 %v654, %v651
    %v656 = vadd.f32 %v653, %v655
    %v657 = vstv %s632
    %v658 = vmul.f32 %v657, %v138
    %v659 = vadd.f32 %v656, %v658
    %v660 = vstv %s639
    %v661 = vadd.f32 %v659, %v660
    %v662 = vstv %s633
    %v663 = vmul.f32 %v662, %v646
    %v664 = vstv %s634
    %v665 = vmul.f32 %v664, %v651
    %v666 = vadd.f32 %v663, %v665
    %v667 = vstv %s635
    %v668 = vmul.f32 %v667, %v138
    %v669 = vadd.f32 %v666, %v668
    %v670 = vstv %s640
    %v671 = vadd.f32 %v669, %v670
    %v672 = vstv %s636
    %v673 = vmul.f32 %v672, %v646
    %v674 = vstv %s637
    %v675 = vmul.f32 %v674, %v651
    %v676 = vadd.f32 %v673, %v675
    %v677 = vstv %s638
    %v678 = vmul.f32 %v677, %v138
    %v679 = vadd.f32 %v676, %v678
    %v680 = vstv %s641
    %v681 = vadd.f32 %v679, %v680
    %v682 = vmax.f32 %v681, 0.001
    %v683 = vrcp.pop %v682
    %v684 = vstv %s624
    %v685 = vmul.f32 %v684, %v661
    %v686 = vmul.f32 %v685, %v683
    %v687 = vadd.f32 %v686, %v642
    %v688 = vstv %s625
    %v689 = vmul.f32 %v688, %v671
    %v690 = vmul.f32 %v689, %v683
    %v691 = vadd.f32 %v690, %v647
    %v692 = vmul.f32 %v687, 2.0
    %v693 = vmul.f32 %v692, 0.14285715
    %v694 = vsub.f32 %v693, 1.0
    %v695 = vmul.f32 %v691, 2.0
    %v696 = vmul.f32 %v695, 0.14285715
    %v697 = vsub.f32 %v696, 1.0
    %v698 = vadd.f32 %v694, 1.0
    %v699 = vmul.f32 %v698, 3.5
    %v700 = vadd.f32 %v697, 1.0
    %v701 = vmul.f32 %v700, 3.5
    %v702 = vmax.f32 %v699, -2.0
    %v703 = vmin.f32 %v702, 9.0
    %v704 = vmax.f32 %v701, -2.0
    %v705 = vmin.f32 %v704, 9.0
    %v706 = vfloor.f32 %v703
    %v707 = vfloor.f32 %v705
    %v708 = vsub.f32 %v703, %v706
    %v709 = vsub.f32 1.0, %v708
    %v710 = vsub.f32 %v705, %v707
    %v711 = vsub.f32 1.0, %v710
    %v712 = vcvt.f32.s32.to.zero.pseudo %v706
    %v713 = vadd.s32 %v712, 1
    %v714 = vcvt.f32.s32.to.zero.pseudo %v707
    %v715 = vadd.s32 %v714, 1
    %v716 = vmul.f32 %v709, %v711
    %vm717 = vcmp.ge.s32.totalorder %v712, 0
    %vm718 = vcmp.le.s32.totalorder %v712, 7
    %vm719 = vmand %vm717, %vm718
    %vm720 = vcmp.ge.s32.totalorder %v714, 0
    %vm721 = vmand %vm719, %vm720
    %vm722 = vcmp.le.s32.totalorder %v714, 7
    %vm723 = vmand %vm721, %vm722
    %v724 = vsel %vm723, 1, 0
    %v725 = vcvt.s32.f32 %v724
    %v726 = vmul.u32 %v714, 8
    %v727 = vadd.s32 %v726, %v712
    %v728 = vlaneseq
    %v729 = vshrl.u32 %v728, 7
    %v730 = vsub.s32 6, %v729
    %v731 = vrot.slane %v727, %v730
    %vm732 = vcmp.eq.s32.totalorder %v153, %v731
    %vm733 = vcmp.eq.s32.totalorder %v154, %v731
    %vm734 = vcmp.eq.s32.totalorder %v155, %v731
    %vm735 = vcmp.eq.s32.totalorder %v156, %v731
    %vm736 = vcmp.eq.s32.totalorder %v157, %v731
    %vm737 = vcmp.eq.s32.totalorder %v158, %v731
    %vm738 = vcmp.eq.s32.totalorder %v159, %v731
    %vm739 = vcmp.eq.s32.totalorder %v160, %v731
    %v740 = vsel %vm732, 1, 0
    %v741 = vsel %vm733, 1, 0
    %v742 = vsel %vm734, 1, 0
    %v743 = vsel %vm735, 1, 0
    %v744 = vsel %vm736, 1, 0
    %v745 = vsel %vm737, 1, 0
    %v746 = vsel %vm738, 1, 0
    %v747 = vsel %vm739, 1, 0
    %v748 = vcvt.s32.f32 %v740
    %v749 = vcvt.s32.f32 %v741
    %v750 = vcvt.s32.f32 %v742
    %v751 = vcvt.s32.f32 %v743
    %v752 = vcvt.s32.f32 %v744
    %v753 = vcvt.s32.f32 %v745
    %v754 = vcvt.s32.f32 %v746
    %v755 = vcvt.s32.f32 %v747
    %v756 = vmul.f32 %v716, %v725
    %v757 = vlaneseq
    %v758 = vshrl.u32 %v757, 7
    %v759 = vsub.s32 6, %v758
    %v760 = vrot.slane %v756, %v759
    %v761 = vmul.f32 %v748, %v760
    %v762 = vmul.f32 %v749, %v760
    %v763 = vmul.f32 %v750, %v760
    %v764 = vmul.f32 %v751, %v760
    %v765 = vmul.f32 %v752, %v760
    %v766 = vmul.f32 %v753, %v760
    %v767 = vmul.f32 %v754, %v760
    %v768 = vmul.f32 %v755, %v760
    %v769 = vmul.f32 %v708, %v711
    %vm770 = vcmp.ge.s32.totalorder %v713, 0
    %vm771 = vcmp.le.s32.totalorder %v713, 7
    %vm772 = vmand %vm770, %vm771
    %vm773 = vmand %vm772, %vm720
    %vm774 = vmand %vm773, %vm722
    %v775 = vsel %vm774, 1, 0
    %v776 = vcvt.s32.f32 %v775
    %v777 = vadd.s32 %v726, %v713
    %v778 = vlaneseq
    %v779 = vshrl.u32 %v778, 7
    %v780 = vsub.s32 6, %v779
    %v781 = vrot.slane %v777, %v780
    %vm782 = vcmp.eq.s32.totalorder %v153, %v781
    %vm783 = vcmp.eq.s32.totalorder %v154, %v781
    %vm784 = vcmp.eq.s32.totalorder %v155, %v781
    %vm785 = vcmp.eq.s32.totalorder %v156, %v781
    %vm786 = vcmp.eq.s32.totalorder %v157, %v781
    %vm787 = vcmp.eq.s32.totalorder %v158, %v781
    %vm788 = vcmp.eq.s32.totalorder %v159, %v781
    %vm789 = vcmp.eq.s32.totalorder %v160, %v781
    %v790 = vsel %vm782, 1, 0
    %v791 = vsel %vm783, 1, 0
    %v792 = vsel %vm784, 1, 0
    %v793 = vsel %vm785, 1, 0
    %v794 = vsel %vm786, 1, 0
    %v795 = vsel %vm787, 1, 0
    %v796 = vsel %vm788, 1, 0
    %v797 = vsel %vm789, 1, 0
    %v798 = vcvt.s32.f32 %v790
    %v799 = vcvt.s32.f32 %v791
    %v800 = vcvt.s32.f32 %v792
    %v801 = vcvt.s32.f32 %v793
    %v802 = vcvt.s32.f32 %v794
    %v803 = vcvt.s32.f32 %v795
    %v804 = vcvt.s32.f32 %v796
    %v805 = vcvt.s32.f32 %v797
    %v806 = vmul.f32 %v769, %v776
    %v807 = vlaneseq
    %v808 = vshrl.u32 %v807, 7
    %v809 = vsub.s32 6, %v808
    %v810 = vrot.slane %v806, %v809
    %v811 = vmul.f32 %v798, %v810
    %v812 = vmul.f32 %v799, %v810
    %v813 = vmul.f32 %v800, %v810
    %v814 = vmul.f32 %v801, %v810
    %v815 = vmul.f32 %v802, %v810
    %v816 = vmul.f32 %v803, %v810
    %v817 = vmul.f32 %v804, %v810
    %v818 = vmul.f32 %v805, %v810
    %v819 = vadd.f32 %v761, %v811
    %v820 = vadd.f32 %v762, %v812
    %v821 = vadd.f32 %v763, %v813
    %v822 = vadd.f32 %v764, %v814
    %v823 = vadd.f32 %v765, %v815
    %v824 = vadd.f32 %v766, %v816
    %v825 = vadd.f32 %v767, %v817
    %v826 = vadd.f32 %v768, %v818
    %v827 = vmul.f32 %v709, %v710
    %vm828 = vcmp.ge.s32.totalorder %v715, 0
    %vm829 = vmand %vm719, %vm828
    %vm830 = vcmp.le.s32.totalorder %v715, 7
    %vm831 = vmand %vm829, %vm830
    %v832 = vsel %vm831, 1, 0
    %v833 = vcvt.s32.f32 %v832
    %v834 = vmul.u32 %v715, 8
    %v835 = vadd.s32 %v834, %v712
    %v836 = vlaneseq
    %v837 = vshrl.u32 %v836, 7
    %v838 = vsub.s32 6, %v837
    %v839 = vrot.slane %v835, %v838
    %vm840 = vcmp.eq.s32.totalorder %v153, %v839
    %vm841 = vcmp.eq.s32.totalorder %v154, %v839
    %vm842 = vcmp.eq.s32.totalorder %v155, %v839
    %vm843 = vcmp.eq.s32.totalorder %v156, %v839
    %vm844 = vcmp.eq.s32.totalorder %v157, %v839
    %vm845 = vcmp.eq.s32.totalorder %v158, %v839
    %vm846 = vcmp.eq.s32.totalorder %v159, %v839
    %vm847 = vcmp.eq.s32.totalorder %v160, %v839
    %v848 = vsel %vm840, 1, 0
    %v849 = vsel %vm841, 1, 0
    %v850 = vsel %vm842, 1, 0
    %v851 = vsel %vm843, 1, 0
    %v852 = vsel %vm844, 1, 0
    %v853 = vsel %vm845, 1, 0
    %v854 = vsel %vm846, 1, 0
    %v855 = vsel %vm847, 1, 0
    %v856 = vcvt.s32.f32 %v848
    %v857 = vcvt.s32.f32 %v849
    %v858 = vcvt.s32.f32 %v850
    %v859 = vcvt.s32.f32 %v851
    %v860 = vcvt.s32.f32 %v852
    %v861 = vcvt.s32.f32 %v853
    %v862 = vcvt.s32.f32 %v854
    %v863 = vcvt.s32.f32 %v855
    %v864 = vmul.f32 %v827, %v833
    %v865 = vlaneseq
    %v866 = vshrl.u32 %v865, 7
    %v867 = vsub.s32 6, %v866
    %v868 = vrot.slane %v864, %v867
    %v869 = vmul.f32 %v856, %v868
    %v870 = vmul.f32 %v857, %v868
    %v871 = vmul.f32 %v858, %v868
    %v872 = vmul.f32 %v859, %v868
    %v873 = vmul.f32 %v860, %v868
    %v874 = vmul.f32 %v861, %v868
    %v875 = vmul.f32 %v862, %v868
    %v876 = vmul.f32 %v863, %v868
    %v877 = vadd.f32 %v819, %v869
    %v878 = vadd.f32 %v820, %v870
    %v879 = vadd.f32 %v821, %v871
    %v880 = vadd.f32 %v822, %v872
    %v881 = vadd.f32 %v823, %v873
    %v882 = vadd.f32 %v824, %v874
    %v883 = vadd.f32 %v825, %v875
    %v884 = vadd.f32 %v826, %v876
    %v885 = vmul.f32 %v708, %v710
    %vm886 = vmand %vm772, %vm828
    %vm887 = vmand %vm886, %vm830
    %v888 = vsel %vm887, 1, 0
    %v889 = vcvt.s32.f32 %v888
    %v890 = vadd.s32 %v834, %v713
    %v891 = vlaneseq
    %v892 = vshrl.u32 %v891, 7
    %v893 = vsub.s32 6, %v892
    %v894 = vrot.slane %v890, %v893
    %vm895 = vcmp.eq.s32.totalorder %v153, %v894
    %vm896 = vcmp.eq.s32.totalorder %v154, %v894
    %vm897 = vcmp.eq.s32.totalorder %v155, %v894
    %vm898 = vcmp.eq.s32.totalorder %v156, %v894
    %vm899 = vcmp.eq.s32.totalorder %v157, %v894
    %vm900 = vcmp.eq.s32.totalorder %v158, %v894
    %vm901 = vcmp.eq.s32.totalorder %v159, %v894
    %vm902 = vcmp.eq.s32.totalorder %v160, %v894
    %v903 = vsel %vm895, 1, 0
    %v904 = vsel %vm896, 1, 0
    %v905 = vsel %vm897, 1, 0
    %v906 = vsel %vm898, 1, 0
    %v907 = vsel %vm899, 1, 0
    %v908 = vsel %vm900, 1, 0
    %v909 = vsel %vm901, 1, 0
    %v910 = vsel %vm902, 1, 0
    %v911 = vcvt.s32.f32 %v903
    %v912 = vcvt.s32.f32 %v904
    %v913 = vcvt.s32.f32 %v905
    %v914 = vcvt.s32.f32 %v906
    %v915 = vcvt.s32.f32 %v907
    %v916 = vcvt.s32.f32 %v908
    %v917 = vcvt.s32.f32 %v909
    %v918 = vcvt.s32.f32 %v910
    %v919 = vmul.f32 %v885, %v889
    %v920 = vlaneseq
    %v921 = vshrl.u32 %v920, 7
    %v922 = vsub.s32 6, %v921
    %v923 = vrot.slane %v919, %v922
    %v924 = vmul.f32 %v911, %v923
    %v925 = vmul.f32 %v912, %v923
    %v926 = vmul.f32 %v913, %v923
    %v927 = vmul.f32 %v914, %v923
    %v928 = vmul.f32 %v915, %v923
    %v929 = vmul.f32 %v916, %v923
    %v930 = vmul.f32 %v917, %v923
    %v931 = vmul.f32 %v918, %v923
    %v932 = vadd.f32 %v877, %v924
    %v933 = vadd.f32 %v878, %v925
    %v934 = vadd.f32 %v879, %v926
    %v935 = vadd.f32 %v880, %v927
    %v936 = vadd.f32 %v881, %v928
    %v937 = vadd.f32 %v882, %v929
    %v938 = vadd.f32 %v883, %v930
    %v939 = vadd.f32 %v884, %v931
    %v941 = vrot.slane %v138, 3
    %v942 = vsel %vm141, %v941, 0
    %944 = vmatprep.subr.mxu0 0.0
    %945 = vmatpush1.msra.mxu0 0.0
    %946 = vmatprep.subr.mxu0 0.0
    %947 = vmatpush1.msra.mxu0 0.0
    %948 = vmatprep.subr.mxu0 0.0
    %949 = vmatpush1.msra.mxu0 0.0
    %950 = vmatprep.subr.mxu0 0.0
    %951 = vmatpush1.msra.mxu0 0.0
    %952 = vmatprep.subr.mxu0 0.0
    %953 = vmatpush1.msra.mxu0 0.0
    %954 = vmatprep.subr.mxu0 0.0
    %955 = vmatpush1.msra.mxu0 0.0
    %956 = vmatprep.subr.mxu0 0.0
    %957 = vmatpush1.msra.mxu0 0.0
    %958 = vmatprep.subr.mxu0 0.0
    %959 = vmatpush1.msra.mxu0 0.0
    %960 = vmatprep.subr.mxu0 0.0
    %961 = vmatpush1.msra.mxu0 %v939
    %962 = vmatprep.subr.mxu0 0.0
    %963 = vmatpush1.msra.mxu0 %v938
    %964 = vmatprep.subr.mxu0 0.0
    %965 = vmatpush1.msra.mxu0 %v937
    %966 = vmatprep.subr.mxu0 0.0
    %967 = vmatpush1.msra.mxu0 %v936
    %968 = vmatprep.subr.mxu0 0.0
    %969 = vmatpush1.msra.mxu0 %v935
    %970 = vmatprep.subr.mxu0 0.0
    %971 = vmatpush1.msra.mxu0 %v934
    %972 = vmatprep.subr.mxu0 0.0
    %973 = vmatpush1.msra.mxu0 %v933
    %974 = vmatprep.subr.mxu0 0.0
    %975 = vmatpush1.msra.mxu0 %v932
    %976 = vmatprep.subr.mxu0 0.0
    %977 = vmatpush2.msra.mxu0 0.0
    %978 = vmatprep.subr.mxu0 0.0
    %979 = vmatpush2.msra.mxu0 0.0
    %980 = vmatprep.subr.mxu0 0.0
    %981 = vmatpush2.msra.mxu0 0.0
    %982 = vmatprep.subr.mxu0 0.0
    %983 = vmatpush2.msra.mxu0 0.0
    %984 = vmatprep.subr.mxu0 0.0
    %985 = vmatpush2.msra.mxu0 0.0
    %986 = vmatprep.subr.mxu0 0.0
    %987 = vmatpush2.msra.mxu0 0.0
    %988 = vmatprep.subr.mxu0 0.0
    %989 = vmatpush2.msra.mxu0 0.0
    %990 = vmatprep.subr.mxu0 0.0
    %991 = vmatpush2.msra.mxu0 0.0
    %992 = vmatprep.subr.mxu0 0.0
    %993 = vmatpush2.msra.mxu0 0.0
    %994 = vmatprep.subr.mxu0 0.0
    %995 = vmatpush2.msra.mxu0 0.0
    %996 = vmatprep.subr.mxu0 0.0
    %997 = vmatpush2.msra.mxu0 0.0
    %998 = vmatprep.subr.mxu0 0.0
    %999 = vmatpush2.msra.mxu0 0.0
    %1000 = vmatprep.subr.mxu0 0.0
    %1001 = vmatpush2.msra.mxu0 0.0
    %1002 = vmatprep.subr.mxu0 0.0
    %1003 = vmatpush2.msra.mxu0 0.0
    %1004 = vmatprep.subr.mxu0 0.0
    %1005 = vmatpush2.msra.mxu0 0.0
    %1006 = vmatprep.subr.mxu0 0.0
    %1007 = vmatpush2.msra.mxu0 0.0
    %1008 = vmatprep.mubr.f32.mxu0 0.0
    %1009 = vmatmul.mubr.f32.gmra.mxu0 %v942
    %v1010 = vpop.f32.mrf.mxu0
    %v1011 = vadd.f32 0.0, %v1010
    %v1012 = vpop.f32.mrf.mxu0
    %1013 = vdwg.mxu0
    %v1014 = vsub.f32 %v138, %v1011
    %v1015 = vand.u32 2147483647, %v1014
    %v1016 = vrot.slane %v138, 1
    %v1018 = vadd.f32 %v138, %v1016
    %v1020 = vrot.slane %v1011, 1
    %v1022 = vadd.f32 %v1011, %v1020
    %v1024 = vrot.slane %v1015, 1
    %v1026 = vadd.f32 %v1015, %v1024
    %v1027 = vrot.slane %v138, 2
    %v1029 = vadd.f32 %v1018, %v1027
    %v1030 = vrot.slane %v1011, 2
    %v1032 = vadd.f32 %v1022, %v1030
    %v1033 = vrot.slane %v1015, 2
    %v1035 = vadd.f32 %v1026, %v1033
    %vm1036 = vcmp.ne.f32.partialorder %v138, 0.0
    %vm1037 = vcmp.gt.f32.partialorder %v1029, 0.0
    %v1038 = vsel %vm1037, 1, 0
    %v1039 = vrot.slane %v1038, 1
    %vm1040 = vcmp.ne.s32.totalorder %v1039, 0
    %vm1041 = vmand %vm1036, %vm1040
    %vm1042 = vcmp.gt.f32.partialorder %v1032, 0.0
    %v1043 = vsel %vm1042, 1, 0
    %v1044 = vrot.slane %v1043, 1
    %vm1045 = vcmp.ne.s32.totalorder %v1044, 0
    %vm1046 = vmand %vm1041, %vm1045
    %v1047 = vsel %vm1046, 1, 0
    %v1048 = vcvt.s32.f32 %v1047
    %v1050 = vrot.slane %v1048, 7
    %v1052 = vmul.f32 %v1035, %v1050
    %v1053 = vsel %vm590, %v1052, 0.0
    %1054 = vadd.xlane.f32.xlu0 %v1053
    %v1055 = vpop.xlane.xlu0 %1054
    %v1056 = vrot.slane %v1055, 4
    %v1057 = vadd.f32 %v1055, %v1056
    %v1058 = vrot.slane %v1057, 2
    %v1059 = vadd.f32 %v1057, %v1058
    %v1060 = vrot.slane %v1059, 1
    %v1061 = vadd.f32 %v1059, %v1060
    %s1062 = vtos %v1061
    %s1063 = sadd.f32 %s601, %s1062
    %v1064 = vsel %vm590, %v1050, 0.0
    %1065 = vadd.xlane.f32.xlu0 %v1064
    %v1066 = vpop.xlane.xlu0 %1065
    %v1067 = vrot.slane %v1066, 4
    %v1068 = vadd.f32 %v1066, %v1067
    %v1069 = vrot.slane %v1068, 2
    %v1070 = vadd.f32 %v1068, %v1069
    %v1071 = vrot.slane %v1070, 1
    %v1072 = vadd.f32 %v1070, %v1071
    %s1073 = vtos %v1072
    %s1074 = sadd.f32 %s612, %s1073
    %v1075 = vsel %vm613, %v138, -inf
    %1076 = vmax.xlane.f32.xlu0 %v1075
    %v1077 = vpop.xlane.xlu0 %1076
    %v1078 = vrot.slane %v1077, 4
    %v1079 = vmax.f32 %v1077, %v1078
    %v1080 = vrot.slane %v1079, 2
    %v1081 = vmax.f32 %v1079, %v1080
    %v1082 = vrot.slane %v1081, 1
    %v1083 = vmax.f32 %v1081, %v1082
    %s1084 = vtos %v1083
    %s1085 = smax.f32 %s623, %s1084
    %s1086 = scalar_lea.smem [#allocation5], 0
    %1087 = sst [smem:[%s1086]] %s1063
    %s1088 = scalar_lea.smem [#allocation5], 1
    %1089 = sst [smem:[%s1088]] %s1074
    %s1090 = scalar_lea.smem [#allocation5], 2
    %1091 = sst [smem:[%s1090]] %s1085
    // Predicated region
    $region18: #{multiscale_masked_photometric_loss.3} parent=1 // pred_check
      _
    $region19: #{multiscale_masked_photometric_loss.3} parent=1 // pred_check_branch
      %1093 = sbr.rel (0) target = $region21
    $region20: #{multiscale_masked_photometric_loss.3} parent=1 // pred_region
      _
    $region21: #{multiscale_masked_photometric_loss.3} parent=1 // pred_fallthru
      _
    // Predicated region
    $region22: #{multiscale_masked_photometric_loss.3} parent=1 // pred_check
      _
    $region23: #{multiscale_masked_photometric_loss.3} parent=1 // pred_check_branch
      %1095 = sbr.rel (0) target = $region25
    $region24: #{multiscale_masked_photometric_loss.3} parent=1 // pred_region
      %s1097 = ssub.s32 16, 16
      %1098 = vsyncadd [#allocation4], %s1097
      %s1100 = sshll.u32 %s4, 4
      %s1101 = int_to_ptr.vmem [resolvable:$true] %s1100
      %1103 = dma.smem_to_vmem [#allocation5], 16, %s1101, [#allocation4]
    $region25: #{multiscale_masked_photometric_loss.3} parent=1 // pred_fallthru
      _
    // Predicated region
    $region26: #{multiscale_masked_photometric_loss.3} parent=1 // pred_check
      _
    $region27: #{multiscale_masked_photometric_loss.3} parent=1 // pred_check_branch
      %1105 = sbr.rel (0) target = $region29
    $region28: #{multiscale_masked_photometric_loss.3} parent=1 // pred_region
      _
    $region29: #{multiscale_masked_photometric_loss.3} parent=1 // pred_fallthru
      _
    // Predicated region
    $region30: #{multiscale_masked_photometric_loss.3} parent=1 // pred_check
      _
    $region31: #{multiscale_masked_photometric_loss.3} parent=1 // pred_check_branch
      %1107 = sbr.rel (0) target = $region33
    $region32: #{multiscale_masked_photometric_loss.3} parent=1 // pred_region
      %1108 = dma.done [#allocation4], 16
    $region33: #{multiscale_masked_photometric_loss.3} parent=1 // pred_fallthru
      _
    %1109 = sfence
    %1110 = vsyncpa [#allocation3], 1
    %1111 = vsyncpa [#allocation4], 1

</llo_original>
